<compile_context>
chip_gen: v6e
topology: v6e:2x2x1
jax: 0.10.0
libtpu: 0.0.40
codegen_flags: <defaults>
</compile_context>

<pallas_src>
import functools

import jax
import jax.numpy as jnp
import numpy as np
from jax import lax
from jax.experimental import pallas as pl
from jax.experimental.pallas import tpu as pltpu

NUM_GROUPS = 32
EPS = 1e-6
LEAKY_SLOPE = 0.2


# ----------------------------------------------------------------------------
# Fused kernel: ResBlock(2*in_ch, out_ch) + scale/shift branches + SFT epilogue
# ----------------------------------------------------------------------------
def _fused_kernel(enc_ref, dec_ref, masks_ref,
                  g1_ref, be1_ref, agg1_ref, agg1t_ref, w1_ref, b1_ref,
                  g2_ref, be2_ref, agg2_ref, agg2t_ref, w2_ref, b2_ref,
                  wsk_ref, bsk_ref,
                  wss1_ref, bss1_ref,
                  wsc2_ref, bsc2_ref, wsh2_ref, bsh2_ref,
                  sftw_ref,
                  o_ref, *, W):
    Cout = o_ref.shape[1]
    HW = o_ref.shape[2]

    # Per-tap boundary masks (reproduce 'same' zero padding exactly).
    masks_f = masks_ref[...]                                       # (9, HW) f32
    tap_mask = [masks_f[t:t + 1, :].astype(jnp.bfloat16) for t in range(9)]

    def conv3x3(h, w_ref_, b_ref_, leaky=False):
        """3x3 'same' conv of a (Cin, HW) activation as one bf16 MXU matmul."""
        hb = h.astype(jnp.bfloat16)                                # (Cin, HW)
        # Double along lanes once (128-aligned concat); every tap is then a
        # single static lane slice: hh[:, d:d+HW] == x[:, (j+delta) mod HW].
        hh = jnp.concatenate([hb, hb], axis=1)                     # (Cin, 2*HW)
        taps = []
        t = 0
        for dy in (-1, 0, 1):
            for dx in (-1, 0, 1):
                d = (dy * W + dx) % HW
                v = hb if d == 0 else hh[:, d:d + HW]
                if t != 4:                       # center tap needs no mask
                    v = v * tap_mask[t]          # zero out-of-image sources
                taps.append(v)
                t += 1
        patch = jnp.concatenate(taps, axis=0)    # (9*Cin, HW) bf16 (aligned)
        y = jnp.dot(w_ref_[...], patch,
                    preferred_element_type=jnp.float32) + b_ref_[...]
        if leaky:
            y = jnp.where(y >= 0, y, LEAKY_SLOPE * y)
        return y                                                   # (Co, HW) f32

    def gn_swish(x, gamma, beta, agg_ref, aggt_ref):
        """GroupNorm(32, eps=1e-6, affine) + swish on a (C, HW) f32 tile."""
        C = x.shape[0]
        g = C // NUM_GROUPS
        inv_n = 1.0 / (g * HW)
        s1 = jnp.sum(x, axis=1, keepdims=True)                     # (C, 1)
        if g == 1:                                # per-channel groups: no agg
            mean_c = s1 * inv_n
        else:
            mean_g = jnp.dot(agg_ref[...], s1,
                             preferred_element_type=jnp.float32) * inv_n
            mean_c = jnp.dot(aggt_ref[...], mean_g,
                             preferred_element_type=jnp.float32)
        xc = x - mean_c                           # two-pass (centered) variance
        s2 = jnp.sum(xc * xc, axis=1, keepdims=True)
        if g == 1:
            inv_c = lax.rsqrt(s2 * inv_n + EPS)
        else:
            var_g = jnp.dot(agg_ref[...], s2,
                            preferred_element_type=jnp.float32) * inv_n
            inv_c = jnp.dot(aggt_ref[...], lax.rsqrt(var_g + EPS),
                            preferred_element_type=jnp.float32)
        y = xc * inv_c * gamma + beta
        return y * jax.nn.sigmoid(y)              # swish

    enc = enc_ref[0].astype(jnp.float32)                           # (Cin, HW)
    dec = dec_ref[0].astype(jnp.float32)                           # (Cin, HW)
    x_in = jnp.concatenate([enc, dec], axis=0)                     # (2Cin, HW)

    # ---------------- ResBlock(2*in_ch, out_ch) ----------------
    h = gn_swish(x_in, g1_ref[...], be1_ref[...], agg1_ref, agg1t_ref)
    h = conv3x3(h, w1_ref, b1_ref)
    h = gn_swish(h, g2_ref[...], be2_ref[...], agg2_ref, agg2t_ref)
    h = conv3x3(h, w2_ref, b2_ref)
    skip = jnp.dot(wsk_ref[...], x_in.astype(jnp.bfloat16),
                   preferred_element_type=jnp.float32) + bsk_ref[...]
    enc2 = h + skip                                                # (Cout, HW)

    # ---- SFT branches: scale|shift first conv fused, second convs real ----
    st = conv3x3(enc2, wss1_ref, bss1_ref, leaky=True)             # (2Cout, HW)
    scale = conv3x3(st[:Cout, :], wsc2_ref, bsc2_ref)              # (Cout, HW)
    shift = conv3x3(st[Cout:, :], wsh2_ref, bsh2_ref)              # (Cout, HW)

    sw = sftw_ref[0]                                               # SMEM scalar
    o_ref[0] = (dec + sw * (dec * scale + shift)).astype(o_ref.dtype)


# ----------------------------------------------------------------------------
# Wrapper
# ----------------------------------------------------------------------------
def _make_group_agg(c):
    g = c // NUM_GROUPS
    a = np.zeros((NUM_GROUPS, c), np.float32)
    a[np.arange(c) // g, np.arange(c)] = 1.0
    return jnp.asarray(a), jnp.asarray(a.T)            # (G, C), (C, G)


def _make_tap_masks(H, W):
    ys, xs = np.meshgrid(np.arange(H), np.arange(W), indexing="ij")
    ys, xs = ys.reshape(-1), xs.reshape(-1)
    m = np.zeros((9, H * W), np.float32)
    t = 0
    for dy in (-1, 0, 1):
        for dx in (-1, 0, 1):
            m[t] = ((ys + dy >= 0) & (ys + dy < H) &
                    (xs + dx >= 0) & (xs + dx < W)).astype(np.float32)
            t += 1
    return jnp.asarray(m)


def fuse_sft_block_forward(params, enc_feat, dec_feat, w=1.0):
    B, Cin, H, W = enc_feat.shape
    HW = H * W
    p = params
    Cout = p["conv1_w"].shape[-1]
    C2 = 2 * Cin
    # The original module feeds the scale/shift branches (declared with in_ch
    # input channels) the ResBlock output (out_ch channels) and multiplies
    # scale/shift (out_ch) with dec_feat (in_ch): only valid when in_ch==out_ch.
    assert Cin == Cout, "Fuse_sft_block requires in_ch == out_ch (module quirk)"
    assert C2 % NUM_GROUPS == 0 and Cout % NUM_GROUPS == 0

    def lhs3x3(wk):     # HWIO (3,3,ci,co) -> (co, 9*ci) bf16 MXU lhs
        kh, kw, ci, co = wk.shape
        return wk.reshape(kh * kw * ci, co).T.astype(jnp.bfloat16)

    def col(v):         # (c,) -> (c, 1) f32 column (broadcasts over lanes)
        return v.reshape(-1, 1).astype(jnp.float32)

    # ResBlock weights.
    w1 = lhs3x3(p["conv1_w"])                                   # (Cout, 9*C2)
    w2 = lhs3x3(p["conv2_w"])                                   # (Cout, 9*Cout)
    wsk = p["convout_w"].reshape(C2, Cout).T.astype(jnp.bfloat16)   # (Cout, C2)

    # scale & shift: first convs fused along OUTPUT channels; second convs kept
    # as two real matmuls (no zero-padded block-diagonal weight).
    wss1 = lhs3x3(jnp.concatenate([p["scale1_w"], p["shift1_w"]], axis=-1))
    bss1 = col(jnp.concatenate([p["scale1_b"], p["shift1_b"]]))
    wsc2, bsc2 = lhs3x3(p["scale2_w"]), col(p["scale2_b"])
    wsh2, bsh2 = lhs3x3(p["shift2_w"]), col(p["shift2_b"])

    agg1, agg1t = _make_group_agg(C2)
    agg2, agg2t = _make_group_agg(Cout)      # unused in-kernel when g == 1
    masks = _make_tap_masks(H, W)                                # (9, HW) f32

    g1, be1 = col(p["norm1_gamma"]), col(p["norm1_beta"])
    g2, be2 = col(p["norm2_gamma"]), col(p["norm2_beta"])
    b1, b2, bsk = col(p["conv1_b"]), col(p["conv2_b"]), col(p["convout_b"])

    # (B, C, H, W) -> (B, C, H*W): metadata-only reshape, native dtype kept.
    enc_r = enc_feat.reshape(B, Cin, HW)
    dec_r = dec_feat.reshape(B, Cin, HW)
    sftw = jnp.asarray(w, dtype=jnp.float32).reshape(1)

    def full(a):
        nd = a.ndim
        return pl.BlockSpec(a.shape, lambda b: (0,) * nd)

    def batch_in(c):
        return pl.BlockSpec((1, c, HW), lambda b: (b, 0, 0))

    flops = 2 * B * HW * (9 * C2 * Cout + 9 * Cout * Cout + C2 * Cout
                          + 9 * Cin * 2 * Cout + 2 * 9 * Cout * Cout)
    weight_bytes = 2 * (9 * C2 * Cout + 9 * Cout * Cout + 9 * Cin * 2 * Cout
                        + 2 * 9 * Cout * Cout + C2 * Cout)
    cost = pl.CostEstimate(
        flops=int(flops),
        transcendentals=int(B * HW * (C2 + Cout)),
        bytes_accessed=int(4 * B * HW * (2 * Cin + Cout) + weight_bytes))

    kernel = functools.partial(_fused_kernel, W=W)
    out = pl.pallas_call(
        kernel,
        out_shape=jax.ShapeDtypeStruct((B, Cout, HW), jnp.float32),
        grid=(B,),
        in_specs=[
            batch_in(Cin), batch_in(Cin),                        # enc, dec
            full(masks),
            full(g1), full(be1), full(agg1), full(agg1t), full(w1), full(b1),
            full(g2), full(be2), full(agg2), full(agg2t), full(w2), full(b2),
            full(wsk), full(bsk),
            full(wss1), full(bss1),
            full(wsc2), full(bsc2), full(wsh2), full(bsh2),
            pl.BlockSpec(memory_space=pltpu.MemorySpace.SMEM),   # sft 'w'
        ],
        out_specs=pl.BlockSpec((1, Cout, HW), lambda b: (b, 0, 0)),
        compiler_params=pltpu.CompilerParams(
            dimension_semantics=("parallel",),
            vmem_limit_bytes=48 * 1024 * 1024),
        cost_estimate=cost,
    )(enc_r, dec_r, masks, g1, be1, agg1, agg1t, w1, b1,
      g2, be2, agg2, agg2t, w2, b2, wsk, bsk, wss1, bss1,
      wsc2, bsc2, wsh2, bsh2, sftw)

    return out.reshape(B, Cout, H, W)        # already NCHW; metadata reshape


# ----------------------------------------------------------------------------
# Pure-JAX reference (correctness check only)
# ----------------------------------------------------------------------------
def _ref_gn_swish(x, gamma, beta):
    B, H, W, C = x.shape
    g = C // NUM_GROUPS
    xr = x.reshape(B, H, W, NUM_GROUPS, g)
    mean = jnp.mean(xr, axis=(1, 2, 4), keepdims=True)
    var = jnp.mean((xr - mean) ** 2, axis=(1, 2, 4), keepdims=True)
    y = ((xr - mean) / jnp.sqrt(var + EPS)).reshape(B, H, W, C)
    y = y * gamma.reshape(1, 1, 1, C) + beta.reshape(1, 1, 1, C)
    return y * jax.nn.sigmoid(y)


def _ref_conv(x, wk, b, pad, leaky=False):
    y = lax.conv_general_dilated(x, wk, (1, 1), [(pad, pad), (pad, pad)],
                                 dimension_numbers=("NHWC", "HWIO", "NHWC"))
    y = y + b.reshape(1, 1, 1, -1)
    if leaky:
        y = jnp.where(y >= 0, y, LEAKY_SLOPE * y)
    return y


def reference_forward(params, enc_feat, dec_feat, w=1.0):
    enc = jnp.transpose(enc_feat, (0, 2, 3, 1)).astype(jnp.float32)
    dec = jnp.transpose(dec_feat, (0, 2, 3, 1)).astype(jnp.float32)
    x_in = jnp.concatenate([enc, dec], axis=-1)
    p = params
    h = _ref_gn_swish(x_in, p["norm1_gamma"], p["norm1_beta"])
    h = _ref_conv(h, p["conv1_w"], p["conv1_b"], 1)
    h = _ref_gn_swish(h, p["norm2_gamma"], p["norm2_beta"])
    h = _ref_conv(h, p["conv2_w"], p["conv2_b"], 1)
    skip = _ref_conv(x_in, p["convout_w"], p["convout_b"], 0)
    enc2 = h + skip
    s = _ref_conv(enc2, p["scale1_w"], p["scale1_b"], 1, leaky=True)
    s = _ref_conv(s, p["scale2_w"], p["scale2_b"], 1)
    t = _ref_conv(enc2, p["shift1_w"], p["shift1_b"], 1, leaky=True)
    t = _ref_conv(t, p["shift2_w"], p["shift2_b"], 1)
    out = dec + w * (dec * s + t)
    return jnp.transpose(out, (0, 3, 1, 2))


# ----------------------------------------------------------------------------
# Deterministic parameter init (synthetic; mirrors module __init__ shapes)
# ----------------------------------------------------------------------------
def init_params(key, in_ch, out_ch):
    keys = jax.random.split(key, 16)

    def cw(k, kh, kw, cin, cout):
        bound = 1.0 / np.sqrt(kh * kw * cin)
        return jax.random.uniform(k, (kh, kw, cin, cout), jnp.float32, -bound, bound)

    def cb(k, fan_in, cout):
        bound = 1.0 / np.sqrt(fan_in)
        return jax.random.uniform(k, (cout,), jnp.float32, -bound, bound)

    c2 = 2 * in_ch
    return {
        # ResBlock(2*in_ch, out_ch)
        "norm1_gamma": jnp.ones((c2,), jnp.float32),
        "norm1_beta": jnp.zeros((c2,), jnp.float32),
        "conv1_w": cw(keys[0], 3, 3, c2, out_ch),
        "conv1_b": cb(keys[1], 9 * c2, out_ch),
        "norm2_gamma": jnp.ones((out_ch,), jnp.float32),
        "norm2_beta": jnp.zeros((out_ch,), jnp.float32),
        "conv2_w": cw(keys[2], 3, 3, out_ch, out_ch),
        "conv2_b": cb(keys[3], 9 * out_ch, out_ch),
        "convout_w": cw(keys[4], 1, 1, c2, out_ch),
        "convout_b": cb(keys[5], c2, out_ch),
        # scale branch
        "scale1_w": cw(keys[6], 3, 3, in_ch, out_ch),
        "scale1_b": cb(keys[7], 9 * in_ch, out_ch),
        "scale2_w": cw(keys[8], 3, 3, out_ch, out_ch),
        "scale2_b": cb(keys[9], 9 * out_ch, out_ch),
        # shift branch
        "shift1_w": cw(keys[10], 3, 3, in_ch, out_ch),
        "shift1_b": cb(keys[11], 9 * in_ch, out_ch),
        "shift2_w": cw(keys[12], 3, 3, out_ch, out_ch),
        "shift2_b": cb(keys[13], 9 * out_ch, out_ch),
    }


if __name__ == "__main__":
    # GroupNorm(32, ...) requires channel counts divisible by 32.
    in_ch = 32
    out_ch = 32
    B, H, W = 2, 16, 16

    key = jax.random.PRNGKey(0)
    k1, k2, k3 = jax.random.split(key, 3)
    enc_feat = jax.random.normal(k1, (B, in_ch, H, W), jnp.float32)   # NCHW
    dec_feat = jax.random.normal(k2, (B, in_ch, H, W), jnp.float32)
    params = init_params(k3, in_ch, out_ch)

    fwd = jax.jit(lambda p, e, d: fuse_sft_block_forward(p, e, d, w=1.0))
    out = jax.block_until_ready(fwd(params, enc_feat, dec_feat))

    ref = reference_forward(params, enc_feat, dec_feat, w=1.0)
    # bf16 MXU operands (f32 accumulation) -> tolerance looser than pure f32.
    np.testing.assert_allclose(np.asarray(out), np.asarray(ref),
                               rtol=2e-2, atol=2e-2)

    print("KERNEL_OK")
</pallas_src>

<mosaic_0001>
module attributes {stable_mosaic.version = 11 : i64} {
  func.func @_fused_kernel(%arg0: i32, %arg1: memref<1x32x256xf32, #tpu.memory_space<vmem>>, %arg2: memref<1x32x256xf32, #tpu.memory_space<vmem>>, %arg3: memref<9x256xf32, #tpu.memory_space<vmem>>, %arg4: memref<64x1xf32, #tpu.memory_space<vmem>>, %arg5: memref<64x1xf32, #tpu.memory_space<vmem>>, %arg6: memref<32x64xf32, #tpu.memory_space<vmem>>, %arg7: memref<64x32xf32, #tpu.memory_space<vmem>>, %arg8: memref<32x576xbf16, #tpu.memory_space<vmem>>, %arg9: memref<32x1xf32, #tpu.memory_space<vmem>>, %arg10: memref<32x1xf32, #tpu.memory_space<vmem>>, %arg11: memref<32x1xf32, #tpu.memory_space<vmem>>, %arg12: memref<32x32xf32, #tpu.memory_space<vmem>>, %arg13: memref<32x32xf32, #tpu.memory_space<vmem>>, %arg14: memref<32x288xbf16, #tpu.memory_space<vmem>>, %arg15: memref<32x1xf32, #tpu.memory_space<vmem>>, %arg16: memref<32x64xbf16, #tpu.memory_space<vmem>>, %arg17: memref<32x1xf32, #tpu.memory_space<vmem>>, %arg18: memref<64x288xbf16, #tpu.memory_space<vmem>>, %arg19: memref<64x1xf32, #tpu.memory_space<vmem>>, %arg20: memref<32x288xbf16, #tpu.memory_space<vmem>>, %arg21: memref<32x1xf32, #tpu.memory_space<vmem>>, %arg22: memref<32x288xbf16, #tpu.memory_space<vmem>>, %arg23: memref<32x1xf32, #tpu.memory_space<vmem>>, %arg24: memref<1xf32, #tpu.memory_space<smem>>, %arg25: memref<1x32x256xf32, #tpu.memory_space<vmem>>) attributes {dimension_semantics = [#tpu.dimension_semantics<parallel>], iteration_bounds = array<i64: 2>, scalar_prefetch = 0 : i64, scratch_operands = 0 : i64, tpu.core_type = #tpu.core_type<tc>, window_params = [{transform_indices = @transform_0, window_bounds = array<i64: 1, 32, 256>}, {transform_indices = @transform_1, window_bounds = array<i64: 1, 32, 256>}, {pipeline_mode = #tpu.pipeline_mode<synchronous>, transform_indices = @transform_2, window_bounds = array<i64: 9, 256>}, {pipeline_mode = #tpu.pipeline_mode<synchronous>, transform_indices = @transform_3, window_bounds = array<i64: 64, 1>}, {pipeline_mode = #tpu.pipeline_mode<synchronous>, transform_indices = @transform_4, window_bounds = array<i64: 64, 1>}, {pipeline_mode = #tpu.pipeline_mode<synchronous>, transform_indices = @transform_5, window_bounds = array<i64: 32, 64>}, {pipeline_mode = #tpu.pipeline_mode<synchronous>, transform_indices = @transform_6, window_bounds = array<i64: 64, 32>}, {pipeline_mode = #tpu.pipeline_mode<synchronous>, transform_indices = @transform_7, window_bounds = array<i64: 32, 576>}, {pipeline_mode = #tpu.pipeline_mode<synchronous>, transform_indices = @transform_8, window_bounds = array<i64: 32, 1>}, {pipeline_mode = #tpu.pipeline_mode<synchronous>, transform_indices = @transform_9, window_bounds = array<i64: 32, 1>}, {pipeline_mode = #tpu.pipeline_mode<synchronous>, transform_indices = @transform_10, window_bounds = array<i64: 32, 1>}, {pipeline_mode = #tpu.pipeline_mode<synchronous>, transform_indices = @transform_11, window_bounds = array<i64: 32, 32>}, {pipeline_mode = #tpu.pipeline_mode<synchronous>, transform_indices = @transform_12, window_bounds = array<i64: 32, 32>}, {pipeline_mode = #tpu.pipeline_mode<synchronous>, transform_indices = @transform_13, window_bounds = array<i64: 32, 288>}, {pipeline_mode = #tpu.pipeline_mode<synchronous>, transform_indices = @transform_14, window_bounds = array<i64: 32, 1>}, {pipeline_mode = #tpu.pipeline_mode<synchronous>, transform_indices = @transform_15, window_bounds = array<i64: 32, 64>}, {pipeline_mode = #tpu.pipeline_mode<synchronous>, transform_indices = @transform_16, window_bounds = array<i64: 32, 1>}, {pipeline_mode = #tpu.pipeline_mode<synchronous>, transform_indices = @transform_17, window_bounds = array<i64: 64, 288>}, {pipeline_mode = #tpu.pipeline_mode<synchronous>, transform_indices = @transform_18, window_bounds = array<i64: 64, 1>}, {pipeline_mode = #tpu.pipeline_mode<synchronous>, transform_indices = @transform_19, window_bounds = array<i64: 32, 288>}, {pipeline_mode = #tpu.pipeline_mode<synchronous>, transform_indices = @transform_20, window_bounds = array<i64: 32, 1>}, {pipeline_mode = #tpu.pipeline_mode<synchronous>, transform_indices = @transform_21, window_bounds = array<i64: 32, 288>}, {pipeline_mode = #tpu.pipeline_mode<synchronous>, transform_indices = @transform_22, window_bounds = array<i64: 32, 1>}, {transform_indices = @transform_23, window_bounds = array<i64: 1>}, {transform_indices = @transform_24, window_bounds = array<i64: 1, 32, 256>}]} {
    %c0 = arith.constant 0 : index
    %c0_0 = arith.constant 0 : index
    %0 = vector.load %arg3[%c0, %c0_0] : memref<9x256xf32, #tpu.memory_space<vmem>>, vector<9x256xf32>
    %1 = vector.extract_strided_slice %0 {offsets = [0, 0], sizes = [1, 256], strides = [1, 1]} : vector<9x256xf32> to vector<1x256xf32>
    %2 = arith.truncf %1 : vector<1x256xf32> to vector<1x256xbf16>
    %3 = vector.extract_strided_slice %0 {offsets = [1, 0], sizes = [1, 256], strides = [1, 1]} : vector<9x256xf32> to vector<1x256xf32>
    %4 = arith.truncf %3 : vector<1x256xf32> to vector<1x256xbf16>
    %5 = vector.extract_strided_slice %0 {offsets = [2, 0], sizes = [1, 256], strides = [1, 1]} : vector<9x256xf32> to vector<1x256xf32>
    %6 = arith.truncf %5 : vector<1x256xf32> to vector<1x256xbf16>
    %7 = vector.extract_strided_slice %0 {offsets = [3, 0], sizes = [1, 256], strides = [1, 1]} : vector<9x256xf32> to vector<1x256xf32>
    %8 = arith.truncf %7 : vector<1x256xf32> to vector<1x256xbf16>
    %9 = vector.extract_strided_slice %0 {offsets = [5, 0], sizes = [1, 256], strides = [1, 1]} : vector<9x256xf32> to vector<1x256xf32>
    %10 = arith.truncf %9 : vector<1x256xf32> to vector<1x256xbf16>
    %11 = vector.extract_strided_slice %0 {offsets = [6, 0], sizes = [1, 256], strides = [1, 1]} : vector<9x256xf32> to vector<1x256xf32>
    %12 = arith.truncf %11 : vector<1x256xf32> to vector<1x256xbf16>
    %13 = vector.extract_strided_slice %0 {offsets = [7, 0], sizes = [1, 256], strides = [1, 1]} : vector<9x256xf32> to vector<1x256xf32>
    %14 = arith.truncf %13 : vector<1x256xf32> to vector<1x256xbf16>
    %15 = vector.extract_strided_slice %0 {offsets = [8, 0], sizes = [1, 256], strides = [1, 1]} : vector<9x256xf32> to vector<1x256xf32>
    %16 = arith.truncf %15 : vector<1x256xf32> to vector<1x256xbf16>
    %c0_1 = arith.constant 0 : index
    %c0_2 = arith.constant 0 : index
    %c0_3 = arith.constant 0 : index
    %17 = vector.load %arg1[%c0_1, %c0_2, %c0_3] : memref<1x32x256xf32, #tpu.memory_space<vmem>>, vector<1x32x256xf32>
    %18 = vector.shape_cast %17 : vector<1x32x256xf32> to vector<32x256xf32>
    %c0_4 = arith.constant 0 : index
    %c0_5 = arith.constant 0 : index
    %c0_6 = arith.constant 0 : index
    %19 = vector.load %arg2[%c0_4, %c0_5, %c0_6] : memref<1x32x256xf32, #tpu.memory_space<vmem>>, vector<1x32x256xf32>
    %20 = vector.shape_cast %19 : vector<1x32x256xf32> to vector<32x256xf32>
    %21 = tpu.concatenate %18, %20 in 0 : vector<32x256xf32>, vector<32x256xf32> -> vector<64x256xf32>
    %c0_7 = arith.constant 0 : index
    %c0_8 = arith.constant 0 : index
    %22 = vector.load %arg4[%c0_7, %c0_8] : memref<64x1xf32, #tpu.memory_space<vmem>>, vector<64x1xf32>
    %c0_9 = arith.constant 0 : index
    %c0_10 = arith.constant 0 : index
    %23 = vector.load %arg5[%c0_9, %c0_10] : memref<64x1xf32, #tpu.memory_space<vmem>>, vector<64x1xf32>
    %cst = arith.constant dense<0.000000e+00> : vector<64xf32>
    %24 = vector.multi_reduction <add>, %21, %cst [1] : vector<64x256xf32> to vector<64xf32>
    %25 = vector.shape_cast %24 : vector<64xf32> to vector<64x1xf32>
    %c0_11 = arith.constant 0 : index
    %c0_12 = arith.constant 0 : index
    %26 = vector.load %arg6[%c0_11, %c0_12] : memref<32x64xf32, #tpu.memory_space<vmem>>, vector<32x64xf32>
    %cst_13 = arith.constant dense<0.000000e+00> : vector<32x1xf32>
    %27 = tpu.matmul %26, %25, %cst_13 {dimension_numbers = #tpu.dot_dimension_numbers<[1], [0], [0], [1], [0, 0, 1, 1], [], []>} : vector<32x64xf32>, vector<64x1xf32>, vector<32x1xf32> -> vector<32x1xf32>
    %cst_14 = arith.constant 0.001953125 : f32
    %28 = vector.broadcast %cst_14 : f32 to vector<32x1xf32>
    %29 = arith.mulf %27, %28 : vector<32x1xf32>
    %c0_15 = arith.constant 0 : index
    %c0_16 = arith.constant 0 : index
    %30 = vector.load %arg7[%c0_15, %c0_16] : memref<64x32xf32, #tpu.memory_space<vmem>>, vector<64x32xf32>
    %cst_17 = arith.constant dense<0.000000e+00> : vector<64x1xf32>
    %31 = tpu.matmul %30, %29, %cst_17 {dimension_numbers = #tpu.dot_dimension_numbers<[1], [0], [0], [1], [0, 0, 1, 1], [], []>} : vector<64x32xf32>, vector<32x1xf32>, vector<64x1xf32> -> vector<64x1xf32>
    %32 = vector.broadcast %31 : vector<64x1xf32> to vector<64x256xf32>
    %33 = arith.subf %21, %32 : vector<64x256xf32>
    %34 = arith.mulf %33, %33 : vector<64x256xf32>
    %cst_18 = arith.constant dense<0.000000e+00> : vector<64xf32>
    %35 = vector.multi_reduction <add>, %34, %cst_18 [1] : vector<64x256xf32> to vector<64xf32>
    %36 = vector.shape_cast %35 : vector<64xf32> to vector<64x1xf32>
    %c0_19 = arith.constant 0 : index
    %c0_20 = arith.constant 0 : index
    %37 = vector.load %arg6[%c0_19, %c0_20] : memref<32x64xf32, #tpu.memory_space<vmem>>, vector<32x64xf32>
    %cst_21 = arith.constant dense<0.000000e+00> : vector<32x1xf32>
    %38 = tpu.matmul %37, %36, %cst_21 {dimension_numbers = #tpu.dot_dimension_numbers<[1], [0], [0], [1], [0, 0, 1, 1], [], []>} : vector<32x64xf32>, vector<64x1xf32>, vector<32x1xf32> -> vector<32x1xf32>
    %cst_22 = arith.constant 0.001953125 : f32
    %39 = vector.broadcast %cst_22 : f32 to vector<32x1xf32>
    %40 = arith.mulf %38, %39 : vector<32x1xf32>
    %c0_23 = arith.constant 0 : index
    %c0_24 = arith.constant 0 : index
    %41 = vector.load %arg7[%c0_23, %c0_24] : memref<64x32xf32, #tpu.memory_space<vmem>>, vector<64x32xf32>
    %cst_25 = arith.constant 9.99999997E-7 : f32
    %42 = vector.broadcast %cst_25 : f32 to vector<32x1xf32>
    %43 = arith.addf %40, %42 : vector<32x1xf32>
    %44 = math.rsqrt %43 : vector<32x1xf32>
    %cst_26 = arith.constant dense<0.000000e+00> : vector<64x1xf32>
    %45 = tpu.matmul %41, %44, %cst_26 {dimension_numbers = #tpu.dot_dimension_numbers<[1], [0], [0], [1], [0, 0, 1, 1], [], []>} : vector<64x32xf32>, vector<32x1xf32>, vector<64x1xf32> -> vector<64x1xf32>
    %46 = vector.broadcast %45 : vector<64x1xf32> to vector<64x256xf32>
    %47 = arith.mulf %33, %46 : vector<64x256xf32>
    %48 = vector.broadcast %22 : vector<64x1xf32> to vector<64x256xf32>
    %49 = arith.mulf %47, %48 : vector<64x256xf32>
    %50 = vector.broadcast %23 : vector<64x1xf32> to vector<64x256xf32>
    %51 = arith.addf %49, %50 : vector<64x256xf32>
    %52 = arith.negf %51 : vector<64x256xf32>
    %53 = math.exp %52 : vector<64x256xf32>
    %cst_27 = arith.constant 1.000000e+00 : f32
    %54 = vector.broadcast %cst_27 : f32 to vector<64x256xf32>
    %55 = arith.addf %54, %53 : vector<64x256xf32>
    %56 = arith.divf %54, %55 : vector<64x256xf32>
    %57 = arith.mulf %51, %56 : vector<64x256xf32>
    %58 = arith.truncf %57 : vector<64x256xf32> to vector<64x256xbf16>
    %59 = tpu.concatenate %58, %58 in 1 : vector<64x256xbf16>, vector<64x256xbf16> -> vector<64x512xbf16>
    %60 = vector.extract_strided_slice %59 {offsets = [0, 239], sizes = [64, 256], strides = [1, 1]} : vector<64x512xbf16> to vector<64x256xbf16>
    %61 = vector.broadcast %2 : vector<1x256xbf16> to vector<64x256xbf16>
    %62 = arith.mulf %60, %61 : vector<64x256xbf16>
    %63 = vector.extract_strided_slice %59 {offsets = [0, 240], sizes = [64, 256], strides = [1, 1]} : vector<64x512xbf16> to vector<64x256xbf16>
    %64 = vector.broadcast %4 : vector<1x256xbf16> to vector<64x256xbf16>
    %65 = arith.mulf %63, %64 : vector<64x256xbf16>
    %66 = vector.extract_strided_slice %59 {offsets = [0, 241], sizes = [64, 256], strides = [1, 1]} : vector<64x512xbf16> to vector<64x256xbf16>
    %67 = vector.broadcast %6 : vector<1x256xbf16> to vector<64x256xbf16>
    %68 = arith.mulf %66, %67 : vector<64x256xbf16>
    %69 = vector.extract_strided_slice %59 {offsets = [0, 255], sizes = [64, 256], strides = [1, 1]} : vector<64x512xbf16> to vector<64x256xbf16>
    %70 = vector.broadcast %8 : vector<1x256xbf16> to vector<64x256xbf16>
    %71 = arith.mulf %69, %70 : vector<64x256xbf16>
    %72 = vector.extract_strided_slice %59 {offsets = [0, 1], sizes = [64, 256], strides = [1, 1]} : vector<64x512xbf16> to vector<64x256xbf16>
    %73 = vector.broadcast %10 : vector<1x256xbf16> to vector<64x256xbf16>
    %74 = arith.mulf %72, %73 : vector<64x256xbf16>
    %75 = vector.extract_strided_slice %59 {offsets = [0, 15], sizes = [64, 256], strides = [1, 1]} : vector<64x512xbf16> to vector<64x256xbf16>
    %76 = vector.broadcast %12 : vector<1x256xbf16> to vector<64x256xbf16>
    %77 = arith.mulf %75, %76 : vector<64x256xbf16>
    %78 = vector.extract_strided_slice %59 {offsets = [0, 16], sizes = [64, 256], strides = [1, 1]} : vector<64x512xbf16> to vector<64x256xbf16>
    %79 = vector.broadcast %14 : vector<1x256xbf16> to vector<64x256xbf16>
    %80 = arith.mulf %78, %79 : vector<64x256xbf16>
    %81 = vector.extract_strided_slice %59 {offsets = [0, 17], sizes = [64, 256], strides = [1, 1]} : vector<64x512xbf16> to vector<64x256xbf16>
    %82 = vector.broadcast %16 : vector<1x256xbf16> to vector<64x256xbf16>
    %83 = arith.mulf %81, %82 : vector<64x256xbf16>
    %84 = tpu.concatenate %62, %65, %68, %71, %58, %74, %77, %80, %83 in 0 : vector<64x256xbf16>, vector<64x256xbf16>, vector<64x256xbf16>, vector<64x256xbf16>, vector<64x256xbf16>, vector<64x256xbf16>, vector<64x256xbf16>, vector<64x256xbf16>, vector<64x256xbf16> -> vector<576x256xbf16>
    %c0_28 = arith.constant 0 : index
    %c0_29 = arith.constant 0 : index
    %85 = vector.load %arg8[%c0_28, %c0_29] : memref<32x576xbf16, #tpu.memory_space<vmem>>, vector<32x576xbf16>
    %cst_30 = arith.constant dense<0.000000e+00> : vector<32x256xf32>
    %86 = tpu.matmul %85, %84, %cst_30 {dimension_numbers = #tpu.dot_dimension_numbers<[1], [0], [0], [1], [0, 0, 1, 1], [], []>} : vector<32x576xbf16>, vector<576x256xbf16>, vector<32x256xf32> -> vector<32x256xf32>
    %c0_31 = arith.constant 0 : index
    %c0_32 = arith.constant 0 : index
    %87 = vector.load %arg9[%c0_31, %c0_32] : memref<32x1xf32, #tpu.memory_space<vmem>>, vector<32x1xf32>
    %88 = vector.broadcast %87 : vector<32x1xf32> to vector<32x256xf32>
    %89 = arith.addf %86, %88 : vector<32x256xf32>
    %c0_33 = arith.constant 0 : index
    %c0_34 = arith.constant 0 : index
    %90 = vector.load %arg10[%c0_33, %c0_34] : memref<32x1xf32, #tpu.memory_space<vmem>>, vector<32x1xf32>
    %c0_35 = arith.constant 0 : index
    %c0_36 = arith.constant 0 : index
    %91 = vector.load %arg11[%c0_35, %c0_36] : memref<32x1xf32, #tpu.memory_space<vmem>>, vector<32x1xf32>
    %cst_37 = arith.constant dense<0.000000e+00> : vector<32xf32>
    %92 = vector.multi_reduction <add>, %89, %cst_37 [1] : vector<32x256xf32> to vector<32xf32>
    %93 = vector.shape_cast %92 : vector<32xf32> to vector<32x1xf32>
    %cst_38 = arith.constant 3.906250e-03 : f32
    %94 = vector.broadcast %cst_38 : f32 to vector<32x1xf32>
    %95 = arith.mulf %93, %94 : vector<32x1xf32>
    %96 = vector.broadcast %95 : vector<32x1xf32> to vector<32x256xf32>
    %97 = arith.subf %89, %96 : vector<32x256xf32>
    %98 = arith.mulf %97, %97 : vector<32x256xf32>
    %cst_39 = arith.constant dense<0.000000e+00> : vector<32xf32>
    %99 = vector.multi_reduction <add>, %98, %cst_39 [1] : vector<32x256xf32> to vector<32xf32>
    %100 = vector.shape_cast %99 : vector<32xf32> to vector<32x1xf32>
    %cst_40 = arith.constant 3.906250e-03 : f32
    %101 = vector.broadcast %cst_40 : f32 to vector<32x1xf32>
    %102 = arith.mulf %100, %101 : vector<32x1xf32>
    %cst_41 = arith.constant 9.99999997E-7 : f32
    %103 = vector.broadcast %cst_41 : f32 to vector<32x1xf32>
    %104 = arith.addf %102, %103 : vector<32x1xf32>
    %105 = math.rsqrt %104 : vector<32x1xf32>
    %106 = vector.broadcast %105 : vector<32x1xf32> to vector<32x256xf32>
    %107 = arith.mulf %97, %106 : vector<32x256xf32>
    %108 = vector.broadcast %90 : vector<32x1xf32> to vector<32x256xf32>
    %109 = arith.mulf %107, %108 : vector<32x256xf32>
    %110 = vector.broadcast %91 : vector<32x1xf32> to vector<32x256xf32>
    %111 = arith.addf %109, %110 : vector<32x256xf32>
    %112 = arith.negf %111 : vector<32x256xf32>
    %113 = math.exp %112 : vector<32x256xf32>
    %cst_42 = arith.constant 1.000000e+00 : f32
    %114 = vector.broadcast %cst_42 : f32 to vector<32x256xf32>
    %115 = arith.addf %114, %113 : vector<32x256xf32>
    %116 = arith.divf %114, %115 : vector<32x256xf32>
    %117 = arith.mulf %111, %116 : vector<32x256xf32>
    %118 = arith.truncf %117 : vector<32x256xf32> to vector<32x256xbf16>
    %119 = tpu.concatenate %118, %118 in 1 : vector<32x256xbf16>, vector<32x256xbf16> -> vector<32x512xbf16>
    %120 = vector.extract_strided_slice %119 {offsets = [0, 239], sizes = [32, 256], strides = [1, 1]} : vector<32x512xbf16> to vector<32x256xbf16>
    %121 = vector.broadcast %2 : vector<1x256xbf16> to vector<32x256xbf16>
    %122 = arith.mulf %120, %121 : vector<32x256xbf16>
    %123 = vector.extract_strided_slice %119 {offsets = [0, 240], sizes = [32, 256], strides = [1, 1]} : vector<32x512xbf16> to vector<32x256xbf16>
    %124 = vector.broadcast %4 : vector<1x256xbf16> to vector<32x256xbf16>
    %125 = arith.mulf %123, %124 : vector<32x256xbf16>
    %126 = vector.extract_strided_slice %119 {offsets = [0, 241], sizes = [32, 256], strides = [1, 1]} : vector<32x512xbf16> to vector<32x256xbf16>
    %127 = vector.broadcast %6 : vector<1x256xbf16> to vector<32x256xbf16>
    %128 = arith.mulf %126, %127 : vector<32x256xbf16>
    %129 = vector.extract_strided_slice %119 {offsets = [0, 255], sizes = [32, 256], strides = [1, 1]} : vector<32x512xbf16> to vector<32x256xbf16>
    %130 = vector.broadcast %8 : vector<1x256xbf16> to vector<32x256xbf16>
    %131 = arith.mulf %129, %130 : vector<32x256xbf16>
    %132 = vector.extract_strided_slice %119 {offsets = [0, 1], sizes = [32, 256], strides = [1, 1]} : vector<32x512xbf16> to vector<32x256xbf16>
    %133 = vector.broadcast %10 : vector<1x256xbf16> to vector<32x256xbf16>
    %134 = arith.mulf %132, %133 : vector<32x256xbf16>
    %135 = vector.extract_strided_slice %119 {offsets = [0, 15], sizes = [32, 256], strides = [1, 1]} : vector<32x512xbf16> to vector<32x256xbf16>
    %136 = vector.broadcast %12 : vector<1x256xbf16> to vector<32x256xbf16>
    %137 = arith.mulf %135, %136 : vector<32x256xbf16>
    %138 = vector.extract_strided_slice %119 {offsets = [0, 16], sizes = [32, 256], strides = [1, 1]} : vector<32x512xbf16> to vector<32x256xbf16>
    %139 = vector.broadcast %14 : vector<1x256xbf16> to vector<32x256xbf16>
    %140 = arith.mulf %138, %139 : vector<32x256xbf16>
    %141 = vector.extract_strided_slice %119 {offsets = [0, 17], sizes = [32, 256], strides = [1, 1]} : vector<32x512xbf16> to vector<32x256xbf16>
    %142 = vector.broadcast %16 : vector<1x256xbf16> to vector<32x256xbf16>
    %143 = arith.mulf %141, %142 : vector<32x256xbf16>
    %144 = tpu.concatenate %122, %125, %128, %131, %118, %134, %137, %140, %143 in 0 : vector<32x256xbf16>, vector<32x256xbf16>, vector<32x256xbf16>, vector<32x256xbf16>, vector<32x256xbf16>, vector<32x256xbf16>, vector<32x256xbf16>, vector<32x256xbf16>, vector<32x256xbf16> -> vector<288x256xbf16>
    %c0_43 = arith.constant 0 : index
    %c0_44 = arith.constant 0 : index
    %145 = vector.load %arg14[%c0_43, %c0_44] : memref<32x288xbf16, #tpu.memory_space<vmem>>, vector<32x288xbf16>
    %cst_45 = arith.constant dense<0.000000e+00> : vector<32x256xf32>
    %146 = tpu.matmul %145, %144, %cst_45 {dimension_numbers = #tpu.dot_dimension_numbers<[1], [0], [0], [1], [0, 0, 1, 1], [], []>} : vector<32x288xbf16>, vector<288x256xbf16>, vector<32x256xf32> -> vector<32x256xf32>
    %c0_46 = arith.constant 0 : index
    %c0_47 = arith.constant 0 : index
    %147 = vector.load %arg15[%c0_46, %c0_47] : memref<32x1xf32, #tpu.memory_space<vmem>>, vector<32x1xf32>
    %148 = vector.broadcast %147 : vector<32x1xf32> to vector<32x256xf32>
    %149 = arith.addf %146, %148 : vector<32x256xf32>
    %c0_48 = arith.constant 0 : index
    %c0_49 = arith.constant 0 : index
    %150 = vector.load %arg16[%c0_48, %c0_49] : memref<32x64xbf16, #tpu.memory_space<vmem>>, vector<32x64xbf16>
    %151 = arith.truncf %21 : vector<64x256xf32> to vector<64x256xbf16>
    %cst_50 = arith.constant dense<0.000000e+00> : vector<32x256xf32>
    %152 = tpu.matmul %150, %151, %cst_50 {dimension_numbers = #tpu.dot_dimension_numbers<[1], [0], [0], [1], [0, 0, 1, 1], [], []>} : vector<32x64xbf16>, vector<64x256xbf16>, vector<32x256xf32> -> vector<32x256xf32>
    %c0_51 = arith.constant 0 : index
    %c0_52 = arith.constant 0 : index
    %153 = vector.load %arg17[%c0_51, %c0_52] : memref<32x1xf32, #tpu.memory_space<vmem>>, vector<32x1xf32>
    %154 = vector.broadcast %153 : vector<32x1xf32> to vector<32x256xf32>
    %155 = arith.addf %152, %154 : vector<32x256xf32>
    %156 = arith.addf %149, %155 : vector<32x256xf32>
    %157 = arith.truncf %156 : vector<32x256xf32> to vector<32x256xbf16>
    %158 = tpu.concatenate %157, %157 in 1 : vector<32x256xbf16>, vector<32x256xbf16> -> vector<32x512xbf16>
    %159 = vector.extract_strided_slice %158 {offsets = [0, 239], sizes = [32, 256], strides = [1, 1]} : vector<32x512xbf16> to vector<32x256xbf16>
    %160 = vector.broadcast %2 : vector<1x256xbf16> to vector<32x256xbf16>
    %161 = arith.mulf %159, %160 : vector<32x256xbf16>
    %162 = vector.extract_strided_slice %158 {offsets = [0, 240], sizes = [32, 256], strides = [1, 1]} : vector<32x512xbf16> to vector<32x256xbf16>
    %163 = vector.broadcast %4 : vector<1x256xbf16> to vector<32x256xbf16>
    %164 = arith.mulf %162, %163 : vector<32x256xbf16>
    %165 = vector.extract_strided_slice %158 {offsets = [0, 241], sizes = [32, 256], strides = [1, 1]} : vector<32x512xbf16> to vector<32x256xbf16>
    %166 = vector.broadcast %6 : vector<1x256xbf16> to vector<32x256xbf16>
    %167 = arith.mulf %165, %166 : vector<32x256xbf16>
    %168 = vector.extract_strided_slice %158 {offsets = [0, 255], sizes = [32, 256], strides = [1, 1]} : vector<32x512xbf16> to vector<32x256xbf16>
    %169 = vector.broadcast %8 : vector<1x256xbf16> to vector<32x256xbf16>
    %170 = arith.mulf %168, %169 : vector<32x256xbf16>
    %171 = vector.extract_strided_slice %158 {offsets = [0, 1], sizes = [32, 256], strides = [1, 1]} : vector<32x512xbf16> to vector<32x256xbf16>
    %172 = vector.broadcast %10 : vector<1x256xbf16> to vector<32x256xbf16>
    %173 = arith.mulf %171, %172 : vector<32x256xbf16>
    %174 = vector.extract_strided_slice %158 {offsets = [0, 15], sizes = [32, 256], strides = [1, 1]} : vector<32x512xbf16> to vector<32x256xbf16>
    %175 = vector.broadcast %12 : vector<1x256xbf16> to vector<32x256xbf16>
    %176 = arith.mulf %174, %175 : vector<32x256xbf16>
    %177 = vector.extract_strided_slice %158 {offsets = [0, 16], sizes = [32, 256], strides = [1, 1]} : vector<32x512xbf16> to vector<32x256xbf16>
    %178 = vector.broadcast %14 : vector<1x256xbf16> to vector<32x256xbf16>
    %179 = arith.mulf %177, %178 : vector<32x256xbf16>
    %180 = vector.extract_strided_slice %158 {offsets = [0, 17], sizes = [32, 256], strides = [1, 1]} : vector<32x512xbf16> to vector<32x256xbf16>
    %181 = vector.broadcast %16 : vector<1x256xbf16> to vector<32x256xbf16>
    %182 = arith.mulf %180, %181 : vector<32x256xbf16>
    %183 = tpu.concatenate %161, %164, %167, %170, %157, %173, %176, %179, %182 in 0 : vector<32x256xbf16>, vector<32x256xbf16>, vector<32x256xbf16>, vector<32x256xbf16>, vector<32x256xbf16>, vector<32x256xbf16>, vector<32x256xbf16>, vector<32x256xbf16>, vector<32x256xbf16> -> vector<288x256xbf16>
    %c0_53 = arith.constant 0 : index
    %c0_54 = arith.constant 0 : index
    %184 = vector.load %arg18[%c0_53, %c0_54] : memref<64x288xbf16, #tpu.memory_space<vmem>>, vector<64x288xbf16>
    %cst_55 = arith.constant dense<0.000000e+00> : vector<64x256xf32>
    %185 = tpu.matmul %184, %183, %cst_55 {dimension_numbers = #tpu.dot_dimension_numbers<[1], [0], [0], [1], [0, 0, 1, 1], [], []>} : vector<64x288xbf16>, vector<288x256xbf16>, vector<64x256xf32> -> vector<64x256xf32>
    %c0_56 = arith.constant 0 : index
    %c0_57 = arith.constant 0 : index
    %186 = vector.load %arg19[%c0_56, %c0_57] : memref<64x1xf32, #tpu.memory_space<vmem>>, vector<64x1xf32>
    %187 = vector.broadcast %186 : vector<64x1xf32> to vector<64x256xf32>
    %188 = arith.addf %185, %187 : vector<64x256xf32>
    %cst_58 = arith.constant 0.000000e+00 : f32
    %189 = vector.broadcast %cst_58 : f32 to vector<64x256xf32>
    %190 = arith.cmpf oge, %188, %189 : vector<64x256xf32>
    %cst_59 = arith.constant 2.000000e-01 : f32
    %191 = vector.broadcast %cst_59 : f32 to vector<64x256xf32>
    %192 = arith.mulf %191, %188 : vector<64x256xf32>
    %193 = arith.select %190, %188, %192 : vector<64x256xi1>, vector<64x256xf32>
    %194 = vector.extract_strided_slice %193 {offsets = [0, 0], sizes = [32, 256], strides = [1, 1]} : vector<64x256xf32> to vector<32x256xf32>
    %195 = arith.truncf %194 : vector<32x256xf32> to vector<32x256xbf16>
    %196 = tpu.concatenate %195, %195 in 1 : vector<32x256xbf16>, vector<32x256xbf16> -> vector<32x512xbf16>
    %197 = vector.extract_strided_slice %196 {offsets = [0, 239], sizes = [32, 256], strides = [1, 1]} : vector<32x512xbf16> to vector<32x256xbf16>
    %198 = vector.broadcast %2 : vector<1x256xbf16> to vector<32x256xbf16>
    %199 = arith.mulf %197, %198 : vector<32x256xbf16>
    %200 = vector.extract_strided_slice %196 {offsets = [0, 240], sizes = [32, 256], strides = [1, 1]} : vector<32x512xbf16> to vector<32x256xbf16>
    %201 = vector.broadcast %4 : vector<1x256xbf16> to vector<32x256xbf16>
    %202 = arith.mulf %200, %201 : vector<32x256xbf16>
    %203 = vector.extract_strided_slice %196 {offsets = [0, 241], sizes = [32, 256], strides = [1, 1]} : vector<32x512xbf16> to vector<32x256xbf16>
    %204 = vector.broadcast %6 : vector<1x256xbf16> to vector<32x256xbf16>
    %205 = arith.mulf %203, %204 : vector<32x256xbf16>
    %206 = vector.extract_strided_slice %196 {offsets = [0, 255], sizes = [32, 256], strides = [1, 1]} : vector<32x512xbf16> to vector<32x256xbf16>
    %207 = vector.broadcast %8 : vector<1x256xbf16> to vector<32x256xbf16>
    %208 = arith.mulf %206, %207 : vector<32x256xbf16>
    %209 = vector.extract_strided_slice %196 {offsets = [0, 1], sizes = [32, 256], strides = [1, 1]} : vector<32x512xbf16> to vector<32x256xbf16>
    %210 = vector.broadcast %10 : vector<1x256xbf16> to vector<32x256xbf16>
    %211 = arith.mulf %209, %210 : vector<32x256xbf16>
    %212 = vector.extract_strided_slice %196 {offsets = [0, 15], sizes = [32, 256], strides = [1, 1]} : vector<32x512xbf16> to vector<32x256xbf16>
    %213 = vector.broadcast %12 : vector<1x256xbf16> to vector<32x256xbf16>
    %214 = arith.mulf %212, %213 : vector<32x256xbf16>
    %215 = vector.extract_strided_slice %196 {offsets = [0, 16], sizes = [32, 256], strides = [1, 1]} : vector<32x512xbf16> to vector<32x256xbf16>
    %216 = vector.broadcast %14 : vector<1x256xbf16> to vector<32x256xbf16>
    %217 = arith.mulf %215, %216 : vector<32x256xbf16>
    %218 = vector.extract_strided_slice %196 {offsets = [0, 17], sizes = [32, 256], strides = [1, 1]} : vector<32x512xbf16> to vector<32x256xbf16>
    %219 = vector.broadcast %16 : vector<1x256xbf16> to vector<32x256xbf16>
    %220 = arith.mulf %218, %219 : vector<32x256xbf16>
    %221 = tpu.concatenate %199, %202, %205, %208, %195, %211, %214, %217, %220 in 0 : vector<32x256xbf16>, vector<32x256xbf16>, vector<32x256xbf16>, vector<32x256xbf16>, vector<32x256xbf16>, vector<32x256xbf16>, vector<32x256xbf16>, vector<32x256xbf16>, vector<32x256xbf16> -> vector<288x256xbf16>
    %c0_60 = arith.constant 0 : index
    %c0_61 = arith.constant 0 : index
    %222 = vector.load %arg20[%c0_60, %c0_61] : memref<32x288xbf16, #tpu.memory_space<vmem>>, vector<32x288xbf16>
    %cst_62 = arith.constant dense<0.000000e+00> : vector<32x256xf32>
    %223 = tpu.matmul %222, %221, %cst_62 {dimension_numbers = #tpu.dot_dimension_numbers<[1], [0], [0], [1], [0, 0, 1, 1], [], []>} : vector<32x288xbf16>, vector<288x256xbf16>, vector<32x256xf32> -> vector<32x256xf32>
    %c0_63 = arith.constant 0 : index
    %c0_64 = arith.constant 0 : index
    %224 = vector.load %arg21[%c0_63, %c0_64] : memref<32x1xf32, #tpu.memory_space<vmem>>, vector<32x1xf32>
    %225 = vector.broadcast %224 : vector<32x1xf32> to vector<32x256xf32>
    %226 = arith.addf %223, %225 : vector<32x256xf32>
    %227 = vector.extract_strided_slice %193 {offsets = [32, 0], sizes = [32, 256], strides = [1, 1]} : vector<64x256xf32> to vector<32x256xf32>
    %228 = arith.truncf %227 : vector<32x256xf32> to vector<32x256xbf16>
    %229 = tpu.concatenate %228, %228 in 1 : vector<32x256xbf16>, vector<32x256xbf16> -> vector<32x512xbf16>
    %230 = vector.extract_strided_slice %229 {offsets = [0, 239], sizes = [32, 256], strides = [1, 1]} : vector<32x512xbf16> to vector<32x256xbf16>
    %231 = vector.broadcast %2 : vector<1x256xbf16> to vector<32x256xbf16>
    %232 = arith.mulf %230, %231 : vector<32x256xbf16>
    %233 = vector.extract_strided_slice %229 {offsets = [0, 240], sizes = [32, 256], strides = [1, 1]} : vector<32x512xbf16> to vector<32x256xbf16>
    %234 = vector.broadcast %4 : vector<1x256xbf16> to vector<32x256xbf16>
    %235 = arith.mulf %233, %234 : vector<32x256xbf16>
    %236 = vector.extract_strided_slice %229 {offsets = [0, 241], sizes = [32, 256], strides = [1, 1]} : vector<32x512xbf16> to vector<32x256xbf16>
    %237 = vector.broadcast %6 : vector<1x256xbf16> to vector<32x256xbf16>
    %238 = arith.mulf %236, %237 : vector<32x256xbf16>
    %239 = vector.extract_strided_slice %229 {offsets = [0, 255], sizes = [32, 256], strides = [1, 1]} : vector<32x512xbf16> to vector<32x256xbf16>
    %240 = vector.broadcast %8 : vector<1x256xbf16> to vector<32x256xbf16>
    %241 = arith.mulf %239, %240 : vector<32x256xbf16>
    %242 = vector.extract_strided_slice %229 {offsets = [0, 1], sizes = [32, 256], strides = [1, 1]} : vector<32x512xbf16> to vector<32x256xbf16>
    %243 = vector.broadcast %10 : vector<1x256xbf16> to vector<32x256xbf16>
    %244 = arith.mulf %242, %243 : vector<32x256xbf16>
    %245 = vector.extract_strided_slice %229 {offsets = [0, 15], sizes = [32, 256], strides = [1, 1]} : vector<32x512xbf16> to vector<32x256xbf16>
    %246 = vector.broadcast %12 : vector<1x256xbf16> to vector<32x256xbf16>
    %247 = arith.mulf %245, %246 : vector<32x256xbf16>
    %248 = vector.extract_strided_slice %229 {offsets = [0, 16], sizes = [32, 256], strides = [1, 1]} : vector<32x512xbf16> to vector<32x256xbf16>
    %249 = vector.broadcast %14 : vector<1x256xbf16> to vector<32x256xbf16>
    %250 = arith.mulf %248, %249 : vector<32x256xbf16>
    %251 = vector.extract_strided_slice %229 {offsets = [0, 17], sizes = [32, 256], strides = [1, 1]} : vector<32x512xbf16> to vector<32x256xbf16>
    %252 = vector.broadcast %16 : vector<1x256xbf16> to vector<32x256xbf16>
    %253 = arith.mulf %251, %252 : vector<32x256xbf16>
    %254 = tpu.concatenate %232, %235, %238, %241, %228, %244, %247, %250, %253 in 0 : vector<32x256xbf16>, vector<32x256xbf16>, vector<32x256xbf16>, vector<32x256xbf16>, vector<32x256xbf16>, vector<32x256xbf16>, vector<32x256xbf16>, vector<32x256xbf16>, vector<32x256xbf16> -> vector<288x256xbf16>
    %c0_65 = arith.constant 0 : index
    %c0_66 = arith.constant 0 : index
    %255 = vector.load %arg22[%c0_65, %c0_66] : memref<32x288xbf16, #tpu.memory_space<vmem>>, vector<32x288xbf16>
    %cst_67 = arith.constant dense<0.000000e+00> : vector<32x256xf32>
    %256 = tpu.matmul %255, %254, %cst_67 {dimension_numbers = #tpu.dot_dimension_numbers<[1], [0], [0], [1], [0, 0, 1, 1], [], []>} : vector<32x288xbf16>, vector<288x256xbf16>, vector<32x256xf32> -> vector<32x256xf32>
    %c0_68 = arith.constant 0 : index
    %c0_69 = arith.constant 0 : index
    %257 = vector.load %arg23[%c0_68, %c0_69] : memref<32x1xf32, #tpu.memory_space<vmem>>, vector<32x1xf32>
    %258 = vector.broadcast %257 : vector<32x1xf32> to vector<32x256xf32>
    %259 = arith.addf %256, %258 : vector<32x256xf32>
    %c0_70 = arith.constant 0 : index
    %260 = memref.load %arg24[%c0_70] : memref<1xf32, #tpu.memory_space<smem>>
    %261 = arith.mulf %20, %226 : vector<32x256xf32>
    %262 = arith.addf %261, %259 : vector<32x256xf32>
    %263 = vector.broadcast %260 : f32 to vector<32x256xf32>
    %264 = arith.mulf %263, %262 : vector<32x256xf32>
    %265 = arith.addf %20, %264 : vector<32x256xf32>
    %c0_71 = arith.constant 0 : index
    %c0_72 = arith.constant 0 : index
    %c0_73 = arith.constant 0 : index
    %266 = vector.load %arg25[%c0_71, %c0_72, %c0_73] : memref<1x32x256xf32, #tpu.memory_space<vmem>>, vector<1x32x256xf32>
    %267 = vector.shape_cast %266 : vector<1x32x256xf32> to vector<32x256xf32>
    %268 = vector.shape_cast %265 : vector<32x256xf32> to vector<1x32x256xf32>
    tpu.vector_store %arg25[%c0_71, %c0_72, %c0_73], %268 {strides = array<i32>} : memref<1x32x256xf32, #tpu.memory_space<vmem>>, vector<1x32x256xf32>,
    return
  }
  func.func @transform_0(%arg0: i32) -> (i32, i32, i32) {
    %c0_i32 = arith.constant 0 : i32
    %c0_i32_0 = arith.constant 0 : i32
    %c0_i32_1 = arith.constant 0 : i32
    return %arg0, %c0_i32, %c0_i32_0 : i32, i32, i32
  }
  func.func @transform_1(%arg0: i32) -> (i32, i32, i32) {
    %c0_i32 = arith.constant 0 : i32
    %c0_i32_0 = arith.constant 0 : i32
    %c0_i32_1 = arith.constant 0 : i32
    return %arg0, %c0_i32, %c0_i32_0 : i32, i32, i32
  }
  func.func @transform_2(%arg0: i32) -> (i32, i32) {
    %c0_i32 = arith.constant 0 : i32
    %c0_i32_0 = arith.constant 0 : i32
    %c0_i32_1 = arith.constant 0 : i32
    return %c0_i32, %c0_i32_0 : i32, i32
  }
  func.func @transform_3(%arg0: i32) -> (i32, i32) {
    %c0_i32 = arith.constant 0 : i32
    %c0_i32_0 = arith.constant 0 : i32
    %c0_i32_1 = arith.constant 0 : i32
    return %c0_i32, %c0_i32_0 : i32, i32
  }
  func.func @transform_4(%arg0: i32) -> (i32, i32) {
    %c0_i32 = arith.constant 0 : i32
    %c0_i32_0 = arith.constant 0 : i32
    %c0_i32_1 = arith.constant 0 : i32
    return %c0_i32, %c0_i32_0 : i32, i32
  }
  func.func @transform_5(%arg0: i32) -> (i32, i32) {
    %c0_i32 = arith.constant 0 : i32
    %c0_i32_0 = arith.constant 0 : i32
    %c0_i32_1 = arith.constant 0 : i32
    return %c0_i32, %c0_i32_0 : i32, i32
  }
  func.func @transform_6(%arg0: i32) -> (i32, i32) {
    %c0_i32 = arith.constant 0 : i32
    %c0_i32_0 = arith.constant 0 : i32
    %c0_i32_1 = arith.constant 0 : i32
    return %c0_i32, %c0_i32_0 : i32, i32
  }
  func.func @transform_7(%arg0: i32) -> (i32, i32) {
    %c0_i32 = arith.constant 0 : i32
    %c0_i32_0 = arith.constant 0 : i32
    %c0_i32_1 = arith.constant 0 : i32
    return %c0_i32, %c0_i32_0 : i32, i32
  }
  func.func @transform_8(%arg0: i32) -> (i32, i32) {
    %c0_i32 = arith.constant 0 : i32
    %c0_i32_0 = arith.constant 0 : i32
    %c0_i32_1 = arith.constant 0 : i32
    return %c0_i32, %c0_i32_0 : i32, i32
  }
  func.func @transform_9(%arg0: i32) -> (i32, i32) {
    %c0_i32 = arith.constant 0 : i32
    %c0_i32_0 = arith.constant 0 : i32
    %c0_i32_1 = arith.constant 0 : i32
    return %c0_i32, %c0_i32_0 : i32, i32
  }
  func.func @transform_10(%arg0: i32) -> (i32, i32) {
    %c0_i32 = arith.constant 0 : i32
    %c0_i32_0 = arith.constant 0 : i32
    %c0_i32_1 = arith.constant 0 : i32
    return %c0_i32, %c0_i32_0 : i32, i32
  }
  func.func @transform_11(%arg0: i32) -> (i32, i32) {
    %c0_i32 = arith.constant 0 : i32
    %c0_i32_0 = arith.constant 0 : i32
    %c0_i32_1 = arith.constant 0 : i32
    return %c0_i32, %c0_i32_0 : i32, i32
  }
  func.func @transform_12(%arg0: i32) -> (i32, i32) {
    %c0_i32 = arith.constant 0 : i32
    %c0_i32_0 = arith.constant 0 : i32
    %c0_i32_1 = arith.constant 0 : i32
    return %c0_i32, %c0_i32_0 : i32, i32
  }
  func.func @transform_13(%arg0: i32) -> (i32, i32) {
    %c0_i32 = arith.constant 0 : i32
    %c0_i32_0 = arith.constant 0 : i32
    %c0_i32_1 = arith.constant 0 : i32
    return %c0_i32, %c0_i32_0 : i32, i32
  }
  func.func @transform_14(%arg0: i32) -> (i32, i32) {
    %c0_i32 = arith.constant 0 : i32
    %c0_i32_0 = arith.constant 0 : i32
    %c0_i32_1 = arith.constant 0 : i32
    return %c0_i32, %c0_i32_0 : i32, i32
  }
  func.func @transform_15(%arg0: i32) -> (i32, i32) {
    %c0_i32 = arith.constant 0 : i32
    %c0_i32_0 = arith.constant 0 : i32
    %c0_i32_1 = arith.constant 0 : i32
    return %c0_i32, %c0_i32_0 : i32, i32
  }
  func.func @transform_16(%arg0: i32) -> (i32, i32) {
    %c0_i32 = arith.constant 0 : i32
    %c0_i32_0 = arith.constant 0 : i32
    %c0_i32_1 = arith.constant 0 : i32
    return %c0_i32, %c0_i32_0 : i32, i32
  }
  func.func @transform_17(%arg0: i32) -> (i32, i32) {
    %c0_i32 = arith.constant 0 : i32
    %c0_i32_0 = arith.constant 0 : i32
    %c0_i32_1 = arith.constant 0 : i32
    return %c0_i32, %c0_i32_0 : i32, i32
  }
  func.func @transform_18(%arg0: i32) -> (i32, i32) {
    %c0_i32 = arith.constant 0 : i32
    %c0_i32_0 = arith.constant 0 : i32
    %c0_i32_1 = arith.constant 0 : i32
    return %c0_i32, %c0_i32_0 : i32, i32
  }
  func.func @transform_19(%arg0: i32) -> (i32, i32) {
    %c0_i32 = arith.constant 0 : i32
    %c0_i32_0 = arith.constant 0 : i32
    %c0_i32_1 = arith.constant 0 : i32
    return %c0_i32, %c0_i32_0 : i32, i32
  }
  func.func @transform_20(%arg0: i32) -> (i32, i32) {
    %c0_i32 = arith.constant 0 : i32
    %c0_i32_0 = arith.constant 0 : i32
    %c0_i32_1 = arith.constant 0 : i32
    return %c0_i32, %c0_i32_0 : i32, i32
  }
  func.func @transform_21(%arg0: i32) -> (i32, i32) {
    %c0_i32 = arith.constant 0 : i32
    %c0_i32_0 = arith.constant 0 : i32
    %c0_i32_1 = arith.constant 0 : i32
    return %c0_i32, %c0_i32_0 : i32, i32
  }
  func.func @transform_22(%arg0: i32) -> (i32, i32) {
    %c0_i32 = arith.constant 0 : i32
    %c0_i32_0 = arith.constant 0 : i32
    %c0_i32_1 = arith.constant 0 : i32
    return %c0_i32, %c0_i32_0 : i32, i32
  }
  func.func @transform_23(%arg0: i32) -> i32 {
    %c0_i32 = arith.constant 0 : i32
    %c0_i32_0 = arith.constant 0 : i32
    return %c0_i32 : i32
  }
  func.func @transform_24(%arg0: i32) -> (i32, i32, i32) {
    %c0_i32 = arith.constant 0 : i32
    %c0_i32_0 = arith.constant 0 : i32
    %c0_i32_1 = arith.constant 0 : i32
    return %arg0, %c0_i32, %c0_i32_0 : i32, i32, i32
  }
}

</mosaic_0001>

<llo_original>
// kernel: _lambda_.1
$region0: #{_lambda_.1}
  #allocation0 [shape = 'u32[]', space=smem, size = 0x4, offset = 0x4, fixed_abs, tag = 'smem constant byte address 0x4 - core index']
  #allocation1 [shape = 'u32[144,128]{1,0:T(1,128)}', space=vmem, size = 0x12000, scoped, tag = 'internal scratch']
  #allocation2 [shape = 'f32[1]{0:T(128)S(6)}', space=smem, size = 0x200, scoped, tag = 'scoped memory for _lambda_.1']
  %s0 = inlined_call_operand.vmem [shape: f32[2,32,256], index: 0, kind: input, shape index: {}]
  %s1 = inlined_call_operand.vmem [shape: f32[2,32,256], index: 1, kind: input, shape index: {}]
  %s2 = inlined_call_operand.vmem [shape: f32[9,256], index: 2, kind: input, shape index: {}]
  %s3 = inlined_call_operand.vmem [shape: f32[64,1], index: 3, kind: input, shape index: {}]
  %s4 = inlined_call_operand.vmem [shape: f32[64,1], index: 4, kind: input, shape index: {}]
  %s5 = inlined_call_operand.vmem [shape: f32[32,64], index: 5, kind: input, shape index: {}]
  %s6 = inlined_call_operand.vmem [shape: f32[64,32], index: 6, kind: input, shape index: {}]
  %s7 = inlined_call_operand.vmem [shape: bf16[32,576], index: 7, kind: input, shape index: {}]
  %s8 = inlined_call_operand.vmem [shape: f32[32,1], index: 8, kind: input, shape index: {}]
  %s9 = inlined_call_operand.vmem [shape: f32[32,1], index: 9, kind: input, shape index: {}]
  %s10 = inlined_call_operand.vmem [shape: f32[32,1], index: 10, kind: input, shape index: {}]
  %s11 = inlined_call_operand.vmem [shape: f32[32,32], index: 11, kind: input, shape index: {}, may-alias: {11,12}]
  %s12 = inlined_call_operand.vmem [shape: f32[32,32], index: 12, kind: input, shape index: {}, may-alias: {11,12}]
  %s13 = inlined_call_operand.vmem [shape: bf16[32,288], index: 13, kind: input, shape index: {}]
  %s14 = inlined_call_operand.vmem [shape: f32[32,1], index: 14, kind: input, shape index: {}]
  %s15 = inlined_call_operand.vmem [shape: bf16[32,64], index: 15, kind: input, shape index: {}]
  %s16 = inlined_call_operand.vmem [shape: f32[32,1], index: 16, kind: input, shape index: {}]
  %s17 = inlined_call_operand.vmem [shape: bf16[64,288], index: 17, kind: input, shape index: {}]
  %s18 = inlined_call_operand.vmem [shape: f32[64,1], index: 18, kind: input, shape index: {}]
  %s19 = inlined_call_operand.vmem [shape: bf16[32,288], index: 19, kind: input, shape index: {}]
  %s20 = inlined_call_operand.vmem [shape: f32[32,1], index: 20, kind: input, shape index: {}]
  %s21 = inlined_call_operand.vmem [shape: bf16[32,288], index: 21, kind: input, shape index: {}]
  %s22 = inlined_call_operand.vmem [shape: f32[32,1], index: 22, kind: input, shape index: {}]
  %s23 = inlined_call_operand.<no memory space> [shape: f32[1], index: 23, kind: input, shape index: {}]
  %s24 = inlined_call_operand.vmem [shape: f32[2,32,256], index: 24, kind: output, shape index: {}]
  %s25 = sld [smem:[#allocation0]]
  $region129: #{_lambda_.1} parent=0
    _
  %s27 = ssub.s32 1, %s25
  %s28 = scalar_select 0, %s27, %s25
  %29 = sst [smem:[#allocation2]] %s23
  loop: start=0, step=1, limit=4
  $region2: #{_lambda_.1} parent=0 // loop_pre_header
    _
  $region3: #{_lambda_.1} parent=0 // loop_header
    %s31 = sphi 0, %s35
    %p32 = scmp.ge.s32.totalorder %s31, 4
    %s41 = sphi 0, %s43
    %s44 = sphi 0, %s41
    %s45 = sphi 0, %s44
    %s61 = sphi 0, %s45
    %s67 = sphi 0, %s69
    %s70 = sphi 0, %s67
    %s71 = sphi 0, %s70
    %s87 = sphi 0, %s71
    %s91 = sphi 0, %s91
    %s93 = sphi 0, %s91
    %s94 = sphi 0, %s93
    %s108 = sphi 0, %s94
    %s112 = sphi 0, %s112
    %s114 = sphi 0, %s112
    %s115 = sphi 0, %s114
    %s129 = sphi 0, %s115
    %s133 = sphi 0, %s133
    %s135 = sphi 0, %s133
    %s136 = sphi 0, %s135
    %s150 = sphi 0, %s136
    %s154 = sphi 0, %s154
    %s156 = sphi 0, %s154
    %s157 = sphi 0, %s156
    %s171 = sphi 0, %s157
    %s175 = sphi 0, %s175
    %s177 = sphi 0, %s175
    %s178 = sphi 0, %s177
    %s192 = sphi 0, %s178
    %s196 = sphi 0, %s196
    %s198 = sphi 0, %s196
    %s199 = sphi 0, %s198
    %s213 = sphi 0, %s199
    %s217 = sphi 0, %s217
    %s219 = sphi 0, %s217
    %s220 = sphi 0, %s219
    %s234 = sphi 0, %s220
    %s238 = sphi 0, %s238
    %s240 = sphi 0, %s238
    %s241 = sphi 0, %s240
    %s255 = sphi 0, %s241
    %s259 = sphi 0, %s259
    %s261 = sphi 0, %s259
    %s262 = sphi 0, %s261
    %s276 = sphi 0, %s262
    %s280 = sphi 0, %s280
    %s282 = sphi 0, %s280
    %s283 = sphi 0, %s282
    %s297 = sphi 0, %s283
    %s301 = sphi 0, %s301
    %s303 = sphi 0, %s301
    %s304 = sphi 0, %s303
    %s318 = sphi 0, %s304
    %s322 = sphi 0, %s322
    %s324 = sphi 0, %s322
    %s325 = sphi 0, %s324
    %s339 = sphi 0, %s325
    %s343 = sphi 0, %s343
    %s345 = sphi 0, %s343
    %s346 = sphi 0, %s345
    %s360 = sphi 0, %s346
    %s364 = sphi 0, %s364
    %s366 = sphi 0, %s364
    %s367 = sphi 0, %s366
    %s381 = sphi 0, %s367
    %s385 = sphi 0, %s385
    %s387 = sphi 0, %s385
    %s388 = sphi 0, %s387
    %s402 = sphi 0, %s388
    %s406 = sphi 0, %s406
    %s408 = sphi 0, %s406
    %s409 = sphi 0, %s408
    %s423 = sphi 0, %s409
    %s427 = sphi 0, %s427
    %s429 = sphi 0, %s427
    %s430 = sphi 0, %s429
    %s444 = sphi 0, %s430
    %s448 = sphi 0, %s448
    %s450 = sphi 0, %s448
    %s451 = sphi 0, %s450
    %s465 = sphi 0, %s451
    %s469 = sphi 0, %s469
    %s471 = sphi 0, %s469
    %s472 = sphi 0, %s471
    %s486 = sphi 0, %s472
    %s490 = sphi 0, %s490
    %s492 = sphi 0, %s490
    %s493 = sphi 0, %s492
    %s507 = sphi 0, %s493
    %s511 = sphi 0, %s511
    %s513 = sphi 0, %s511
    %s514 = sphi 0, %s513
    %s528 = sphi 0, %s514
    %s532 = sphi 0, %s532
    %s534 = sphi 0, %s532
    %s535 = sphi 0, %s534
    %s549 = sphi 0, %s535
    %s555 = sphi 0, %s557
    %s558 = sphi 0, %s555
    %s559 = sphi 0, %s558
    %s575 = sphi 0, %s559
  $region4: #{_lambda_.1} parent=0 // loop_header_branch
    %34 = sbr.rel (%p32) target = $region8
  $region5: #{_lambda_.1} parent=0 // loop_body
    %s36 = ssub.s32 %s31, 1
    %s37 = ssub.s32 %s31, 2
    %s38 = sadd.s32 %s31, 1
    %s39 = ssub.s32 %s31, %s38
    %p40 = scmp.eq.s32.totalorder %s39, 0
    %s42 = sadd.s32 %s41, 1
    %s43 = scalar_select %p40, %s41, %s42
    %p46 = pneg %p40
    %p47 = scmp.eq.s32.totalorder %s31, 1
    %p48 = por %p46, %p47
    %p49 = scmp.ne.s32.totalorder %s41, %s44
    %p50 = scmp.eq.s32.totalorder %s31, 0
    %p51 = por %p49, %p50
    %p52 = scmp.ne.s32.totalorder %s41, %s44
    %p53 = scmp.eq.s32.totalorder %s36, 1
    %p54 = por %p52, %p53
    %p55 = scmp.ne.s32.totalorder %s44, %s45
    %p56 = scmp.eq.s32.totalorder %s36, 0
    %p57 = por %p55, %p56
    %p58 = scmp.ne.s32.totalorder %s44, %s45
    %p59 = scmp.eq.s32.totalorder %s37, 1
    %p60 = por %p58, %p59
    %p62 = scmp.ne.s32.totalorder %s45, %s61
    %p63 = scmp.eq.s32.totalorder %s37, 0
    %p64 = por %p62, %p63
    %s65 = ssub.s32 %s31, %s38
    %p66 = scmp.eq.s32.totalorder %s65, 0
    %s68 = sadd.s32 %s67, 1
    %s69 = scalar_select %p66, %s67, %s68
    %p72 = pneg %p66
    %p73 = scmp.eq.s32.totalorder %s31, 1
    %p74 = por %p72, %p73
    %p75 = scmp.ne.s32.totalorder %s67, %s70
    %p76 = scmp.eq.s32.totalorder %s31, 0
    %p77 = por %p75, %p76
    %p78 = scmp.ne.s32.totalorder %s67, %s70
    %p79 = scmp.eq.s32.totalorder %s36, 1
    %p80 = por %p78, %p79
    %p81 = scmp.ne.s32.totalorder %s70, %s71
    %p82 = scmp.eq.s32.totalorder %s36, 0
    %p83 = por %p81, %p82
    %p84 = scmp.ne.s32.totalorder %s70, %s71
    %p85 = scmp.eq.s32.totalorder %s37, 1
    %p86 = por %p84, %p85
    %p88 = scmp.ne.s32.totalorder %s71, %s87
    %p89 = scmp.eq.s32.totalorder %s37, 0
    %p90 = por %p88, %p89
    %s92 = sadd.s32 %s91, 1
    %p95 = scmp.eq.s32.totalorder %s31, 1
    %p96 = scmp.ne.s32.totalorder %s91, %s93
    %p97 = scmp.eq.s32.totalorder %s31, 0
    %p98 = por %p96, %p97
    %p99 = scmp.ne.s32.totalorder %s91, %s93
    %p100 = scmp.eq.s32.totalorder %s36, 1
    %p101 = por %p99, %p100
    %p102 = scmp.ne.s32.totalorder %s93, %s94
    %p103 = scmp.eq.s32.totalorder %s36, 0
    %p104 = por %p102, %p103
    %p105 = scmp.ne.s32.totalorder %s93, %s94
    %p106 = scmp.eq.s32.totalorder %s37, 1
    %p107 = por %p105, %p106
    %p109 = scmp.ne.s32.totalorder %s94, %s108
    %p110 = scmp.eq.s32.totalorder %s37, 0
    %p111 = por %p109, %p110
    %s113 = sadd.s32 %s112, 1
    %p116 = scmp.eq.s32.totalorder %s31, 1
    %p117 = scmp.ne.s32.totalorder %s112, %s114
    %p118 = scmp.eq.s32.totalorder %s31, 0
    %p119 = por %p117, %p118
    %p120 = scmp.ne.s32.totalorder %s112, %s114
    %p121 = scmp.eq.s32.totalorder %s36, 1
    %p122 = por %p120, %p121
    %p123 = scmp.ne.s32.totalorder %s114, %s115
    %p124 = scmp.eq.s32.totalorder %s36, 0
    %p125 = por %p123, %p124
    %p126 = scmp.ne.s32.totalorder %s114, %s115
    %p127 = scmp.eq.s32.totalorder %s37, 1
    %p128 = por %p126, %p127
    %p130 = scmp.ne.s32.totalorder %s115, %s129
    %p131 = scmp.eq.s32.totalorder %s37, 0
    %p132 = por %p130, %p131
    %s134 = sadd.s32 %s133, 1
    %p137 = scmp.eq.s32.totalorder %s31, 1
    %p138 = scmp.ne.s32.totalorder %s133, %s135
    %p139 = scmp.eq.s32.totalorder %s31, 0
    %p140 = por %p138, %p139
    %p141 = scmp.ne.s32.totalorder %s133, %s135
    %p142 = scmp.eq.s32.totalorder %s36, 1
    %p143 = por %p141, %p142
    %p144 = scmp.ne.s32.totalorder %s135, %s136
    %p145 = scmp.eq.s32.totalorder %s36, 0
    %p146 = por %p144, %p145
    %p147 = scmp.ne.s32.totalorder %s135, %s136
    %p148 = scmp.eq.s32.totalorder %s37, 1
    %p149 = por %p147, %p148
    %p151 = scmp.ne.s32.totalorder %s136, %s150
    %p152 = scmp.eq.s32.totalorder %s37, 0
    %p153 = por %p151, %p152
    %s155 = sadd.s32 %s154, 1
    %p158 = scmp.eq.s32.totalorder %s31, 1
    %p159 = scmp.ne.s32.totalorder %s154, %s156
    %p160 = scmp.eq.s32.totalorder %s31, 0
    %p161 = por %p159, %p160
    %p162 = scmp.ne.s32.totalorder %s154, %s156
    %p163 = scmp.eq.s32.totalorder %s36, 1
    %p164 = por %p162, %p163
    %p165 = scmp.ne.s32.totalorder %s156, %s157
    %p166 = scmp.eq.s32.totalorder %s36, 0
    %p167 = por %p165, %p166
    %p168 = scmp.ne.s32.totalorder %s156, %s157
    %p169 = scmp.eq.s32.totalorder %s37, 1
    %p170 = por %p168, %p169
    %p172 = scmp.ne.s32.totalorder %s157, %s171
    %p173 = scmp.eq.s32.totalorder %s37, 0
    %p174 = por %p172, %p173
    %s176 = sadd.s32 %s175, 1
    %p179 = scmp.eq.s32.totalorder %s31, 1
    %p180 = scmp.ne.s32.totalorder %s175, %s177
    %p181 = scmp.eq.s32.totalorder %s31, 0
    %p182 = por %p180, %p181
    %p183 = scmp.ne.s32.totalorder %s175, %s177
    %p184 = scmp.eq.s32.totalorder %s36, 1
    %p185 = por %p183, %p184
    %p186 = scmp.ne.s32.totalorder %s177, %s178
    %p187 = scmp.eq.s32.totalorder %s36, 0
    %p188 = por %p186, %p187
    %p189 = scmp.ne.s32.totalorder %s177, %s178
    %p190 = scmp.eq.s32.totalorder %s37, 1
    %p191 = por %p189, %p190
    %p193 = scmp.ne.s32.totalorder %s178, %s192
    %p194 = scmp.eq.s32.totalorder %s37, 0
    %p195 = por %p193, %p194
    %s197 = sadd.s32 %s196, 1
    %p200 = scmp.eq.s32.totalorder %s31, 1
    %p201 = scmp.ne.s32.totalorder %s196, %s198
    %p202 = scmp.eq.s32.totalorder %s31, 0
    %p203 = por %p201, %p202
    %p204 = scmp.ne.s32.totalorder %s196, %s198
    %p205 = scmp.eq.s32.totalorder %s36, 1
    %p206 = por %p204, %p205
    %p207 = scmp.ne.s32.totalorder %s198, %s199
    %p208 = scmp.eq.s32.totalorder %s36, 0
    %p209 = por %p207, %p208
    %p210 = scmp.ne.s32.totalorder %s198, %s199
    %p211 = scmp.eq.s32.totalorder %s37, 1
    %p212 = por %p210, %p211
    %p214 = scmp.ne.s32.totalorder %s199, %s213
    %p215 = scmp.eq.s32.totalorder %s37, 0
    %p216 = por %p214, %p215
    %s218 = sadd.s32 %s217, 1
    %p221 = scmp.eq.s32.totalorder %s31, 1
    %p222 = scmp.ne.s32.totalorder %s217, %s219
    %p223 = scmp.eq.s32.totalorder %s31, 0
    %p224 = por %p222, %p223
    %p225 = scmp.ne.s32.totalorder %s217, %s219
    %p226 = scmp.eq.s32.totalorder %s36, 1
    %p227 = por %p225, %p226
    %p228 = scmp.ne.s32.totalorder %s219, %s220
    %p229 = scmp.eq.s32.totalorder %s36, 0
    %p230 = por %p228, %p229
    %p231 = scmp.ne.s32.totalorder %s219, %s220
    %p232 = scmp.eq.s32.totalorder %s37, 1
    %p233 = por %p231, %p232
    %p235 = scmp.ne.s32.totalorder %s220, %s234
    %p236 = scmp.eq.s32.totalorder %s37, 0
    %p237 = por %p235, %p236
    %s239 = sadd.s32 %s238, 1
    %p242 = scmp.eq.s32.totalorder %s31, 1
    %p243 = scmp.ne.s32.totalorder %s238, %s240
    %p244 = scmp.eq.s32.totalorder %s31, 0
    %p245 = por %p243, %p244
    %p246 = scmp.ne.s32.totalorder %s238, %s240
    %p247 = scmp.eq.s32.totalorder %s36, 1
    %p248 = por %p246, %p247
    %p249 = scmp.ne.s32.totalorder %s240, %s241
    %p250 = scmp.eq.s32.totalorder %s36, 0
    %p251 = por %p249, %p250
    %p252 = scmp.ne.s32.totalorder %s240, %s241
    %p253 = scmp.eq.s32.totalorder %s37, 1
    %p254 = por %p252, %p253
    %p256 = scmp.ne.s32.totalorder %s241, %s255
    %p257 = scmp.eq.s32.totalorder %s37, 0
    %p258 = por %p256, %p257
    %s260 = sadd.s32 %s259, 1
    %p263 = scmp.eq.s32.totalorder %s31, 1
    %p264 = scmp.ne.s32.totalorder %s259, %s261
    %p265 = scmp.eq.s32.totalorder %s31, 0
    %p266 = por %p264, %p265
    %p267 = scmp.ne.s32.totalorder %s259, %s261
    %p268 = scmp.eq.s32.totalorder %s36, 1
    %p269 = por %p267, %p268
    %p270 = scmp.ne.s32.totalorder %s261, %s262
    %p271 = scmp.eq.s32.totalorder %s36, 0
    %p272 = por %p270, %p271
    %p273 = scmp.ne.s32.totalorder %s261, %s262
    %p274 = scmp.eq.s32.totalorder %s37, 1
    %p275 = por %p273, %p274
    %p277 = scmp.ne.s32.totalorder %s262, %s276
    %p278 = scmp.eq.s32.totalorder %s37, 0
    %p279 = por %p277, %p278
    %s281 = sadd.s32 %s280, 1
    %p284 = scmp.eq.s32.totalorder %s31, 1
    %p285 = scmp.ne.s32.totalorder %s280, %s282
    %p286 = scmp.eq.s32.totalorder %s31, 0
    %p287 = por %p285, %p286
    %p288 = scmp.ne.s32.totalorder %s280, %s282
    %p289 = scmp.eq.s32.totalorder %s36, 1
    %p290 = por %p288, %p289
    %p291 = scmp.ne.s32.totalorder %s282, %s283
    %p292 = scmp.eq.s32.totalorder %s36, 0
    %p293 = por %p291, %p292
    %p294 = scmp.ne.s32.totalorder %s282, %s283
    %p295 = scmp.eq.s32.totalorder %s37, 1
    %p296 = por %p294, %p295
    %p298 = scmp.ne.s32.totalorder %s283, %s297
    %p299 = scmp.eq.s32.totalorder %s37, 0
    %p300 = por %p298, %p299
    %s302 = sadd.s32 %s301, 1
    %p305 = scmp.eq.s32.totalorder %s31, 1
    %p306 = scmp.ne.s32.totalorder %s301, %s303
    %p307 = scmp.eq.s32.totalorder %s31, 0
    %p308 = por %p306, %p307
    %p309 = scmp.ne.s32.totalorder %s301, %s303
    %p310 = scmp.eq.s32.totalorder %s36, 1
    %p311 = por %p309, %p310
    %p312 = scmp.ne.s32.totalorder %s303, %s304
    %p313 = scmp.eq.s32.totalorder %s36, 0
    %p314 = por %p312, %p313
    %p315 = scmp.ne.s32.totalorder %s303, %s304
    %p316 = scmp.eq.s32.totalorder %s37, 1
    %p317 = por %p315, %p316
    %p319 = scmp.ne.s32.totalorder %s304, %s318
    %p320 = scmp.eq.s32.totalorder %s37, 0
    %p321 = por %p319, %p320
    %s323 = sadd.s32 %s322, 1
    %p326 = scmp.eq.s32.totalorder %s31, 1
    %p327 = scmp.ne.s32.totalorder %s322, %s324
    %p328 = scmp.eq.s32.totalorder %s31, 0
    %p329 = por %p327, %p328
    %p330 = scmp.ne.s32.totalorder %s322, %s324
    %p331 = scmp.eq.s32.totalorder %s36, 1
    %p332 = por %p330, %p331
    %p333 = scmp.ne.s32.totalorder %s324, %s325
    %p334 = scmp.eq.s32.totalorder %s36, 0
    %p335 = por %p333, %p334
    %p336 = scmp.ne.s32.totalorder %s324, %s325
    %p337 = scmp.eq.s32.totalorder %s37, 1
    %p338 = por %p336, %p337
    %p340 = scmp.ne.s32.totalorder %s325, %s339
    %p341 = scmp.eq.s32.totalorder %s37, 0
    %p342 = por %p340, %p341
    %s344 = sadd.s32 %s343, 1
    %p347 = scmp.eq.s32.totalorder %s31, 1
    %p348 = scmp.ne.s32.totalorder %s343, %s345
    %p349 = scmp.eq.s32.totalorder %s31, 0
    %p350 = por %p348, %p349
    %p351 = scmp.ne.s32.totalorder %s343, %s345
    %p352 = scmp.eq.s32.totalorder %s36, 1
    %p353 = por %p351, %p352
    %p354 = scmp.ne.s32.totalorder %s345, %s346
    %p355 = scmp.eq.s32.totalorder %s36, 0
    %p356 = por %p354, %p355
    %p357 = scmp.ne.s32.totalorder %s345, %s346
    %p358 = scmp.eq.s32.totalorder %s37, 1
    %p359 = por %p357, %p358
    %p361 = scmp.ne.s32.totalorder %s346, %s360
    %p362 = scmp.eq.s32.totalorder %s37, 0
    %p363 = por %p361, %p362
    %s365 = sadd.s32 %s364, 1
    %p368 = scmp.eq.s32.totalorder %s31, 1
    %p369 = scmp.ne.s32.totalorder %s364, %s366
    %p370 = scmp.eq.s32.totalorder %s31, 0
    %p371 = por %p369, %p370
    %p372 = scmp.ne.s32.totalorder %s364, %s366
    %p373 = scmp.eq.s32.totalorder %s36, 1
    %p374 = por %p372, %p373
    %p375 = scmp.ne.s32.totalorder %s366, %s367
    %p376 = scmp.eq.s32.totalorder %s36, 0
    %p377 = por %p375, %p376
    %p378 = scmp.ne.s32.totalorder %s366, %s367
    %p379 = scmp.eq.s32.totalorder %s37, 1
    %p380 = por %p378, %p379
    %p382 = scmp.ne.s32.totalorder %s367, %s381
    %p383 = scmp.eq.s32.totalorder %s37, 0
    %p384 = por %p382, %p383
    %s386 = sadd.s32 %s385, 1
    %p389 = scmp.eq.s32.totalorder %s31, 1
    %p390 = scmp.ne.s32.totalorder %s385, %s387
    %p391 = scmp.eq.s32.totalorder %s31, 0
    %p392 = por %p390, %p391
    %p393 = scmp.ne.s32.totalorder %s385, %s387
    %p394 = scmp.eq.s32.totalorder %s36, 1
    %p395 = por %p393, %p394
    %p396 = scmp.ne.s32.totalorder %s387, %s388
    %p397 = scmp.eq.s32.totalorder %s36, 0
    %p398 = por %p396, %p397
    %p399 = scmp.ne.s32.totalorder %s387, %s388
    %p400 = scmp.eq.s32.totalorder %s37, 1
    %p401 = por %p399, %p400
    %p403 = scmp.ne.s32.totalorder %s388, %s402
    %p404 = scmp.eq.s32.totalorder %s37, 0
    %p405 = por %p403, %p404
    %s407 = sadd.s32 %s406, 1
    %p410 = scmp.eq.s32.totalorder %s31, 1
    %p411 = scmp.ne.s32.totalorder %s406, %s408
    %p412 = scmp.eq.s32.totalorder %s31, 0
    %p413 = por %p411, %p412
    %p414 = scmp.ne.s32.totalorder %s406, %s408
    %p415 = scmp.eq.s32.totalorder %s36, 1
    %p416 = por %p414, %p415
    %p417 = scmp.ne.s32.totalorder %s408, %s409
    %p418 = scmp.eq.s32.totalorder %s36, 0
    %p419 = por %p417, %p418
    %p420 = scmp.ne.s32.totalorder %s408, %s409
    %p421 = scmp.eq.s32.totalorder %s37, 1
    %p422 = por %p420, %p421
    %p424 = scmp.ne.s32.totalorder %s409, %s423
    %p425 = scmp.eq.s32.totalorder %s37, 0
    %p426 = por %p424, %p425
    %s428 = sadd.s32 %s427, 1
    %p431 = scmp.eq.s32.totalorder %s31, 1
    %p432 = scmp.ne.s32.totalorder %s427, %s429
    %p433 = scmp.eq.s32.totalorder %s31, 0
    %p434 = por %p432, %p433
    %p435 = scmp.ne.s32.totalorder %s427, %s429
    %p436 = scmp.eq.s32.totalorder %s36, 1
    %p437 = por %p435, %p436
    %p438 = scmp.ne.s32.totalorder %s429, %s430
    %p439 = scmp.eq.s32.totalorder %s36, 0
    %p440 = por %p438, %p439
    %p441 = scmp.ne.s32.totalorder %s429, %s430
    %p442 = scmp.eq.s32.totalorder %s37, 1
    %p443 = por %p441, %p442
    %p445 = scmp.ne.s32.totalorder %s430, %s444
    %p446 = scmp.eq.s32.totalorder %s37, 0
    %p447 = por %p445, %p446
    %s449 = sadd.s32 %s448, 1
    %p452 = scmp.eq.s32.totalorder %s31, 1
    %p453 = scmp.ne.s32.totalorder %s448, %s450
    %p454 = scmp.eq.s32.totalorder %s31, 0
    %p455 = por %p453, %p454
    %p456 = scmp.ne.s32.totalorder %s448, %s450
    %p457 = scmp.eq.s32.totalorder %s36, 1
    %p458 = por %p456, %p457
    %p459 = scmp.ne.s32.totalorder %s450, %s451
    %p460 = scmp.eq.s32.totalorder %s36, 0
    %p461 = por %p459, %p460
    %p462 = scmp.ne.s32.totalorder %s450, %s451
    %p463 = scmp.eq.s32.totalorder %s37, 1
    %p464 = por %p462, %p463
    %p466 = scmp.ne.s32.totalorder %s451, %s465
    %p467 = scmp.eq.s32.totalorder %s37, 0
    %p468 = por %p466, %p467
    %s470 = sadd.s32 %s469, 1
    %p473 = scmp.eq.s32.totalorder %s31, 1
    %p474 = scmp.ne.s32.totalorder %s469, %s471
    %p475 = scmp.eq.s32.totalorder %s31, 0
    %p476 = por %p474, %p475
    %p477 = scmp.ne.s32.totalorder %s469, %s471
    %p478 = scmp.eq.s32.totalorder %s36, 1
    %p479 = por %p477, %p478
    %p480 = scmp.ne.s32.totalorder %s471, %s472
    %p481 = scmp.eq.s32.totalorder %s36, 0
    %p482 = por %p480, %p481
    %p483 = scmp.ne.s32.totalorder %s471, %s472
    %p484 = scmp.eq.s32.totalorder %s37, 1
    %p485 = por %p483, %p484
    %p487 = scmp.ne.s32.totalorder %s472, %s486
    %p488 = scmp.eq.s32.totalorder %s37, 0
    %p489 = por %p487, %p488
    %s491 = sadd.s32 %s490, 1
    %p494 = scmp.eq.s32.totalorder %s31, 1
    %p495 = scmp.ne.s32.totalorder %s490, %s492
    %p496 = scmp.eq.s32.totalorder %s31, 0
    %p497 = por %p495, %p496
    %p498 = scmp.ne.s32.totalorder %s490, %s492
    %p499 = scmp.eq.s32.totalorder %s36, 1
    %p500 = por %p498, %p499
    %p501 = scmp.ne.s32.totalorder %s492, %s493
    %p502 = scmp.eq.s32.totalorder %s36, 0
    %p503 = por %p501, %p502
    %p504 = scmp.ne.s32.totalorder %s492, %s493
    %p505 = scmp.eq.s32.totalorder %s37, 1
    %p506 = por %p504, %p505
    %p508 = scmp.ne.s32.totalorder %s493, %s507
    %p509 = scmp.eq.s32.totalorder %s37, 0
    %p510 = por %p508, %p509
    %s512 = sadd.s32 %s511, 1
    %p515 = scmp.eq.s32.totalorder %s31, 1
    %p516 = scmp.ne.s32.totalorder %s511, %s513
    %p517 = scmp.eq.s32.totalorder %s31, 0
    %p518 = por %p516, %p517
    %p519 = scmp.ne.s32.totalorder %s511, %s513
    %p520 = scmp.eq.s32.totalorder %s36, 1
    %p521 = por %p519, %p520
    %p522 = scmp.ne.s32.totalorder %s513, %s514
    %p523 = scmp.eq.s32.totalorder %s36, 0
    %p524 = por %p522, %p523
    %p525 = scmp.ne.s32.totalorder %s513, %s514
    %p526 = scmp.eq.s32.totalorder %s37, 1
    %p527 = por %p525, %p526
    %p529 = scmp.ne.s32.totalorder %s514, %s528
    %p530 = scmp.eq.s32.totalorder %s37, 0
    %p531 = por %p529, %p530
    %s533 = sadd.s32 %s532, 1
    %p536 = scmp.eq.s32.totalorder %s31, 1
    %p537 = scmp.ne.s32.totalorder %s532, %s534
    %p538 = scmp.eq.s32.totalorder %s31, 0
    %p539 = por %p537, %p538
    %p540 = scmp.ne.s32.totalorder %s532, %s534
    %p541 = scmp.eq.s32.totalorder %s36, 1
    %p542 = por %p540, %p541
    %p543 = scmp.ne.s32.totalorder %s534, %s535
    %p544 = scmp.eq.s32.totalorder %s36, 0
    %p545 = por %p543, %p544
    %p546 = scmp.ne.s32.totalorder %s534, %s535
    %p547 = scmp.eq.s32.totalorder %s37, 1
    %p548 = por %p546, %p547
    %p550 = scmp.ne.s32.totalorder %s535, %s549
    %p551 = scmp.eq.s32.totalorder %s37, 0
    %p552 = por %p550, %p551
    %s553 = ssub.s32 %s31, %s38
    %p554 = scmp.eq.s32.totalorder %s553, 0
    %s556 = sadd.s32 %s555, 1
    %s557 = scalar_select %p554, %s555, %s556
    %p560 = pneg %p554
    %p561 = scmp.eq.s32.totalorder %s31, 1
    %p562 = por %p560, %p561
    %p563 = scmp.ne.s32.totalorder %s555, %s558
    %p564 = scmp.eq.s32.totalorder %s31, 0
    %p565 = por %p563, %p564
    %p566 = scmp.ne.s32.totalorder %s555, %s558
    %p567 = scmp.eq.s32.totalorder %s36, 1
    %p568 = por %p566, %p567
    %p569 = scmp.ne.s32.totalorder %s558, %s559
    %p570 = scmp.eq.s32.totalorder %s36, 0
    %p571 = por %p569, %p570
    %p572 = scmp.ne.s32.totalorder %s558, %s559
    %p573 = scmp.eq.s32.totalorder %s37, 1
    %p574 = por %p572, %p573
    %p576 = scmp.ne.s32.totalorder %s559, %s575
    %p577 = scmp.eq.s32.totalorder %s37, 0
    %p578 = por %p576, %p577
    %p579 = scmp.le.s32.totalorder 1, %s31
    %p580 = scmp.lt.s32.totalorder %s31, 3
    %p581 = pnand %p579, %p580
    %p582 = pneg %p581
    // Predicated region
    $region9: #{_lambda_.1} parent=5 // pred_check
      _
    $region10: #{_lambda_.1} parent=5 // pred_check_branch
      %584 = sbr.rel (%p581) target = $region12
    $region11: #{_lambda_.1} parent=5 // pred_region
      %s585 = ssub.s32 %s31, 1
      // Predicated region
      $region13: #{_lambda_.1} parent=11 // pred_check
        %p586 = pneg %p104
      $region14: #{_lambda_.1} parent=11 // pred_check_branch
        %588 = sbr.rel (%p586) target = $region16
      $region15: #{_lambda_.1} parent=11 // pred_region
        _
      $region16: #{_lambda_.1} parent=11 // pred_fallthru
        _
      // Predicated region
      $region17: #{_lambda_.1} parent=11 // pred_check
        %p589 = pneg %p125
      $region18: #{_lambda_.1} parent=11 // pred_check_branch
        %591 = sbr.rel (%p589) target = $region20
      $region19: #{_lambda_.1} parent=11 // pred_region
        _
      $region20: #{_lambda_.1} parent=11 // pred_fallthru
        _
      // Predicated region
      $region21: #{_lambda_.1} parent=11 // pred_check
        %p592 = pneg %p146
      $region22: #{_lambda_.1} parent=11 // pred_check_branch
        %594 = sbr.rel (%p592) target = $region24
      $region23: #{_lambda_.1} parent=11 // pred_region
        _
      $region24: #{_lambda_.1} parent=11 // pred_fallthru
        _
      // Predicated region
      $region25: #{_lambda_.1} parent=11 // pred_check
        %p595 = pneg %p167
      $region26: #{_lambda_.1} parent=11 // pred_check_branch
        %597 = sbr.rel (%p595) target = $region28
      $region27: #{_lambda_.1} parent=11 // pred_region
        _
      $region28: #{_lambda_.1} parent=11 // pred_fallthru
        _
      // Predicated region
      $region29: #{_lambda_.1} parent=11 // pred_check
        %p598 = pneg %p188
      $region30: #{_lambda_.1} parent=11 // pred_check_branch
        %600 = sbr.rel (%p598) target = $region32
      $region31: #{_lambda_.1} parent=11 // pred_region
        _
      $region32: #{_lambda_.1} parent=11 // pred_fallthru
        _
      // Predicated region
      $region33: #{_lambda_.1} parent=11 // pred_check
        %p601 = pneg %p209
      $region34: #{_lambda_.1} parent=11 // pred_check_branch
        %603 = sbr.rel (%p601) target = $region36
      $region35: #{_lambda_.1} parent=11 // pred_region
        _
      $region36: #{_lambda_.1} parent=11 // pred_fallthru
        _
      // Predicated region
      $region37: #{_lambda_.1} parent=11 // pred_check
        %p604 = pneg %p230
      $region38: #{_lambda_.1} parent=11 // pred_check_branch
        %606 = sbr.rel (%p604) target = $region40
      $region39: #{_lambda_.1} parent=11 // pred_region
        _
      $region40: #{_lambda_.1} parent=11 // pred_fallthru
        _
      // Predicated region
      $region41: #{_lambda_.1} parent=11 // pred_check
        %p607 = pneg %p251
      $region42: #{_lambda_.1} parent=11 // pred_check_branch
        %609 = sbr.rel (%p607) target = $region44
      $region43: #{_lambda_.1} parent=11 // pred_region
        _
      $region44: #{_lambda_.1} parent=11 // pred_fallthru
        _
      // Predicated region
      $region45: #{_lambda_.1} parent=11 // pred_check
        %p610 = pneg %p272
      $region46: #{_lambda_.1} parent=11 // pred_check_branch
        %612 = sbr.rel (%p610) target = $region48
      $region47: #{_lambda_.1} parent=11 // pred_region
        _
      $region48: #{_lambda_.1} parent=11 // pred_fallthru
        _
      // Predicated region
      $region49: #{_lambda_.1} parent=11 // pred_check
        %p613 = pneg %p293
      $region50: #{_lambda_.1} parent=11 // pred_check_branch
        %615 = sbr.rel (%p613) target = $region52
      $region51: #{_lambda_.1} parent=11 // pred_region
        _
      $region52: #{_lambda_.1} parent=11 // pred_fallthru
        _
      // Predicated region
      $region53: #{_lambda_.1} parent=11 // pred_check
        %p616 = pneg %p314
      $region54: #{_lambda_.1} parent=11 // pred_check_branch
        %618 = sbr.rel (%p616) target = $region56
      $region55: #{_lambda_.1} parent=11 // pred_region
        _
      $region56: #{_lambda_.1} parent=11 // pred_fallthru
        _
      // Predicated region
      $region57: #{_lambda_.1} parent=11 // pred_check
        %p619 = pneg %p335
      $region58: #{_lambda_.1} parent=11 // pred_check_branch
        %621 = sbr.rel (%p619) target = $region60
      $region59: #{_lambda_.1} parent=11 // pred_region
        _
      $region60: #{_lambda_.1} parent=11 // pred_fallthru
        _
      // Predicated region
      $region61: #{_lambda_.1} parent=11 // pred_check
        %p622 = pneg %p356
      $region62: #{_lambda_.1} parent=11 // pred_check_branch
        %624 = sbr.rel (%p622) target = $region64
      $region63: #{_lambda_.1} parent=11 // pred_region
        _
      $region64: #{_lambda_.1} parent=11 // pred_fallthru
        _
      // Predicated region
      $region65: #{_lambda_.1} parent=11 // pred_check
        %p625 = pneg %p377
      $region66: #{_lambda_.1} parent=11 // pred_check_branch
        %627 = sbr.rel (%p625) target = $region68
      $region67: #{_lambda_.1} parent=11 // pred_region
        _
      $region68: #{_lambda_.1} parent=11 // pred_fallthru
        _
      // Predicated region
      $region69: #{_lambda_.1} parent=11 // pred_check
        %p628 = pneg %p398
      $region70: #{_lambda_.1} parent=11 // pred_check_branch
        %630 = sbr.rel (%p628) target = $region72
      $region71: #{_lambda_.1} parent=11 // pred_region
        _
      $region72: #{_lambda_.1} parent=11 // pred_fallthru
        _
      // Predicated region
      $region73: #{_lambda_.1} parent=11 // pred_check
        %p631 = pneg %p419
      $region74: #{_lambda_.1} parent=11 // pred_check_branch
        %633 = sbr.rel (%p631) target = $region76
      $region75: #{_lambda_.1} parent=11 // pred_region
        _
      $region76: #{_lambda_.1} parent=11 // pred_fallthru
        _
      // Predicated region
      $region77: #{_lambda_.1} parent=11 // pred_check
        %p634 = pneg %p440
      $region78: #{_lambda_.1} parent=11 // pred_check_branch
        %636 = sbr.rel (%p634) target = $region80
      $region79: #{_lambda_.1} parent=11 // pred_region
        _
      $region80: #{_lambda_.1} parent=11 // pred_fallthru
        _
      // Predicated region
      $region81: #{_lambda_.1} parent=11 // pred_check
        %p637 = pneg %p461
      $region82: #{_lambda_.1} parent=11 // pred_check_branch
        %639 = sbr.rel (%p637) target = $region84
      $region83: #{_lambda_.1} parent=11 // pred_region
        _
      $region84: #{_lambda_.1} parent=11 // pred_fallthru
        _
      // Predicated region
      $region85: #{_lambda_.1} parent=11 // pred_check
        %p640 = pneg %p482
      $region86: #{_lambda_.1} parent=11 // pred_check_branch
        %642 = sbr.rel (%p640) target = $region88
      $region87: #{_lambda_.1} parent=11 // pred_region
        _
      $region88: #{_lambda_.1} parent=11 // pred_fallthru
        _
      // Predicated region
      $region89: #{_lambda_.1} parent=11 // pred_check
        %p643 = pneg %p503
      $region90: #{_lambda_.1} parent=11 // pred_check_branch
        %645 = sbr.rel (%p643) target = $region92
      $region91: #{_lambda_.1} parent=11 // pred_region
        _
      $region92: #{_lambda_.1} parent=11 // pred_fallthru
        _
      // Predicated region
      $region93: #{_lambda_.1} parent=11 // pred_check
        %p646 = pneg %p524
      $region94: #{_lambda_.1} parent=11 // pred_check_branch
        %648 = sbr.rel (%p646) target = $region96
      $region95: #{_lambda_.1} parent=11 // pred_region
        _
      $region96: #{_lambda_.1} parent=11 // pred_fallthru
        _
      // Predicated region
      $region97: #{_lambda_.1} parent=11 // pred_check
        %p649 = pneg %p545
      $region98: #{_lambda_.1} parent=11 // pred_check_branch
        %651 = sbr.rel (%p649) target = $region100
      $region99: #{_lambda_.1} parent=11 // pred_region
        _
      $region100: #{_lambda_.1} parent=11 // pred_fallthru
        _
    $region12: #{_lambda_.1} parent=5 // pred_fallthru
      _
    %p652 = scmp.lt.s32.totalorder %s31, 2
    // Predicated region
    $region101: #{_lambda_.1} parent=5 // pred_check
      %p653 = pneg %p652
    $region102: #{_lambda_.1} parent=5 // pred_check_branch
      %655 = sbr.rel (%p653) target = $region104
    $region103: #{_lambda_.1} parent=5 // pred_region
      // Predicated region
      $region105: #{_lambda_.1} parent=103 // pred_check
        %p656 = pneg %p51
      $region106: #{_lambda_.1} parent=103 // pred_check_branch
        %658 = sbr.rel (%p656) target = $region108
      $region107: #{_lambda_.1} parent=103 // pred_region
        %p659 = scmp.lt.s32.totalorder %s31, 1
        %s660 = scalar_select %p659, %s31, 1
        %s661 = smul.addr %s660, 8
        %s662 = smul.addr %s661, 8
        %s663 = scalar_lea.vmem %s0, %s662
      $region108: #{_lambda_.1} parent=103 // pred_fallthru
        _
      // Predicated region
      $region109: #{_lambda_.1} parent=103 // pred_check
        %p664 = pneg %p77
      $region110: #{_lambda_.1} parent=103 // pred_check_branch
        %666 = sbr.rel (%p664) target = $region112
      $region111: #{_lambda_.1} parent=103 // pred_region
        %p667 = scmp.lt.s32.totalorder %s31, 1
        %s668 = scalar_select %p667, %s31, 1
        %s669 = smul.addr %s668, 8
        %s670 = smul.addr %s669, 8
        %s671 = scalar_lea.vmem %s1, %s670
      $region112: #{_lambda_.1} parent=103 // pred_fallthru
        _
    $region104: #{_lambda_.1} parent=5 // pred_fallthru
      _
    %p672 = scmp.le.s32.totalorder 1, %s31
    %p673 = scmp.lt.s32.totalorder %s31, 3
    %p674 = pnand %p672, %p673
    %p675 = pneg %p674
    // Predicated region
    $region113: #{_lambda_.1} parent=5 // pred_check
      _
    $region114: #{_lambda_.1} parent=5 // pred_check_branch
      %677 = sbr.rel (%p674) target = $region116
    $region115: #{_lambda_.1} parent=5 // pred_region
      %s678 = ssub.s32 %s31, 1
      %p679 = scmp.lt.s32.totalorder %s36, 1
      %s680 = scalar_select %p679, %s36, 1
      %s681 = smul.addr %s680, 8
      %s682 = smul.addr %s681, 8
      %s683 = scalar_lea.vmem %s0, %s682
      %p684 = pneg %p57
      %p685 = pneg %p54
      %p686 = scmp.lt.s32.totalorder %s36, 1
      %s687 = scalar_select %p686, %s36, 1
      %s688 = smul.addr %s687, 8
      %s689 = smul.addr %s688, 8
      %s690 = scalar_lea.vmem %s1, %s689
      %p691 = pneg %p83
      %p692 = pneg %p80
      %p693 = pneg %p104
      %p694 = pneg %p101
      %p695 = pneg %p125
      %p696 = pneg %p122
      %p697 = pneg %p146
      %p698 = pneg %p143
      %p699 = pneg %p167
      %p700 = pneg %p164
      %p701 = pneg %p188
      %p702 = pneg %p185
      %p703 = pneg %p209
      %p704 = pneg %p206
      %p705 = pneg %p230
      %p706 = pneg %p227
      %p707 = pneg %p251
      %p708 = pneg %p248
      %p709 = pneg %p272
      %p710 = pneg %p269
      %p711 = pneg %p293
      %p712 = pneg %p290
      %p713 = pneg %p314
      %p714 = pneg %p311
      %p715 = pneg %p335
      %p716 = pneg %p332
      %p717 = pneg %p356
      %p718 = pneg %p353
      %p719 = pneg %p377
      %p720 = pneg %p374
      %p721 = pneg %p398
      %p722 = pneg %p395
      %p723 = pneg %p419
      %p724 = pneg %p416
      %p725 = pneg %p440
      %p726 = pneg %p437
      %p727 = pneg %p461
      %p728 = pneg %p458
      %p729 = pneg %p482
      %p730 = pneg %p479
      %p731 = pneg %p503
      %p732 = pneg %p500
      %p733 = pneg %p524
      %p734 = pneg %p521
      %p735 = pneg %p545
      %p736 = pneg %p542
      %p737 = pneg %p571
      %p738 = pneg %p568
      %p739 = scmp.lt.s32.totalorder %s36, 1
      %s740 = scalar_select %p739, %s36, 1
      %s741 = smul.addr %s740, 8
      %s742 = smul.addr %s741, 8
      %s743 = scalar_lea.vmem %s24, %s742
      %p744 = scmp.lt.s32.totalorder %s36, 1
      %s745 = scalar_select %p744, %s36, 1
      %s746 = smul.addr %s745, 8
      %s747 = smul.addr %s746, 8
      %s748 = scalar_lea.vmem %s0, %s747
      %p749 = scmp.lt.s32.totalorder %s36, 1
      %s750 = scalar_select %p749, %s36, 1
      %s751 = smul.addr %s750, 8
      %s752 = smul.addr %s751, 8
      %s753 = scalar_lea.vmem %s1, %s752
      %p754 = scmp.lt.s32.totalorder %s36, 1
      %s755 = scalar_select %p754, %s36, 1
      %s756 = smul.addr %s755, 8
      %s757 = smul.addr %s756, 8
      %s758 = scalar_lea.vmem %s24, %s757
      %v760 = vld [vmem:[%s2] sm:$0xff]
      %v761 = vld [vmem:[%s2 + $0x8] sm:$0xff]
      %v762 = vld [vmem:[%s2 + $0x10] sm:$0x1]
      %v763 = vld [vmem:[%s2 + $0x18] sm:$0x1]
      %v764 = vpack.c.bf16 %v760, %v760
      %v765 = vpack.c.bf16 %v761, %v761
      %v766 = vpack.c.bf16 %v762, %v762
      %v767 = vpack.c.bf16 %v763, %v763
      %v768 = vld [vmem:[%s748] sm:$0xff]
      %v769 = vld [vmem:[%s748 + $0x8] sm:$0xff]
      %v770 = vld [vmem:[%s748 + $0x10] sm:$0xff]
      %v771 = vld [vmem:[%s748 + $0x18] sm:$0xff]
      %v772 = vld [vmem:[%s748 + $0x20] sm:$0xff]
      %v773 = vld [vmem:[%s748 + $0x28] sm:$0xff]
      %v774 = vld [vmem:[%s748 + $0x30] sm:$0xff]
      %v775 = vld [vmem:[%s748 + $0x38] sm:$0xff]
      %v776 = vld [vmem:[%s753] sm:$0xff]
      %v777 = vld [vmem:[%s753 + $0x8] sm:$0xff]
      %v778 = vld [vmem:[%s753 + $0x10] sm:$0xff]
      %v779 = vld [vmem:[%s753 + $0x18] sm:$0xff]
      %v780 = vld [vmem:[%s753 + $0x20] sm:$0xff]
      %v781 = vld [vmem:[%s753 + $0x28] sm:$0xff]
      %v782 = vld [vmem:[%s753 + $0x30] sm:$0xff]
      %v783 = vld [vmem:[%s753 + $0x38] sm:$0xff]
      %v784 = vld [vmem:[%s3] sm:$0xff]
      %v785 = vld [vmem:[%s3 + $0x8] sm:$0xff]
      %v786 = vld [vmem:[%s3 + $0x10] sm:$0xff]
      %v787 = vld [vmem:[%s3 + $0x18] sm:$0xff]
      %v788 = vld [vmem:[%s3 + $0x20] sm:$0xff]
      %v789 = vld [vmem:[%s3 + $0x28] sm:$0xff]
      %v790 = vld [vmem:[%s3 + $0x30] sm:$0xff]
      %v791 = vld [vmem:[%s3 + $0x38] sm:$0xff]
      %v792 = vld [vmem:[%s4] sm:$0xff]
      %v793 = vld [vmem:[%s4 + $0x8] sm:$0xff]
      %v794 = vld [vmem:[%s4 + $0x10] sm:$0xff]
      %v795 = vld [vmem:[%s4 + $0x18] sm:$0xff]
      %v796 = vld [vmem:[%s4 + $0x20] sm:$0xff]
      %v797 = vld [vmem:[%s4 + $0x28] sm:$0xff]
      %v798 = vld [vmem:[%s4 + $0x30] sm:$0xff]
      %v799 = vld [vmem:[%s4 + $0x38] sm:$0xff]
      %v800 = vadd.f32 %v768, %v769
      %801 = vadd.xlane.f32.xlu0 %v800
      %v802 = vpop.xlane.xlu0 %801
      %v803 = vadd.f32 %v770, %v771
      %804 = vadd.xlane.f32.xlu0 %v803
      %v805 = vpop.xlane.xlu0 %804
      %v806 = vadd.f32 %v772, %v773
      %807 = vadd.xlane.f32.xlu0 %v806
      %v808 = vpop.xlane.xlu0 %807
      %v809 = vadd.f32 %v774, %v775
      %810 = vadd.xlane.f32.xlu0 %v809
      %v811 = vpop.xlane.xlu0 %810
      %v812 = vadd.f32 %v776, %v777
      %813 = vadd.xlane.f32.xlu0 %v812
      %v814 = vpop.xlane.xlu0 %813
      %v815 = vadd.f32 %v778, %v779
      %816 = vadd.xlane.f32.xlu0 %v815
      %v817 = vpop.xlane.xlu0 %816
      %v818 = vadd.f32 %v780, %v781
      %819 = vadd.xlane.f32.xlu0 %v818
      %v820 = vpop.xlane.xlu0 %819
      %v821 = vadd.f32 %v782, %v783
      %822 = vadd.xlane.f32.xlu0 %v821
      %v823 = vpop.xlane.xlu0 %822
      %v824 = vld [vmem:[%s5] sm:$0xff]
      %v825 = vld [vmem:[%s5 + $0x8] sm:$0xff]
      %v826 = vld [vmem:[%s5 + $0x10] sm:$0xff]
      %v827 = vld [vmem:[%s5 + $0x18] sm:$0xff]
      %vm828 = vcmask 523264
      %v830 = vsel %vm828, %v824, 0
      %v833 = vsel %vm828, %v825, 0
      %v836 = vsel %vm828, %v826, 0
      %v839 = vsel %vm828, %v827, 0
      %841 = vmatprep.subr.mxu0 0.0
      %842 = vmatpush1.msra.mxu0 0.0
      %843 = vmatprep.subr.mxu0 0.0
      %844 = vmatpush1.msra.mxu0 0.0
      %845 = vmatprep.subr.mxu0 0.0
      %846 = vmatpush1.msra.mxu0 0.0
      %847 = vmatprep.subr.mxu0 0.0
      %848 = vmatpush1.msra.mxu0 0.0
      %849 = vmatprep.subr.mxu0 0.0
      %850 = vmatpush1.msra.mxu0 0.0
      %851 = vmatprep.subr.mxu0 0.0
      %852 = vmatpush1.msra.mxu0 0.0
      %853 = vmatprep.subr.mxu0 0.0
      %854 = vmatpush1.msra.mxu0 0.0
      %855 = vmatprep.subr.mxu0 0.0
      %856 = vmatpush1.msra.mxu0 0.0
      %857 = vmatprep.subr.mxu0 0.0
      %858 = vmatpush1.msra.mxu0 %v823
      %859 = vmatprep.subr.mxu0 0.0
      %860 = vmatpush1.msra.mxu0 %v820
      %861 = vmatprep.subr.mxu0 0.0
      %862 = vmatpush1.msra.mxu0 %v817
      %863 = vmatprep.subr.mxu0 0.0
      %864 = vmatpush1.msra.mxu0 %v814
      %865 = vmatprep.subr.mxu0 0.0
      %866 = vmatpush1.msra.mxu0 %v811
      %867 = vmatprep.subr.mxu0 0.0
      %868 = vmatpush1.msra.mxu0 %v808
      %869 = vmatprep.subr.mxu0 0.0
      %870 = vmatpush1.msra.mxu0 %v805
      %871 = vmatprep.subr.mxu0 0.0
      %872 = vmatpush1.msra.mxu0 %v802
      %873 = vmatprep.subr.mxu0 0.0
      %874 = vmatpush2.msra.mxu0 0.0
      %875 = vmatprep.subr.mxu0 0.0
      %876 = vmatpush2.msra.mxu0 0.0
      %877 = vmatprep.subr.mxu0 0.0
      %878 = vmatpush2.msra.mxu0 0.0
      %879 = vmatprep.subr.mxu0 0.0
      %880 = vmatpush2.msra.mxu0 0.0
      %881 = vmatprep.subr.mxu0 0.0
      %882 = vmatpush2.msra.mxu0 0.0
      %883 = vmatprep.subr.mxu0 0.0
      %884 = vmatpush2.msra.mxu0 0.0
      %885 = vmatprep.subr.mxu0 0.0
      %886 = vmatpush2.msra.mxu0 0.0
      %887 = vmatprep.subr.mxu0 0.0
      %888 = vmatpush2.msra.mxu0 0.0
      %889 = vmatprep.subr.mxu0 0.0
      %890 = vmatpush2.msra.mxu0 0.0
      %891 = vmatprep.subr.mxu0 0.0
      %892 = vmatpush2.msra.mxu0 0.0
      %893 = vmatprep.subr.mxu0 0.0
      %894 = vmatpush2.msra.mxu0 0.0
      %895 = vmatprep.subr.mxu0 0.0
      %896 = vmatpush2.msra.mxu0 0.0
      %897 = vmatprep.subr.mxu0 0.0
      %898 = vmatpush2.msra.mxu0 0.0
      %899 = vmatprep.subr.mxu0 0.0
      %900 = vmatpush2.msra.mxu0 0.0
      %901 = vmatprep.subr.mxu0 0.0
      %902 = vmatpush2.msra.mxu0 0.0
      %903 = vmatprep.subr.mxu0 0.0
      %904 = vmatpush2.msra.mxu0 0.0
      %905 = vmatprep.mubr.f32.mxu0 0.0
      %906 = vmatmul.mubr.f32.gmra.mxu0 %v830
      %v907 = vpop.f32.mrf.mxu0
      %v908 = vadd.f32 0.0, %v907
      %v909 = vpop.f32.mrf.mxu0
      %910 = vmatprep.mubr.f32.mxu0 0.0
      %911 = vmatmul.mubr.f32.gmra.mxu0 %v833
      %v912 = vpop.f32.mrf.mxu0
      %v913 = vadd.f32 0.0, %v912
      %v914 = vpop.f32.mrf.mxu0
      %915 = vmatprep.mubr.f32.mxu0 0.0
      %916 = vmatmul.mubr.f32.gmra.mxu0 %v836
      %v917 = vpop.f32.mrf.mxu0
      %v918 = vadd.f32 0.0, %v917
      %v919 = vpop.f32.mrf.mxu0
      %920 = vmatprep.mubr.f32.mxu0 0.0
      %921 = vmatmul.mubr.f32.gmra.mxu0 %v839
      %v922 = vpop.f32.mrf.mxu0
      %v923 = vadd.f32 0.0, %v922
      %v924 = vpop.f32.mrf.mxu0
      %925 = vdwg.mxu0
      %v926 = vmul.f32 %v908, 0.001953125
      %v927 = vmul.f32 %v913, 0.001953125
      %v928 = vmul.f32 %v918, 0.001953125
      %v929 = vmul.f32 %v923, 0.001953125
      %v930 = vld [vmem:[%s6] sm:$0xff]
      %v931 = vld [vmem:[%s6 + $0x8] sm:$0xff]
      %v932 = vld [vmem:[%s6 + $0x10] sm:$0xff]
      %v933 = vld [vmem:[%s6 + $0x18] sm:$0xff]
      %v934 = vld [vmem:[%s6 + $0x20] sm:$0xff]
      %v935 = vld [vmem:[%s6 + $0x28] sm:$0xff]
      %v936 = vld [vmem:[%s6 + $0x30] sm:$0xff]
      %v937 = vld [vmem:[%s6 + $0x38] sm:$0xff]
      %vm938 = vcmask 261120
      %v940 = vsel %vm938, %v930, 0
      %v943 = vsel %vm938, %v931, 0
      %v946 = vsel %vm938, %v932, 0
      %v949 = vsel %vm938, %v933, 0
      %v952 = vsel %vm938, %v934, 0
      %v955 = vsel %vm938, %v935, 0
      %v958 = vsel %vm938, %v936, 0
      %v961 = vsel %vm938, %v937, 0
      %963 = vmatprep.subr.mxu0 0.0
      %964 = vmatpush1.msra.mxu0 0.0
      %965 = vmatprep.subr.mxu0 0.0
      %966 = vmatpush1.msra.mxu0 0.0
      %967 = vmatprep.subr.mxu0 0.0
      %968 = vmatpush1.msra.mxu0 0.0
      %969 = vmatprep.subr.mxu0 0.0
      %970 = vmatpush1.msra.mxu0 0.0
      %971 = vmatprep.subr.mxu0 0.0
      %972 = vmatpush1.msra.mxu0 0.0
      %973 = vmatprep.subr.mxu0 0.0
      %974 = vmatpush1.msra.mxu0 0.0
      %975 = vmatprep.subr.mxu0 0.0
      %976 = vmatpush1.msra.mxu0 0.0
      %977 = vmatprep.subr.mxu0 0.0
      %978 = vmatpush1.msra.mxu0 0.0
      %979 = vmatprep.subr.mxu0 0.0
      %980 = vmatpush1.msra.mxu0 0.0
      %981 = vmatprep.subr.mxu0 0.0
      %982 = vmatpush1.msra.mxu0 0.0
      %983 = vmatprep.subr.mxu0 0.0
      %984 = vmatpush1.msra.mxu0 0.0
      %985 = vmatprep.subr.mxu0 0.0
      %986 = vmatpush1.msra.mxu0 0.0
      %987 = vmatprep.subr.mxu0 0.0
      %988 = vmatpush1.msra.mxu0 %v929
      %989 = vmatprep.subr.mxu0 0.0
      %990 = vmatpush1.msra.mxu0 %v928
      %991 = vmatprep.subr.mxu0 0.0
      %992 = vmatpush1.msra.mxu0 %v927
      %993 = vmatprep.subr.mxu0 0.0
      %994 = vmatpush1.msra.mxu0 %v926
      %995 = vmatprep.subr.mxu0 0.0
      %996 = vmatpush2.msra.mxu0 0.0
      %997 = vmatprep.subr.mxu0 0.0
      %998 = vmatpush2.msra.mxu0 0.0
      %999 = vmatprep.subr.mxu0 0.0
      %1000 = vmatpush2.msra.mxu0 0.0
      %1001 = vmatprep.subr.mxu0 0.0
      %1002 = vmatpush2.msra.mxu0 0.0
      %1003 = vmatprep.subr.mxu0 0.0
      %1004 = vmatpush2.msra.mxu0 0.0
      %1005 = vmatprep.subr.mxu0 0.0
      %1006 = vmatpush2.msra.mxu0 0.0
      %1007 = vmatprep.subr.mxu0 0.0
      %1008 = vmatpush2.msra.mxu0 0.0
      %1009 = vmatprep.subr.mxu0 0.0
      %1010 = vmatpush2.msra.mxu0 0.0
      %1011 = vmatprep.subr.mxu0 0.0
      %1012 = vmatpush2.msra.mxu0 0.0
      %1013 = vmatprep.subr.mxu0 0.0
      %1014 = vmatpush2.msra.mxu0 0.0
      %1015 = vmatprep.subr.mxu0 0.0
      %1016 = vmatpush2.msra.mxu0 0.0
      %1017 = vmatprep.subr.mxu0 0.0
      %1018 = vmatpush2.msra.mxu0 0.0
      %1019 = vmatprep.subr.mxu0 0.0
      %1020 = vmatpush2.msra.mxu0 0.0
      %1021 = vmatprep.subr.mxu0 0.0
      %1022 = vmatpush2.msra.mxu0 0.0
      %1023 = vmatprep.subr.mxu0 0.0
      %1024 = vmatpush2.msra.mxu0 0.0
      %1025 = vmatprep.subr.mxu0 0.0
      %1026 = vmatpush2.msra.mxu0 0.0
      %1027 = vmatprep.mubr.f32.mxu0 0.0
      %1028 = vmatmul.mubr.f32.gmra.mxu0 %v940
      %v1029 = vpop.f32.mrf.mxu0
      %v1030 = vadd.f32 0.0, %v1029
      %v1031 = vpop.f32.mrf.mxu0
      %1032 = vmatprep.mubr.f32.mxu0 0.0
      %1033 = vmatmul.mubr.f32.gmra.mxu0 %v943
      %v1034 = vpop.f32.mrf.mxu0
      %v1035 = vadd.f32 0.0, %v1034
      %v1036 = vpop.f32.mrf.mxu0
      %1037 = vmatprep.mubr.f32.mxu0 0.0
      %1038 = vmatmul.mubr.f32.gmra.mxu0 %v946
      %v1039 = vpop.f32.mrf.mxu0
      %v1040 = vadd.f32 0.0, %v1039
      %v1041 = vpop.f32.mrf.mxu0
      %1042 = vmatprep.mubr.f32.mxu0 0.0
      %1043 = vmatmul.mubr.f32.gmra.mxu0 %v949
      %v1044 = vpop.f32.mrf.mxu0
      %v1045 = vadd.f32 0.0, %v1044
      %v1046 = vpop.f32.mrf.mxu0
      %1047 = vmatprep.mubr.f32.mxu0 0.0
      %1048 = vmatmul.mubr.f32.gmra.mxu0 %v952
      %v1049 = vpop.f32.mrf.mxu0
      %v1050 = vadd.f32 0.0, %v1049
      %v1051 = vpop.f32.mrf.mxu0
      %1052 = vmatprep.mubr.f32.mxu0 0.0
      %1053 = vmatmul.mubr.f32.gmra.mxu0 %v955
      %v1054 = vpop.f32.mrf.mxu0
      %v1055 = vadd.f32 0.0, %v1054
      %v1056 = vpop.f32.mrf.mxu0
      %1057 = vmatprep.mubr.f32.mxu0 0.0
      %1058 = vmatmul.mubr.f32.gmra.mxu0 %v958
      %v1059 = vpop.f32.mrf.mxu0
      %v1060 = vadd.f32 0.0, %v1059
      %v1061 = vpop.f32.mrf.mxu0
      %1062 = vmatprep.mubr.f32.mxu0 0.0
      %1063 = vmatmul.mubr.f32.gmra.mxu0 %v961
      %v1064 = vpop.f32.mrf.mxu0
      %v1065 = vadd.f32 0.0, %v1064
      %v1066 = vpop.f32.mrf.mxu0
      %1067 = vdwg.mxu0
      %1069 = vset.pattern.permute.xlu0 0
      %1070 = vperm.xlu0 %1069, %v1030
      %v1071 = vpop.permute.xlu0 %1070
      %1074 = vset.pattern.permute.xlu0 0
      %1075 = vperm.xlu0 %1074, %v1035
      %v1076 = vpop.permute.xlu0 %1075
      %1079 = vset.pattern.permute.xlu0 0
      %1080 = vperm.xlu0 %1079, %v1040
      %v1081 = vpop.permute.xlu0 %1080
      %1084 = vset.pattern.permute.xlu0 0
      %1085 = vperm.xlu0 %1084, %v1045
      %v1086 = vpop.permute.xlu0 %1085
      %1089 = vset.pattern.permute.xlu0 0
      %1090 = vperm.xlu0 %1089, %v1050
      %v1091 = vpop.permute.xlu0 %1090
      %1094 = vset.pattern.permute.xlu0 0
      %1095 = vperm.xlu0 %1094, %v1055
      %v1096 = vpop.permute.xlu0 %1095
      %1099 = vset.pattern.permute.xlu0 0
      %1100 = vperm.xlu0 %1099, %v1060
      %v1101 = vpop.permute.xlu0 %1100
      %1104 = vset.pattern.permute.xlu0 0
      %1105 = vperm.xlu0 %1104, %v1065
      %v1106 = vpop.permute.xlu0 %1105
      %v1108 = vsub.f32 %v768, %v1071
      %v1109 = vsub.f32 %v769, %v1071
      %v1110 = vsub.f32 %v770, %v1076
      %v1111 = vsub.f32 %v771, %v1076
      %v1112 = vsub.f32 %v772, %v1081
      %v1113 = vsub.f32 %v773, %v1081
      %v1114 = vsub.f32 %v774, %v1086
      %v1115 = vsub.f32 %v775, %v1086
      %v1116 = vsub.f32 %v776, %v1091
      %v1117 = vsub.f32 %v777, %v1091
      %v1118 = vsub.f32 %v778, %v1096
      %v1119 = vsub.f32 %v779, %v1096
      %v1120 = vsub.f32 %v780, %v1101
      %v1121 = vsub.f32 %v781, %v1101
      %v1122 = vsub.f32 %v782, %v1106
      %v1123 = vsub.f32 %v783, %v1106
      %v1124 = vmul.f32 %v1108, %v1108
      %v1125 = vmul.f32 %v1109, %v1109
      %v1126 = vmul.f32 %v1110, %v1110
      %v1127 = vmul.f32 %v1111, %v1111
      %v1128 = vmul.f32 %v1112, %v1112
      %v1129 = vmul.f32 %v1113, %v1113
      %v1130 = vmul.f32 %v1114, %v1114
      %v1131 = vmul.f32 %v1115, %v1115
      %v1132 = vmul.f32 %v1116, %v1116
      %v1133 = vmul.f32 %v1117, %v1117
      %v1134 = vmul.f32 %v1118, %v1118
      %v1135 = vmul.f32 %v1119, %v1119
      %v1136 = vmul.f32 %v1120, %v1120
      %v1137 = vmul.f32 %v1121, %v1121
      %v1138 = vmul.f32 %v1122, %v1122
      %v1139 = vmul.f32 %v1123, %v1123
      %v1140 = vadd.f32 %v1124, %v1125
      %1141 = vadd.xlane.f32.xlu0 %v1140
      %v1142 = vpop.xlane.xlu0 %1141
      %v1143 = vadd.f32 %v1126, %v1127
      %1144 = vadd.xlane.f32.xlu0 %v1143
      %v1145 = vpop.xlane.xlu0 %1144
      %v1146 = vadd.f32 %v1128, %v1129
      %1147 = vadd.xlane.f32.xlu0 %v1146
      %v1148 = vpop.xlane.xlu0 %1147
      %v1149 = vadd.f32 %v1130, %v1131
      %1150 = vadd.xlane.f32.xlu0 %v1149
      %v1151 = vpop.xlane.xlu0 %1150
      %v1152 = vadd.f32 %v1132, %v1133
      %1153 = vadd.xlane.f32.xlu0 %v1152
      %v1154 = vpop.xlane.xlu0 %1153
      %v1155 = vadd.f32 %v1134, %v1135
      %1156 = vadd.xlane.f32.xlu0 %v1155
      %v1157 = vpop.xlane.xlu0 %1156
      %v1158 = vadd.f32 %v1136, %v1137
      %1159 = vadd.xlane.f32.xlu0 %v1158
      %v1160 = vpop.xlane.xlu0 %1159
      %v1161 = vadd.f32 %v1138, %v1139
      %1162 = vadd.xlane.f32.xlu0 %v1161
      %v1163 = vpop.xlane.xlu0 %1162
      %1164 = vmatprep.subr.mxu0 0.0
      %1165 = vmatpush1.msra.mxu0 0.0
      %1166 = vmatprep.subr.mxu0 0.0
      %1167 = vmatpush1.msra.mxu0 0.0
      %1168 = vmatprep.subr.mxu0 0.0
      %1169 = vmatpush1.msra.mxu0 0.0
      %1170 = vmatprep.subr.mxu0 0.0
      %1171 = vmatpush1.msra.mxu0 0.0
      %1172 = vmatprep.subr.mxu0 0.0
      %1173 = vmatpush1.msra.mxu0 0.0
      %1174 = vmatprep.subr.mxu0 0.0
      %1175 = vmatpush1.msra.mxu0 0.0
      %1176 = vmatprep.subr.mxu0 0.0
      %1177 = vmatpush1.msra.mxu0 0.0
      %1178 = vmatprep.subr.mxu0 0.0
      %1179 = vmatpush1.msra.mxu0 0.0
      %1180 = vmatprep.subr.mxu0 0.0
      %1181 = vmatpush1.msra.mxu0 %v1163
      %1182 = vmatprep.subr.mxu0 0.0
      %1183 = vmatpush1.msra.mxu0 %v1160
      %1184 = vmatprep.subr.mxu0 0.0
      %1185 = vmatpush1.msra.mxu0 %v1157
      %1186 = vmatprep.subr.mxu0 0.0
      %1187 = vmatpush1.msra.mxu0 %v1154
      %1188 = vmatprep.subr.mxu0 0.0
      %1189 = vmatpush1.msra.mxu0 %v1151
      %1190 = vmatprep.subr.mxu0 0.0
      %1191 = vmatpush1.msra.mxu0 %v1148
      %1192 = vmatprep.subr.mxu0 0.0
      %1193 = vmatpush1.msra.mxu0 %v1145
      %1194 = vmatprep.subr.mxu0 0.0
      %1195 = vmatpush1.msra.mxu0 %v1142
      %1196 = vmatprep.subr.mxu0 0.0
      %1197 = vmatpush2.msra.mxu0 0.0
      %1198 = vmatprep.subr.mxu0 0.0
      %1199 = vmatpush2.msra.mxu0 0.0
      %1200 = vmatprep.subr.mxu0 0.0
      %1201 = vmatpush2.msra.mxu0 0.0
      %1202 = vmatprep.subr.mxu0 0.0
      %1203 = vmatpush2.msra.mxu0 0.0
      %1204 = vmatprep.subr.mxu0 0.0
      %1205 = vmatpush2.msra.mxu0 0.0
      %1206 = vmatprep.subr.mxu0 0.0
      %1207 = vmatpush2.msra.mxu0 0.0
      %1208 = vmatprep.subr.mxu0 0.0
      %1209 = vmatpush2.msra.mxu0 0.0
      %1210 = vmatprep.subr.mxu0 0.0
      %1211 = vmatpush2.msra.mxu0 0.0
      %1212 = vmatprep.subr.mxu0 0.0
      %1213 = vmatpush2.msra.mxu0 0.0
      %1214 = vmatprep.subr.mxu0 0.0
      %1215 = vmatpush2.msra.mxu0 0.0
      %1216 = vmatprep.subr.mxu0 0.0
      %1217 = vmatpush2.msra.mxu0 0.0
      %1218 = vmatprep.subr.mxu0 0.0
      %1219 = vmatpush2.msra.mxu0 0.0
      %1220 = vmatprep.subr.mxu0 0.0
      %1221 = vmatpush2.msra.mxu0 0.0
      %1222 = vmatprep.subr.mxu0 0.0
      %1223 = vmatpush2.msra.mxu0 0.0
      %1224 = vmatprep.subr.mxu0 0.0
      %1225 = vmatpush2.msra.mxu0 0.0
      %1226 = vmatprep.subr.mxu0 0.0
      %1227 = vmatpush2.msra.mxu0 0.0
      %1228 = vmatprep.mubr.f32.mxu0 0.0
      %1229 = vmatmul.mubr.f32.gmra.mxu0 %v830
      %v1230 = vpop.f32.mrf.mxu0
      %v1231 = vadd.f32 0.0, %v1230
      %v1232 = vpop.f32.mrf.mxu0
      %1233 = vmatprep.mubr.f32.mxu0 0.0
      %1234 = vmatmul.mubr.f32.gmra.mxu0 %v833
      %v1235 = vpop.f32.mrf.mxu0
      %v1236 = vadd.f32 0.0, %v1235
      %v1237 = vpop.f32.mrf.mxu0
      %1238 = vmatprep.mubr.f32.mxu0 0.0
      %1239 = vmatmul.mubr.f32.gmra.mxu0 %v836
      %v1240 = vpop.f32.mrf.mxu0
      %v1241 = vadd.f32 0.0, %v1240
      %v1242 = vpop.f32.mrf.mxu0
      %1243 = vmatprep.mubr.f32.mxu0 0.0
      %1244 = vmatmul.mubr.f32.gmra.mxu0 %v839
      %v1245 = vpop.f32.mrf.mxu0
      %v1246 = vadd.f32 0.0, %v1245
      %v1247 = vpop.f32.mrf.mxu0
      %1248 = vdwg.mxu0
      %v1249 = vmul.f32 %v1231, 0.001953125
      %v1250 = vmul.f32 %v1236, 0.001953125
      %v1251 = vmul.f32 %v1241, 0.001953125
      %v1252 = vmul.f32 %v1246, 0.001953125
      %v1253 = vadd.f32 %v1249, 1e-06
      %v1254 = vadd.f32 %v1250, 1e-06
      %v1255 = vadd.f32 %v1251, 1e-06
      %v1256 = vadd.f32 %v1252, 1e-06
      %v1257 = vrsqrt.pop %v1253
      %v1258 = vrsqrt.pop %v1254
      %v1259 = vrsqrt.pop %v1255
      %v1260 = vrsqrt.pop %v1256
      %1261 = vmatprep.subr.mxu0 0.0
      %1262 = vmatpush1.msra.mxu0 0.0
      %1263 = vmatprep.subr.mxu0 0.0
      %1264 = vmatpush1.msra.mxu0 0.0
      %1265 = vmatprep.subr.mxu0 0.0
      %1266 = vmatpush1.msra.mxu0 0.0
      %1267 = vmatprep.subr.mxu0 0.0
      %1268 = vmatpush1.msra.mxu0 0.0
      %1269 = vmatprep.subr.mxu0 0.0
      %1270 = vmatpush1.msra.mxu0 0.0
      %1271 = vmatprep.subr.mxu0 0.0
      %1272 = vmatpush1.msra.mxu0 0.0
      %1273 = vmatprep.subr.mxu0 0.0
      %1274 = vmatpush1.msra.mxu0 0.0
      %1275 = vmatprep.subr.mxu0 0.0
      %1276 = vmatpush1.msra.mxu0 0.0
      %1277 = vmatprep.subr.mxu0 0.0
      %1278 = vmatpush1.msra.mxu0 0.0
      %1279 = vmatprep.subr.mxu0 0.0
      %1280 = vmatpush1.msra.mxu0 0.0
      %1281 = vmatprep.subr.mxu0 0.0
      %1282 = vmatpush1.msra.mxu0 0.0
      %1283 = vmatprep.subr.mxu0 0.0
      %1284 = vmatpush1.msra.mxu0 0.0
      %1285 = vmatprep.subr.mxu0 0.0
      %1286 = vmatpush1.msra.mxu0 %v1260
      %1287 = vmatprep.subr.mxu0 0.0
      %1288 = vmatpush1.msra.mxu0 %v1259
      %1289 = vmatprep.subr.mxu0 0.0
      %1290 = vmatpush1.msra.mxu0 %v1258
      %1291 = vmatprep.subr.mxu0 0.0
      %1292 = vmatpush1.msra.mxu0 %v1257
      %1293 = vmatprep.subr.mxu0 0.0
      %1294 = vmatpush2.msra.mxu0 0.0
      %1295 = vmatprep.subr.mxu0 0.0
      %1296 = vmatpush2.msra.mxu0 0.0
      %1297 = vmatprep.subr.mxu0 0.0
      %1298 = vmatpush2.msra.mxu0 0.0
      %1299 = vmatprep.subr.mxu0 0.0
      %1300 = vmatpush2.msra.mxu0 0.0
      %1301 = vmatprep.subr.mxu0 0.0
      %1302 = vmatpush2.msra.mxu0 0.0
      %1303 = vmatprep.subr.mxu0 0.0
      %1304 = vmatpush2.msra.mxu0 0.0
      %1305 = vmatprep.subr.mxu0 0.0
      %1306 = vmatpush2.msra.mxu0 0.0
      %1307 = vmatprep.subr.mxu0 0.0
      %1308 = vmatpush2.msra.mxu0 0.0
      %1309 = vmatprep.subr.mxu0 0.0
      %1310 = vmatpush2.msra.mxu0 0.0
      %1311 = vmatprep.subr.mxu0 0.0
      %1312 = vmatpush2.msra.mxu0 0.0
      %1313 = vmatprep.subr.mxu0 0.0
      %1314 = vmatpush2.msra.mxu0 0.0
      %1315 = vmatprep.subr.mxu0 0.0
      %1316 = vmatpush2.msra.mxu0 0.0
      %1317 = vmatprep.subr.mxu0 0.0
      %1318 = vmatpush2.msra.mxu0 0.0
      %1319 = vmatprep.subr.mxu0 0.0
      %1320 = vmatpush2.msra.mxu0 0.0
      %1321 = vmatprep.subr.mxu0 0.0
      %1322 = vmatpush2.msra.mxu0 0.0
      %1323 = vmatprep.subr.mxu0 0.0
      %1324 = vmatpush2.msra.mxu0 0.0
      %1325 = vmatprep.mubr.f32.mxu0 0.0
      %1326 = vmatmul.mubr.f32.gmra.mxu0 %v940
      %v1327 = vpop.f32.mrf.mxu0
      %v1328 = vadd.f32 0.0, %v1327
      %v1329 = vpop.f32.mrf.mxu0
      %1330 = vmatprep.mubr.f32.mxu0 0.0
      %1331 = vmatmul.mubr.f32.gmra.mxu0 %v943
      %v1332 = vpop.f32.mrf.mxu0
      %v1333 = vadd.f32 0.0, %v1332
      %v1334 = vpop.f32.mrf.mxu0
      %1335 = vmatprep.mubr.f32.mxu0 0.0
      %1336 = vmatmul.mubr.f32.gmra.mxu0 %v946
      %v1337 = vpop.f32.mrf.mxu0
      %v1338 = vadd.f32 0.0, %v1337
      %v1339 = vpop.f32.mrf.mxu0
      %1340 = vmatprep.mubr.f32.mxu0 0.0
      %1341 = vmatmul.mubr.f32.gmra.mxu0 %v949
      %v1342 = vpop.f32.mrf.mxu0
      %v1343 = vadd.f32 0.0, %v1342
      %v1344 = vpop.f32.mrf.mxu0
      %1345 = vmatprep.mubr.f32.mxu0 0.0
      %1346 = vmatmul.mubr.f32.gmra.mxu0 %v952
      %v1347 = vpop.f32.mrf.mxu0
      %v1348 = vadd.f32 0.0, %v1347
      %v1349 = vpop.f32.mrf.mxu0
      %1350 = vmatprep.mubr.f32.mxu0 0.0
      %1351 = vmatmul.mubr.f32.gmra.mxu0 %v955
      %v1352 = vpop.f32.mrf.mxu0
      %v1353 = vadd.f32 0.0, %v1352
      %v1354 = vpop.f32.mrf.mxu0
      %1355 = vmatprep.mubr.f32.mxu0 0.0
      %1356 = vmatmul.mubr.f32.gmra.mxu0 %v958
      %v1357 = vpop.f32.mrf.mxu0
      %v1358 = vadd.f32 0.0, %v1357
      %v1359 = vpop.f32.mrf.mxu0
      %1360 = vmatprep.mubr.f32.mxu0 0.0
      %1361 = vmatmul.mubr.f32.gmra.mxu0 %v961
      %v1362 = vpop.f32.mrf.mxu0
      %v1363 = vadd.f32 0.0, %v1362
      %v1364 = vpop.f32.mrf.mxu0
      %1365 = vdwg.mxu0
      %1367 = vset.pattern.permute.xlu0 0
      %1368 = vperm.xlu0 %1367, %v1328
      %v1369 = vpop.permute.xlu0 %1368
      %1372 = vset.pattern.permute.xlu0 0
      %1373 = vperm.xlu0 %1372, %v1333
      %v1374 = vpop.permute.xlu0 %1373
      %1377 = vset.pattern.permute.xlu0 0
      %1378 = vperm.xlu0 %1377, %v1338
      %v1379 = vpop.permute.xlu0 %1378
      %1382 = vset.pattern.permute.xlu0 0
      %1383 = vperm.xlu0 %1382, %v1343
      %v1384 = vpop.permute.xlu0 %1383
      %1387 = vset.pattern.permute.xlu0 0
      %1388 = vperm.xlu0 %1387, %v1348
      %v1389 = vpop.permute.xlu0 %1388
      %1392 = vset.pattern.permute.xlu0 0
      %1393 = vperm.xlu0 %1392, %v1353
      %v1394 = vpop.permute.xlu0 %1393
      %1397 = vset.pattern.permute.xlu0 0
      %1398 = vperm.xlu0 %1397, %v1358
      %v1399 = vpop.permute.xlu0 %1398
      %1402 = vset.pattern.permute.xlu0 0
      %1403 = vperm.xlu0 %1402, %v1363
      %v1404 = vpop.permute.xlu0 %1403
      %v1406 = vmul.f32 %v1108, %v1369
      %v1407 = vmul.f32 %v1109, %v1369
      %v1408 = vmul.f32 %v1110, %v1374
      %v1409 = vmul.f32 %v1111, %v1374
      %v1410 = vmul.f32 %v1112, %v1379
      %v1411 = vmul.f32 %v1113, %v1379
      %v1412 = vmul.f32 %v1114, %v1384
      %v1413 = vmul.f32 %v1115, %v1384
      %v1414 = vmul.f32 %v1116, %v1389
      %v1415 = vmul.f32 %v1117, %v1389
      %v1416 = vmul.f32 %v1118, %v1394
      %v1417 = vmul.f32 %v1119, %v1394
      %v1418 = vmul.f32 %v1120, %v1399
      %v1419 = vmul.f32 %v1121, %v1399
      %v1420 = vmul.f32 %v1122, %v1404
      %v1421 = vmul.f32 %v1123, %v1404
      %1423 = vset.pattern.permute.xlu0 0
      %1424 = vperm.xlu0 %1423, %v784
      %v1425 = vpop.permute.xlu0 %1424
      %1428 = vset.pattern.permute.xlu0 0
      %1429 = vperm.xlu0 %1428, %v785
      %v1430 = vpop.permute.xlu0 %1429
      %1433 = vset.pattern.permute.xlu0 0
      %1434 = vperm.xlu0 %1433, %v786
      %v1435 = vpop.permute.xlu0 %1434
      %1438 = vset.pattern.permute.xlu0 0
      %1439 = vperm.xlu0 %1438, %v787
      %v1440 = vpop.permute.xlu0 %1439
      %1443 = vset.pattern.permute.xlu0 0
      %1444 = vperm.xlu0 %1443, %v788
      %v1445 = vpop.permute.xlu0 %1444
      %1448 = vset.pattern.permute.xlu0 0
      %1449 = vperm.xlu0 %1448, %v789
      %v1450 = vpop.permute.xlu0 %1449
      %1453 = vset.pattern.permute.xlu0 0
      %1454 = vperm.xlu0 %1453, %v790
      %v1455 = vpop.permute.xlu0 %1454
      %1458 = vset.pattern.permute.xlu0 0
      %1459 = vperm.xlu0 %1458, %v791
      %v1460 = vpop.permute.xlu0 %1459
      %v1462 = vmul.f32 %v1406, %v1425
      %v1463 = vmul.f32 %v1407, %v1425
      %v1464 = vmul.f32 %v1408, %v1430
      %v1465 = vmul.f32 %v1409, %v1430
      %v1466 = vmul.f32 %v1410, %v1435
      %v1467 = vmul.f32 %v1411, %v1435
      %v1468 = vmul.f32 %v1412, %v1440
      %v1469 = vmul.f32 %v1413, %v1440
      %v1470 = vmul.f32 %v1414, %v1445
      %v1471 = vmul.f32 %v1415, %v1445
      %v1472 = vmul.f32 %v1416, %v1450
      %v1473 = vmul.f32 %v1417, %v1450
      %v1474 = vmul.f32 %v1418, %v1455
      %v1475 = vmul.f32 %v1419, %v1455
      %v1476 = vmul.f32 %v1420, %v1460
      %v1477 = vmul.f32 %v1421, %v1460
      %1479 = vset.pattern.permute.xlu0 0
      %1480 = vperm.xlu0 %1479, %v792
      %v1481 = vpop.permute.xlu0 %1480
      %1484 = vset.pattern.permute.xlu0 0
      %1485 = vperm.xlu0 %1484, %v793
      %v1486 = vpop.permute.xlu0 %1485
      %1489 = vset.pattern.permute.xlu0 0
      %1490 = vperm.xlu0 %1489, %v794
      %v1491 = vpop.permute.xlu0 %1490
      %1494 = vset.pattern.permute.xlu0 0
      %1495 = vperm.xlu0 %1494, %v795
      %v1496 = vpop.permute.xlu0 %1495
      %1499 = vset.pattern.permute.xlu0 0
      %1500 = vperm.xlu0 %1499, %v796
      %v1501 = vpop.permute.xlu0 %1500
      %1504 = vset.pattern.permute.xlu0 0
      %1505 = vperm.xlu0 %1504, %v797
      %v1506 = vpop.permute.xlu0 %1505
      %1509 = vset.pattern.permute.xlu0 0
      %1510 = vperm.xlu0 %1509, %v798
      %v1511 = vpop.permute.xlu0 %1510
      %1514 = vset.pattern.permute.xlu0 0
      %1515 = vperm.xlu0 %1514, %v799
      %v1516 = vpop.permute.xlu0 %1515
      %v1518 = vadd.f32 %v1462, %v1481
      %v1519 = vadd.f32 %v1463, %v1481
      %v1520 = vadd.f32 %v1464, %v1486
      %v1521 = vadd.f32 %v1465, %v1486
      %v1522 = vadd.f32 %v1466, %v1491
      %v1523 = vadd.f32 %v1467, %v1491
      %v1524 = vadd.f32 %v1468, %v1496
      %v1525 = vadd.f32 %v1469, %v1496
      %v1526 = vadd.f32 %v1470, %v1501
      %v1527 = vadd.f32 %v1471, %v1501
      %v1528 = vadd.f32 %v1472, %v1506
      %v1529 = vadd.f32 %v1473, %v1506
      %v1530 = vadd.f32 %v1474, %v1511
      %v1531 = vadd.f32 %v1475, %v1511
      %v1532 = vadd.f32 %v1476, %v1516
      %v1533 = vadd.f32 %v1477, %v1516
      %v1534 = vxor.u32 %v1518, 2147483648
      %v1535 = vxor.u32 %v1519, 2147483648
      %v1536 = vxor.u32 %v1520, 2147483648
      %v1537 = vxor.u32 %v1521, 2147483648
      %v1538 = vxor.u32 %v1522, 2147483648
      %v1539 = vxor.u32 %v1523, 2147483648
      %v1540 = vxor.u32 %v1524, 2147483648
      %v1541 = vxor.u32 %v1525, 2147483648
      %v1542 = vxor.u32 %v1526, 2147483648
      %v1543 = vxor.u32 %v1527, 2147483648
      %v1544 = vxor.u32 %v1528, 2147483648
      %v1545 = vxor.u32 %v1529, 2147483648
      %v1546 = vxor.u32 %v1530, 2147483648
      %v1547 = vxor.u32 %v1531, 2147483648
      %v1548 = vxor.u32 %v1532, 2147483648
      %v1549 = vxor.u32 %v1533, 2147483648
      %v1550 = vmul.f32 %v1534, 1.442695
      %v1551 = vpow.pop %v1550
      %v1552 = vmul.f32 %v1535, 1.442695
      %v1553 = vpow.pop %v1552
      %v1554 = vmul.f32 %v1536, 1.442695
      %v1555 = vpow.pop %v1554
      %v1556 = vmul.f32 %v1537, 1.442695
      %v1557 = vpow.pop %v1556
      %v1558 = vmul.f32 %v1538, 1.442695
      %v1559 = vpow.pop %v1558
      %v1560 = vmul.f32 %v1539, 1.442695
      %v1561 = vpow.pop %v1560
      %v1562 = vmul.f32 %v1540, 1.442695
      %v1563 = vpow.pop %v1562
      %v1564 = vmul.f32 %v1541, 1.442695
      %v1565 = vpow.pop %v1564
      %v1566 = vmul.f32 %v1542, 1.442695
      %v1567 = vpow.pop %v1566
      %v1568 = vmul.f32 %v1543, 1.442695
      %v1569 = vpow.pop %v1568
      %v1570 = vmul.f32 %v1544, 1.442695
      %v1571 = vpow.pop %v1570
      %v1572 = vmul.f32 %v1545, 1.442695
      %v1573 = vpow.pop %v1572
      %v1574 = vmul.f32 %v1546, 1.442695
      %v1575 = vpow.pop %v1574
      %v1576 = vmul.f32 %v1547, 1.442695
      %v1577 = vpow.pop %v1576
      %v1578 = vmul.f32 %v1548, 1.442695
      %v1579 = vpow.pop %v1578
      %v1580 = vmul.f32 %v1549, 1.442695
      %v1581 = vpow.pop %v1580
      %v1582 = vadd.f32 %v1551, 1.0
      %v1583 = vadd.f32 %v1553, 1.0
      %v1584 = vadd.f32 %v1555, 1.0
      %v1585 = vadd.f32 %v1557, 1.0
      %v1586 = vadd.f32 %v1559, 1.0
      %v1587 = vadd.f32 %v1561, 1.0
      %v1588 = vadd.f32 %v1563, 1.0
      %v1589 = vadd.f32 %v1565, 1.0
      %v1590 = vadd.f32 %v1567, 1.0
      %v1591 = vadd.f32 %v1569, 1.0
      %v1592 = vadd.f32 %v1571, 1.0
      %v1593 = vadd.f32 %v1573, 1.0
      %v1594 = vadd.f32 %v1575, 1.0
      %v1595 = vadd.f32 %v1577, 1.0
      %v1596 = vadd.f32 %v1579, 1.0
      %v1597 = vadd.f32 %v1581, 1.0
      %v1598 = vrcp.pop %v1582
      %v1599 = vmul.f32 1.0, %v1598
      %v1600 = vrcp.pop %v1583
      %v1601 = vmul.f32 1.0, %v1600
      %v1602 = vrcp.pop %v1584
      %v1603 = vmul.f32 1.0, %v1602
      %v1604 = vrcp.pop %v1585
      %v1605 = vmul.f32 1.0, %v1604
      %v1606 = vrcp.pop %v1586
      %v1607 = vmul.f32 1.0, %v1606
      %v1608 = vrcp.pop %v1587
      %v1609 = vmul.f32 1.0, %v1608
      %v1610 = vrcp.pop %v1588
      %v1611 = vmul.f32 1.0, %v1610
      %v1612 = vrcp.pop %v1589
      %v1613 = vmul.f32 1.0, %v1612
      %v1614 = vrcp.pop %v1590
      %v1615 = vmul.f32 1.0, %v1614
      %v1616 = vrcp.pop %v1591
      %v1617 = vmul.f32 1.0, %v1616
      %v1618 = vrcp.pop %v1592
      %v1619 = vmul.f32 1.0, %v1618
      %v1620 = vrcp.pop %v1593
      %v1621 = vmul.f32 1.0, %v1620
      %v1622 = vrcp.pop %v1594
      %v1623 = vmul.f32 1.0, %v1622
      %v1624 = vrcp.pop %v1595
      %v1625 = vmul.f32 1.0, %v1624
      %v1626 = vrcp.pop %v1596
      %v1627 = vmul.f32 1.0, %v1626
      %v1628 = vrcp.pop %v1597
      %v1629 = vmul.f32 1.0, %v1628
      %v1630 = vmul.f32 %v1518, %v1599
      %v1631 = vmul.f32 %v1519, %v1601
      %v1632 = vmul.f32 %v1520, %v1603
      %v1633 = vmul.f32 %v1521, %v1605
      %v1634 = vmul.f32 %v1522, %v1607
      %v1635 = vmul.f32 %v1523, %v1609
      %v1636 = vmul.f32 %v1524, %v1611
      %v1637 = vmul.f32 %v1525, %v1613
      %v1638 = vmul.f32 %v1526, %v1615
      %v1639 = vmul.f32 %v1527, %v1617
      %v1640 = vmul.f32 %v1528, %v1619
      %v1641 = vmul.f32 %v1529, %v1621
      %v1642 = vmul.f32 %v1530, %v1623
      %v1643 = vmul.f32 %v1531, %v1625
      %v1644 = vmul.f32 %v1532, %v1627
      %v1645 = vmul.f32 %v1533, %v1629
      %v1646 = vpack.c.bf16 %v1632, %v1630
      %v1647 = vpack.c.bf16 %v1633, %v1631
      %v1648 = vpack.c.bf16 %v1636, %v1634
      %v1649 = vpack.c.bf16 %v1637, %v1635
      %v1650 = vpack.c.bf16 %v1640, %v1638
      %v1651 = vpack.c.bf16 %v1641, %v1639
      %v1652 = vpack.c.bf16 %v1644, %v1642
      %v1653 = vpack.c.bf16 %v1645, %v1643
      %v1655 = vpack.i.b16 %v764, %v764
      %v1657 = vlaneseq
      %v1658 = vshrl.u32 %v1657, 7
      %v1659 = vsub.s32 0, %v1658
      %v1660 = vrot.slane %v1655, %v1659
      %v1662 = vpack.i.b16 %v765, %v765
      %v1664 = vlaneseq
      %v1665 = vshrl.u32 %v1664, 7
      %v1666 = vsub.s32 0, %v1665
      %v1667 = vrot.slane %v1662, %v1666
      %1670 = vrot.lane.b32.xlu0 %v1660, 111
      %v1671 = vpop.permute.xlu0 %1670
      %1672 = vrot.lane.b32.xlu0 %v1667, 111
      %v1673 = vpop.permute.xlu0 %1672
      %vm1674 = vcmask 908288
      %v1675 = vsel %vm1674, %v1671, %v1673
      %v1679 = vmul.bf16 %v1647, %v1671
      %v1680 = vmul.bf16 %v1646, %v1675
      %v1681 = vmul.bf16 %v1647, %v1673
      %v1682 = vmul.bf16 %v1649, %v1671
      %v1683 = vmul.bf16 %v1648, %v1675
      %v1684 = vmul.bf16 %v1649, %v1673
      %v1685 = vmul.bf16 %v1651, %v1671
      %v1686 = vmul.bf16 %v1650, %v1675
      %v1687 = vmul.bf16 %v1651, %v1673
      %v1688 = vmul.bf16 %v1653, %v1671
      %v1689 = vmul.bf16 %v1652, %v1675
      %v1690 = vmul.bf16 %v1653, %v1673
      %v1691 = vshrl.u32 %v764, 16
      %v1692 = vpack.i.b16 %v1691, %v1691
      %v1694 = vlaneseq
      %v1695 = vshrl.u32 %v1694, 7
      %v1696 = vsub.s32 0, %v1695
      %v1697 = vrot.slane %v1692, %v1696
      %v1698 = vshrl.u32 %v765, 16
      %v1699 = vpack.i.b16 %v1698, %v1698
      %v1701 = vlaneseq
      %v1702 = vshrl.u32 %v1701, 7
      %v1703 = vsub.s32 0, %v1702
      %v1704 = vrot.slane %v1699, %v1703
      %1707 = vrot.lane.b32.xlu0 %v1697, 112
      %v1708 = vpop.permute.xlu0 %1707
      %1709 = vrot.lane.b32.xlu0 %v1704, 112
      %v1710 = vpop.permute.xlu0 %1709
      %vm1711 = vcmask 916480
      %v1712 = vsel %vm1711, %v1708, %v1710
      %v1716 = vmul.bf16 %v1647, %v1708
      %v1717 = vmul.bf16 %v1646, %v1712
      %v1718 = vmul.bf16 %v1647, %v1710
      %v1719 = vmul.bf16 %v1649, %v1708
      %v1720 = vmul.bf16 %v1648, %v1712
      %v1721 = vmul.bf16 %v1649, %v1710
      %v1722 = vmul.bf16 %v1651, %v1708
      %v1723 = vmul.bf16 %v1650, %v1712
      %v1724 = vmul.bf16 %v1651, %v1710
      %v1725 = vmul.bf16 %v1653, %v1708
      %v1726 = vmul.bf16 %v1652, %v1712
      %v1727 = vmul.bf16 %v1653, %v1710
      %v1728 = vlaneseq
      %v1729 = vshrl.u32 %v1728, 7
      %v1730 = vsub.s32 1, %v1729
      %v1731 = vrot.slane %v1655, %v1730
      %v1732 = vlaneseq
      %v1733 = vshrl.u32 %v1732, 7
      %v1734 = vsub.s32 1, %v1733
      %v1735 = vrot.slane %v1662, %v1734
      %1738 = vrot.lane.b32.xlu0 %v1731, 113
      %v1739 = vpop.permute.xlu0 %1738
      %1740 = vrot.lane.b32.xlu0 %v1735, 113
      %v1741 = vpop.permute.xlu0 %1740
      %vm1742 = vcmask 924672
      %v1743 = vsel %vm1742, %v1739, %v1741
      %v1747 = vmul.bf16 %v1647, %v1739
      %v1748 = vmul.bf16 %v1646, %v1743
      %v1749 = vmul.bf16 %v1647, %v1741
      %v1750 = vmul.bf16 %v1649, %v1739
      %v1751 = vmul.bf16 %v1648, %v1743
      %v1752 = vmul.bf16 %v1649, %v1741
      %v1753 = vmul.bf16 %v1651, %v1739
      %v1754 = vmul.bf16 %v1650, %v1743
      %v1755 = vmul.bf16 %v1651, %v1741
      %v1756 = vmul.bf16 %v1653, %v1739
      %v1757 = vmul.bf16 %v1652, %v1743
      %v1758 = vmul.bf16 %v1653, %v1741
      %v1759 = vlaneseq
      %v1760 = vshrl.u32 %v1759, 7
      %v1761 = vsub.s32 1, %v1760
      %v1762 = vrot.slane %v1692, %v1761
      %v1763 = vlaneseq
      %v1764 = vshrl.u32 %v1763, 7
      %v1765 = vsub.s32 1, %v1764
      %v1766 = vrot.slane %v1699, %v1765
      %1769 = vrot.lane.b32.xlu0 %v1762, 127
      %v1770 = vpop.permute.xlu0 %1769
      %1771 = vrot.lane.b32.xlu0 %v1766, 127
      %v1772 = vpop.permute.xlu0 %1771
      %vm1773 = vcmask 1039360
      %v1774 = vsel %vm1773, %v1770, %v1772
      %v1778 = vmul.bf16 %v1647, %v1770
      %v1779 = vmul.bf16 %v1646, %v1774
      %v1780 = vmul.bf16 %v1647, %v1772
      %v1781 = vmul.bf16 %v1649, %v1770
      %v1782 = vmul.bf16 %v1648, %v1774
      %v1783 = vmul.bf16 %v1649, %v1772
      %v1784 = vmul.bf16 %v1651, %v1770
      %v1785 = vmul.bf16 %v1650, %v1774
      %v1786 = vmul.bf16 %v1651, %v1772
      %v1787 = vmul.bf16 %v1653, %v1770
      %v1788 = vmul.bf16 %v1652, %v1774
      %v1789 = vmul.bf16 %v1653, %v1772
      %v1790 = vlaneseq
      %v1791 = vshrl.u32 %v1790, 7
      %v1792 = vsub.s32 2, %v1791
      %v1793 = vrot.slane %v1692, %v1792
      %v1794 = vlaneseq
      %v1795 = vshrl.u32 %v1794, 7
      %v1796 = vsub.s32 2, %v1795
      %v1797 = vrot.slane %v1699, %v1796
      %1800 = vrot.lane.b32.xlu0 %v1793, 1
      %v1801 = vpop.permute.xlu0 %1800
      %1802 = vrot.lane.b32.xlu0 %v1797, 1
      %v1803 = vpop.permute.xlu0 %1802
      %vm1804 = vcmask 7168
      %v1805 = vsel %vm1804, %v1801, %v1803
      %v1809 = vmul.bf16 %v1646, %v1801
      %v1810 = vmul.bf16 %v1647, %v1805
      %v1811 = vmul.bf16 %v1646, %v1803
      %v1812 = vmul.bf16 %v1648, %v1801
      %v1813 = vmul.bf16 %v1649, %v1805
      %v1814 = vmul.bf16 %v1648, %v1803
      %v1815 = vmul.bf16 %v1650, %v1801
      %v1816 = vmul.bf16 %v1651, %v1805
      %v1817 = vmul.bf16 %v1650, %v1803
      %v1818 = vmul.bf16 %v1652, %v1801
      %v1819 = vmul.bf16 %v1653, %v1805
      %v1820 = vmul.bf16 %v1652, %v1803
      %v1821 = vlaneseq
      %v1822 = vshrl.u32 %v1821, 7
      %v1823 = vsub.s32 3, %v1822
      %v1824 = vrot.slane %v1655, %v1823
      %v1825 = vlaneseq
      %v1826 = vshrl.u32 %v1825, 7
      %v1827 = vsub.s32 3, %v1826
      %v1828 = vrot.slane %v1662, %v1827
      %1831 = vrot.lane.b32.xlu0 %v1824, 15
      %v1832 = vpop.permute.xlu0 %1831
      %1833 = vrot.lane.b32.xlu0 %v1828, 15
      %v1834 = vpop.permute.xlu0 %1833
      %vm1835 = vcmask 121856
      %v1836 = vsel %vm1835, %v1832, %v1834
      %v1840 = vmul.bf16 %v1646, %v1832
      %v1841 = vmul.bf16 %v1647, %v1836
      %v1842 = vmul.bf16 %v1646, %v1834
      %v1843 = vmul.bf16 %v1648, %v1832
      %v1844 = vmul.bf16 %v1649, %v1836
      %v1845 = vmul.bf16 %v1648, %v1834
      %v1846 = vmul.bf16 %v1650, %v1832
      %v1847 = vmul.bf16 %v1651, %v1836
      %v1848 = vmul.bf16 %v1650, %v1834
      %v1849 = vmul.bf16 %v1652, %v1832
      %v1850 = vmul.bf16 %v1653, %v1836
      %v1851 = vmul.bf16 %v1652, %v1834
      %v1852 = vlaneseq
      %v1853 = vshrl.u32 %v1852, 7
      %v1854 = vsub.s32 3, %v1853
      %v1855 = vrot.slane %v1692, %v1854
      %v1856 = vlaneseq
      %v1857 = vshrl.u32 %v1856, 7
      %v1858 = vsub.s32 3, %v1857
      %v1859 = vrot.slane %v1699, %v1858
      %1862 = vrot.lane.b32.xlu0 %v1855, 16
      %v1863 = vpop.permute.xlu0 %1862
      %1864 = vrot.lane.b32.xlu0 %v1859, 16
      %v1865 = vpop.permute.xlu0 %1864
      %vm1866 = vcmask 130048
      %v1867 = vsel %vm1866, %v1863, %v1865
      %v1871 = vmul.bf16 %v1646, %v1863
      %v1872 = vmul.bf16 %v1647, %v1867
      %v1873 = vmul.bf16 %v1646, %v1865
      %v1874 = vmul.bf16 %v1648, %v1863
      %v1875 = vmul.bf16 %v1649, %v1867
      %v1876 = vmul.bf16 %v1648, %v1865
      %v1877 = vmul.bf16 %v1650, %v1863
      %v1878 = vmul.bf16 %v1651, %v1867
      %v1879 = vmul.bf16 %v1650, %v1865
      %v1880 = vmul.bf16 %v1652, %v1863
      %v1881 = vmul.bf16 %v1653, %v1867
      %v1882 = vmul.bf16 %v1652, %v1865
      %v1884 = vpack.i.b16 %v766, %v766
      %v1886 = vlaneseq
      %v1887 = vshrl.u32 %v1886, 7
      %v1888 = vsub.s32 0, %v1887
      %v1889 = vrot.slane %v1884, %v1888
      %v1891 = vpack.i.b16 %v767, %v767
      %v1893 = vlaneseq
      %v1894 = vshrl.u32 %v1893, 7
      %v1895 = vsub.s32 0, %v1894
      %v1896 = vrot.slane %v1891, %v1895
      %1899 = vrot.lane.b32.xlu0 %v1889, 17
      %v1900 = vpop.permute.xlu0 %1899
      %1901 = vrot.lane.b32.xlu0 %v1896, 17
      %v1902 = vpop.permute.xlu0 %1901
      %vm1903 = vcmask 138240
      %v1904 = vsel %vm1903, %v1900, %v1902
      %v1908 = vmul.bf16 %v1646, %v1900
      %v1909 = vmul.bf16 %v1647, %v1904
      %v1910 = vmul.bf16 %v1646, %v1902
      %v1911 = vmul.bf16 %v1648, %v1900
      %v1912 = vmul.bf16 %v1649, %v1904
      %v1913 = vmul.bf16 %v1648, %v1902
      %v1914 = vmul.bf16 %v1650, %v1900
      %v1915 = vmul.bf16 %v1651, %v1904
      %v1916 = vmul.bf16 %v1650, %v1902
      %v1917 = vmul.bf16 %v1652, %v1900
      %v1918 = vmul.bf16 %v1653, %v1904
      %v1919 = vmul.bf16 %v1652, %v1902
      %1932 = vrot.lane.b32.xlu0 %v1716, 127
      %v1933 = vpop.permute.xlu0 %1932
      %1934 = vrot.lane.b32.xlu0 %v1717, 127
      %v1935 = vpop.permute.xlu0 %1934
      %1936 = vrot.lane.b32.xlu0 %v1718, 127
      %v1937 = vpop.permute.xlu0 %1936
      %1938 = vrot.lane.b32.xlu0 %v1719, 127
      %v1939 = vpop.permute.xlu0 %1938
      %1940 = vrot.lane.b32.xlu0 %v1720, 127
      %v1941 = vpop.permute.xlu0 %1940
      %1942 = vrot.lane.b32.xlu0 %v1721, 127
      %v1943 = vpop.permute.xlu0 %1942
      %1944 = vrot.lane.b32.xlu0 %v1722, 127
      %v1945 = vpop.permute.xlu0 %1944
      %1946 = vrot.lane.b32.xlu0 %v1723, 127
      %v1947 = vpop.permute.xlu0 %1946
      %1948 = vrot.lane.b32.xlu0 %v1724, 127
      %v1949 = vpop.permute.xlu0 %1948
      %1950 = vrot.lane.b32.xlu0 %v1725, 127
      %v1951 = vpop.permute.xlu0 %1950
      %1952 = vrot.lane.b32.xlu0 %v1726, 127
      %v1953 = vpop.permute.xlu0 %1952
      %1954 = vrot.lane.b32.xlu0 %v1727, 127
      %v1955 = vpop.permute.xlu0 %1954
      %v1956 = vsel %vm1773, %v1933, %v1935
      %v1957 = vsel %vm1773, %v1935, %v1937
      %v1958 = vsel %vm1773, %v1939, %v1941
      %v1959 = vsel %vm1773, %v1941, %v1943
      %v1960 = vsel %vm1773, %v1945, %v1947
      %v1961 = vsel %vm1773, %v1947, %v1949
      %v1962 = vsel %vm1773, %v1951, %v1953
      %v1963 = vsel %vm1773, %v1953, %v1955
      %1976 = vrot.lane.b32.xlu0 %v1747, 126
      %v1977 = vpop.permute.xlu0 %1976
      %1978 = vrot.lane.b32.xlu0 %v1748, 126
      %v1979 = vpop.permute.xlu0 %1978
      %1980 = vrot.lane.b32.xlu0 %v1749, 126
      %v1981 = vpop.permute.xlu0 %1980
      %1982 = vrot.lane.b32.xlu0 %v1750, 126
      %v1983 = vpop.permute.xlu0 %1982
      %1984 = vrot.lane.b32.xlu0 %v1751, 126
      %v1985 = vpop.permute.xlu0 %1984
      %1986 = vrot.lane.b32.xlu0 %v1752, 126
      %v1987 = vpop.permute.xlu0 %1986
      %1988 = vrot.lane.b32.xlu0 %v1753, 126
      %v1989 = vpop.permute.xlu0 %1988
      %1990 = vrot.lane.b32.xlu0 %v1754, 126
      %v1991 = vpop.permute.xlu0 %1990
      %1992 = vrot.lane.b32.xlu0 %v1755, 126
      %v1993 = vpop.permute.xlu0 %1992
      %1994 = vrot.lane.b32.xlu0 %v1756, 126
      %v1995 = vpop.permute.xlu0 %1994
      %1996 = vrot.lane.b32.xlu0 %v1757, 126
      %v1997 = vpop.permute.xlu0 %1996
      %1998 = vrot.lane.b32.xlu0 %v1758, 126
      %v1999 = vpop.permute.xlu0 %1998
      %vm2000 = vcmask 1031168
      %v2001 = vsel %vm2000, %v1977, %v1979
      %v2002 = vsel %vm2000, %v1979, %v1981
      %v2003 = vsel %vm2000, %v1983, %v1985
      %v2004 = vsel %vm2000, %v1985, %v1987
      %v2005 = vsel %vm2000, %v1989, %v1991
      %v2006 = vsel %vm2000, %v1991, %v1993
      %v2007 = vsel %vm2000, %v1995, %v1997
      %v2008 = vsel %vm2000, %v1997, %v1999
      %2021 = vrot.lane.b32.xlu0 %v1778, 112
      %v2022 = vpop.permute.xlu0 %2021
      %2023 = vrot.lane.b32.xlu0 %v1779, 112
      %v2024 = vpop.permute.xlu0 %2023
      %2025 = vrot.lane.b32.xlu0 %v1780, 112
      %v2026 = vpop.permute.xlu0 %2025
      %2027 = vrot.lane.b32.xlu0 %v1781, 112
      %v2028 = vpop.permute.xlu0 %2027
      %2029 = vrot.lane.b32.xlu0 %v1782, 112
      %v2030 = vpop.permute.xlu0 %2029
      %2031 = vrot.lane.b32.xlu0 %v1783, 112
      %v2032 = vpop.permute.xlu0 %2031
      %2033 = vrot.lane.b32.xlu0 %v1784, 112
      %v2034 = vpop.permute.xlu0 %2033
      %2035 = vrot.lane.b32.xlu0 %v1785, 112
      %v2036 = vpop.permute.xlu0 %2035
      %2037 = vrot.lane.b32.xlu0 %v1786, 112
      %v2038 = vpop.permute.xlu0 %2037
      %2039 = vrot.lane.b32.xlu0 %v1787, 112
      %v2040 = vpop.permute.xlu0 %2039
      %2041 = vrot.lane.b32.xlu0 %v1788, 112
      %v2042 = vpop.permute.xlu0 %2041
      %2043 = vrot.lane.b32.xlu0 %v1789, 112
      %v2044 = vpop.permute.xlu0 %2043
      %v2045 = vsel %vm1711, %v2022, %v2024
      %v2046 = vsel %vm1711, %v2024, %v2026
      %v2047 = vsel %vm1711, %v2028, %v2030
      %v2048 = vsel %vm1711, %v2030, %v2032
      %v2049 = vsel %vm1711, %v2034, %v2036
      %v2050 = vsel %vm1711, %v2036, %v2038
      %v2051 = vsel %vm1711, %v2040, %v2042
      %v2052 = vsel %vm1711, %v2042, %v2044
      %2061 = vrot.lane.b32.xlu0 %v1646, 111
      %v2062 = vpop.permute.xlu0 %2061
      %2063 = vrot.lane.b32.xlu0 %v1647, 111
      %v2064 = vpop.permute.xlu0 %2063
      %2065 = vrot.lane.b32.xlu0 %v1648, 111
      %v2066 = vpop.permute.xlu0 %2065
      %2067 = vrot.lane.b32.xlu0 %v1649, 111
      %v2068 = vpop.permute.xlu0 %2067
      %2069 = vrot.lane.b32.xlu0 %v1650, 111
      %v2070 = vpop.permute.xlu0 %2069
      %2071 = vrot.lane.b32.xlu0 %v1651, 111
      %v2072 = vpop.permute.xlu0 %2071
      %2073 = vrot.lane.b32.xlu0 %v1652, 111
      %v2074 = vpop.permute.xlu0 %2073
      %2075 = vrot.lane.b32.xlu0 %v1653, 111
      %v2076 = vpop.permute.xlu0 %2075
      %v2077 = vsel %vm1674, %v2062, %v2064
      %v2078 = vsel %vm1674, %v2066, %v2068
      %v2079 = vsel %vm1674, %v2070, %v2072
      %v2080 = vsel %vm1674, %v2074, %v2076
      %2093 = vrot.lane.b32.xlu0 %v1809, 110
      %v2094 = vpop.permute.xlu0 %2093
      %2095 = vrot.lane.b32.xlu0 %v1810, 110
      %v2096 = vpop.permute.xlu0 %2095
      %2097 = vrot.lane.b32.xlu0 %v1811, 110
      %v2098 = vpop.permute.xlu0 %2097
      %2099 = vrot.lane.b32.xlu0 %v1812, 110
      %v2100 = vpop.permute.xlu0 %2099
      %2101 = vrot.lane.b32.xlu0 %v1813, 110
      %v2102 = vpop.permute.xlu0 %2101
      %2103 = vrot.lane.b32.xlu0 %v1814, 110
      %v2104 = vpop.permute.xlu0 %2103
      %2105 = vrot.lane.b32.xlu0 %v1815, 110
      %v2106 = vpop.permute.xlu0 %2105
      %2107 = vrot.lane.b32.xlu0 %v1816, 110
      %v2108 = vpop.permute.xlu0 %2107
      %2109 = vrot.lane.b32.xlu0 %v1817, 110
      %v2110 = vpop.permute.xlu0 %2109
      %2111 = vrot.lane.b32.xlu0 %v1818, 110
      %v2112 = vpop.permute.xlu0 %2111
      %2113 = vrot.lane.b32.xlu0 %v1819, 110
      %v2114 = vpop.permute.xlu0 %2113
      %2115 = vrot.lane.b32.xlu0 %v1820, 110
      %v2116 = vpop.permute.xlu0 %2115
      %vm2117 = vcmask 900096
      %v2118 = vsel %vm2117, %v2094, %v2096
      %v2119 = vsel %vm2117, %v2096, %v2098
      %v2120 = vsel %vm2117, %v2100, %v2102
      %v2121 = vsel %vm2117, %v2102, %v2104
      %v2122 = vsel %vm2117, %v2106, %v2108
      %v2123 = vsel %vm2117, %v2108, %v2110
      %v2124 = vsel %vm2117, %v2112, %v2114
      %v2125 = vsel %vm2117, %v2114, %v2116
      %2138 = vrot.lane.b32.xlu0 %v1840, 96
      %v2139 = vpop.permute.xlu0 %2138
      %2140 = vrot.lane.b32.xlu0 %v1841, 96
      %v2141 = vpop.permute.xlu0 %2140
      %2142 = vrot.lane.b32.xlu0 %v1842, 96
      %v2143 = vpop.permute.xlu0 %2142
      %2144 = vrot.lane.b32.xlu0 %v1843, 96
      %v2145 = vpop.permute.xlu0 %2144
      %2146 = vrot.lane.b32.xlu0 %v1844, 96
      %v2147 = vpop.permute.xlu0 %2146
      %2148 = vrot.lane.b32.xlu0 %v1845, 96
      %v2149 = vpop.permute.xlu0 %2148
      %2150 = vrot.lane.b32.xlu0 %v1846, 96
      %v2151 = vpop.permute.xlu0 %2150
      %2152 = vrot.lane.b32.xlu0 %v1847, 96
      %v2153 = vpop.permute.xlu0 %2152
      %2154 = vrot.lane.b32.xlu0 %v1848, 96
      %v2155 = vpop.permute.xlu0 %2154
      %2156 = vrot.lane.b32.xlu0 %v1849, 96
      %v2157 = vpop.permute.xlu0 %2156
      %2158 = vrot.lane.b32.xlu0 %v1850, 96
      %v2159 = vpop.permute.xlu0 %2158
      %2160 = vrot.lane.b32.xlu0 %v1851, 96
      %v2161 = vpop.permute.xlu0 %2160
      %vm2162 = vcmask 785408
      %v2163 = vsel %vm2162, %v2139, %v2141
      %v2164 = vsel %vm2162, %v2141, %v2143
      %v2165 = vsel %vm2162, %v2145, %v2147
      %v2166 = vsel %vm2162, %v2147, %v2149
      %v2167 = vsel %vm2162, %v2151, %v2153
      %v2168 = vsel %vm2162, %v2153, %v2155
      %v2169 = vsel %vm2162, %v2157, %v2159
      %v2170 = vsel %vm2162, %v2159, %v2161
      %2183 = vrot.lane.b32.xlu0 %v1871, 95
      %v2184 = vpop.permute.xlu0 %2183
      %2185 = vrot.lane.b32.xlu0 %v1872, 95
      %v2186 = vpop.permute.xlu0 %2185
      %2187 = vrot.lane.b32.xlu0 %v1873, 95
      %v2188 = vpop.permute.xlu0 %2187
      %2189 = vrot.lane.b32.xlu0 %v1874, 95
      %v2190 = vpop.permute.xlu0 %2189
      %2191 = vrot.lane.b32.xlu0 %v1875, 95
      %v2192 = vpop.permute.xlu0 %2191
      %2193 = vrot.lane.b32.xlu0 %v1876, 95
      %v2194 = vpop.permute.xlu0 %2193
      %2195 = vrot.lane.b32.xlu0 %v1877, 95
      %v2196 = vpop.permute.xlu0 %2195
      %2197 = vrot.lane.b32.xlu0 %v1878, 95
      %v2198 = vpop.permute.xlu0 %2197
      %2199 = vrot.lane.b32.xlu0 %v1879, 95
      %v2200 = vpop.permute.xlu0 %2199
      %2201 = vrot.lane.b32.xlu0 %v1880, 95
      %v2202 = vpop.permute.xlu0 %2201
      %2203 = vrot.lane.b32.xlu0 %v1881, 95
      %v2204 = vpop.permute.xlu0 %2203
      %2205 = vrot.lane.b32.xlu0 %v1882, 95
      %v2206 = vpop.permute.xlu0 %2205
      %vm2207 = vcmask 777216
      %v2208 = vsel %vm2207, %v2184, %v2186
      %v2209 = vsel %vm2207, %v2186, %v2188
      %v2210 = vsel %vm2207, %v2190, %v2192
      %v2211 = vsel %vm2207, %v2192, %v2194
      %v2212 = vsel %vm2207, %v2196, %v2198
      %v2213 = vsel %vm2207, %v2198, %v2200
      %v2214 = vsel %vm2207, %v2202, %v2204
      %v2215 = vsel %vm2207, %v2204, %v2206
      %2228 = vrot.lane.b32.xlu0 %v1908, 94
      %v2229 = vpop.permute.xlu0 %2228
      %2230 = vrot.lane.b32.xlu0 %v1909, 94
      %v2231 = vpop.permute.xlu0 %2230
      %2232 = vrot.lane.b32.xlu0 %v1910, 94
      %v2233 = vpop.permute.xlu0 %2232
      %2234 = vrot.lane.b32.xlu0 %v1911, 94
      %v2235 = vpop.permute.xlu0 %2234
      %2236 = vrot.lane.b32.xlu0 %v1912, 94
      %v2237 = vpop.permute.xlu0 %2236
      %2238 = vrot.lane.b32.xlu0 %v1913, 94
      %v2239 = vpop.permute.xlu0 %2238
      %2240 = vrot.lane.b32.xlu0 %v1914, 94
      %v2241 = vpop.permute.xlu0 %2240
      %2242 = vrot.lane.b32.xlu0 %v1915, 94
      %v2243 = vpop.permute.xlu0 %2242
      %2244 = vrot.lane.b32.xlu0 %v1916, 94
      %v2245 = vpop.permute.xlu0 %2244
      %2246 = vrot.lane.b32.xlu0 %v1917, 94
      %v2247 = vpop.permute.xlu0 %2246
      %2248 = vrot.lane.b32.xlu0 %v1918, 94
      %v2249 = vpop.permute.xlu0 %2248
      %2250 = vrot.lane.b32.xlu0 %v1919, 94
      %v2251 = vpop.permute.xlu0 %2250
      %vm2252 = vcmask 769024
      %v2253 = vsel %vm2252, %v2229, %v2231
      %v2254 = vsel %vm2252, %v2231, %v2233
      %v2255 = vsel %vm2252, %v2235, %v2237
      %v2256 = vsel %vm2252, %v2237, %v2239
      %v2257 = vsel %vm2252, %v2241, %v2243
      %v2258 = vsel %vm2252, %v2243, %v2245
      %v2259 = vsel %vm2252, %v2247, %v2249
      %v2260 = vsel %vm2252, %v2249, %v2251
      %v2261 = vld [vmem:[%s7] sm:$0xff]
      %v2262 = vld [vmem:[%s7 + $0x8] sm:$0xff]
      %v2263 = vld [vmem:[%s7 + $0x10] sm:$0xf]
      %v2264 = vld [vmem:[%s7 + $0x14] sm:$0xff]
      %v2265 = vld [vmem:[%s7 + $0x1c] sm:$0xff]
      %v2266 = vld [vmem:[%s7 + $0x24] sm:$0xf]
      %v2267 = vld [vmem:[%s7 + $0x28] sm:$0xff]
      %v2268 = vld [vmem:[%s7 + $0x30] sm:$0xff]
      %v2269 = vld [vmem:[%s7 + $0x38] sm:$0xf]
      %v2270 = vld [vmem:[%s7 + $0x3c] sm:$0xff]
      %v2271 = vld [vmem:[%s7 + $0x44] sm:$0xff]
      %v2272 = vld [vmem:[%s7 + $0x4c] sm:$0xf]
      %v2273 = vld [vmem:[%s8] sm:$0xff]
      %v2274 = vld [vmem:[%s8 + $0x8] sm:$0xff]
      %v2275 = vld [vmem:[%s8 + $0x10] sm:$0xff]
      %v2276 = vld [vmem:[%s8 + $0x18] sm:$0xff]
      %2278 = vset.pattern.permute.xlu0 0
      %2279 = vperm.xlu0 %2278, %v2273
      %v2280 = vpop.permute.xlu0 %2279
      %2283 = vset.pattern.permute.xlu0 0
      %2284 = vperm.xlu0 %2283, %v2274
      %v2285 = vpop.permute.xlu0 %2284
      %2288 = vset.pattern.permute.xlu0 0
      %2289 = vperm.xlu0 %2288, %v2275
      %v2290 = vpop.permute.xlu0 %2289
      %2293 = vset.pattern.permute.xlu0 0
      %2294 = vperm.xlu0 %2293, %v2276
      %v2295 = vpop.permute.xlu0 %2294
      %v2309 = vunpack.c.l.b16 %v2261
      %v2310 = vunpack.c.h.b16 %v2261
      %v2311 = vunpack.c.l.b16 %v2262
      %v2312 = vunpack.c.h.b16 %v2262
      %v2313 = vunpack.c.l.b16 %v2263
      %v2314 = vunpack.c.l.b16 %v2264
      %v2315 = vunpack.c.h.b16 %v2264
      %v2316 = vunpack.c.l.b16 %v2265
      %v2317 = vunpack.c.h.b16 %v2265
      %v2318 = vunpack.c.l.b16 %v2266
      %v2319 = vunpack.c.l.b16 %v2267
      %v2320 = vunpack.c.h.b16 %v2267
      %v2321 = vunpack.c.l.b16 %v2268
      %v2322 = vunpack.c.h.b16 %v2268
      %v2323 = vunpack.c.l.b16 %v2269
      %v2324 = vunpack.c.l.b16 %v2270
      %v2325 = vunpack.c.h.b16 %v2270
      %v2326 = vunpack.c.l.b16 %v2271
      %v2327 = vunpack.c.h.b16 %v2271
      %v2328 = vunpack.c.l.b16 %v2272
      %v2329 = vpack.c.b16 %v2314, %v2309
      %v2330 = vpack.c.b16 %v2315, %v2310
      %v2331 = vpack.c.b16 %v2316, %v2311
      %v2332 = vpack.c.b16 %v2317, %v2312
      %v2333 = vpack.c.b16 %v2318, %v2313
      %v2334 = vpack.c.b16 %v2324, %v2319
      %v2335 = vpack.c.b16 %v2325, %v2320
      %v2336 = vpack.c.b16 %v2326, %v2321
      %v2337 = vpack.c.b16 %v2327, %v2322
      %v2338 = vpack.c.b16 %v2328, %v2323
      %2359 = vrot.lane.b32.xlu0 %v1679, 17
      %v2360 = vpop.permute.xlu0 %2359
      %2361 = vrot.lane.b32.xlu0 %v1680, 17
      %v2362 = vpop.permute.xlu0 %2361
      %2363 = vrot.lane.b32.xlu0 %v1681, 17
      %v2364 = vpop.permute.xlu0 %2363
      %2365 = vrot.lane.b32.xlu0 %v1682, 17
      %v2366 = vpop.permute.xlu0 %2365
      %2367 = vrot.lane.b32.xlu0 %v1683, 17
      %v2368 = vpop.permute.xlu0 %2367
      %2369 = vrot.lane.b32.xlu0 %v1684, 17
      %v2370 = vpop.permute.xlu0 %2369
      %2371 = vrot.lane.b32.xlu0 %v1685, 17
      %v2372 = vpop.permute.xlu0 %2371
      %2373 = vrot.lane.b32.xlu0 %v1686, 17
      %v2374 = vpop.permute.xlu0 %2373
      %2375 = vrot.lane.b32.xlu0 %v1687, 17
      %v2376 = vpop.permute.xlu0 %2375
      %2377 = vrot.lane.b32.xlu0 %v1688, 17
      %v2378 = vpop.permute.xlu0 %2377
      %2379 = vrot.lane.b32.xlu0 %v1689, 17
      %v2380 = vpop.permute.xlu0 %2379
      %2381 = vrot.lane.b32.xlu0 %v1690, 17
      %v2382 = vpop.permute.xlu0 %2381
      %2383 = vrot.lane.b32.xlu0 %v1956, 17
      %v2384 = vpop.permute.xlu0 %2383
      %2385 = vrot.lane.b32.xlu0 %v1957, 17
      %v2386 = vpop.permute.xlu0 %2385
      %2387 = vrot.lane.b32.xlu0 %v1937, 17
      %v2388 = vpop.permute.xlu0 %2387
      %2389 = vrot.lane.b32.xlu0 %v1958, 17
      %v2390 = vpop.permute.xlu0 %2389
      %2391 = vrot.lane.b32.xlu0 %v1959, 17
      %v2392 = vpop.permute.xlu0 %2391
      %2393 = vrot.lane.b32.xlu0 %v1943, 17
      %v2394 = vpop.permute.xlu0 %2393
      %2395 = vrot.lane.b32.xlu0 %v1960, 17
      %v2396 = vpop.permute.xlu0 %2395
      %2397 = vrot.lane.b32.xlu0 %v1961, 17
      %v2398 = vpop.permute.xlu0 %2397
      %2399 = vrot.lane.b32.xlu0 %v1949, 17
      %v2400 = vpop.permute.xlu0 %2399
      %2401 = vrot.lane.b32.xlu0 %v1962, 17
      %v2402 = vpop.permute.xlu0 %2401
      %2403 = vrot.lane.b32.xlu0 %v1963, 17
      %v2404 = vpop.permute.xlu0 %2403
      %2405 = vrot.lane.b32.xlu0 %v1955, 17
      %v2406 = vpop.permute.xlu0 %2405
      %2407 = vrot.lane.b32.xlu0 %v2001, 17
      %v2408 = vpop.permute.xlu0 %2407
      %2409 = vrot.lane.b32.xlu0 %v2002, 17
      %v2410 = vpop.permute.xlu0 %2409
      %2411 = vrot.lane.b32.xlu0 %v1981, 17
      %v2412 = vpop.permute.xlu0 %2411
      %2413 = vrot.lane.b32.xlu0 %v2003, 17
      %v2414 = vpop.permute.xlu0 %2413
      %2415 = vrot.lane.b32.xlu0 %v2004, 17
      %v2416 = vpop.permute.xlu0 %2415
      %2417 = vrot.lane.b32.xlu0 %v1987, 17
      %v2418 = vpop.permute.xlu0 %2417
      %2419 = vrot.lane.b32.xlu0 %v2005, 17
      %v2420 = vpop.permute.xlu0 %2419
      %2421 = vrot.lane.b32.xlu0 %v2006, 17
      %v2422 = vpop.permute.xlu0 %2421
      %2423 = vrot.lane.b32.xlu0 %v1993, 17
      %v2424 = vpop.permute.xlu0 %2423
      %2425 = vrot.lane.b32.xlu0 %v2007, 17
      %v2426 = vpop.permute.xlu0 %2425
      %2427 = vrot.lane.b32.xlu0 %v2008, 17
      %v2428 = vpop.permute.xlu0 %2427
      %2429 = vrot.lane.b32.xlu0 %v1999, 17
      %v2430 = vpop.permute.xlu0 %2429
      %2431 = vrot.lane.b32.xlu0 %v2045, 17
      %v2432 = vpop.permute.xlu0 %2431
      %2433 = vrot.lane.b32.xlu0 %v2046, 17
      %v2434 = vpop.permute.xlu0 %2433
      %2435 = vrot.lane.b32.xlu0 %v2026, 17
      %v2436 = vpop.permute.xlu0 %2435
      %2437 = vrot.lane.b32.xlu0 %v2047, 17
      %v2438 = vpop.permute.xlu0 %2437
      %2439 = vrot.lane.b32.xlu0 %v2048, 17
      %v2440 = vpop.permute.xlu0 %2439
      %2441 = vrot.lane.b32.xlu0 %v2032, 17
      %v2442 = vpop.permute.xlu0 %2441
      %2443 = vrot.lane.b32.xlu0 %v2049, 17
      %v2444 = vpop.permute.xlu0 %2443
      %2445 = vrot.lane.b32.xlu0 %v2050, 17
      %v2446 = vpop.permute.xlu0 %2445
      %2447 = vrot.lane.b32.xlu0 %v2038, 17
      %v2448 = vpop.permute.xlu0 %2447
      %2449 = vrot.lane.b32.xlu0 %v2051, 17
      %v2450 = vpop.permute.xlu0 %2449
      %2451 = vrot.lane.b32.xlu0 %v2052, 17
      %v2452 = vpop.permute.xlu0 %2451
      %2453 = vrot.lane.b32.xlu0 %v2044, 17
      %v2454 = vpop.permute.xlu0 %2453
      %2455 = vrot.lane.b32.xlu0 %v2062, 17
      %v2456 = vpop.permute.xlu0 %2455
      %2457 = vrot.lane.b32.xlu0 %v2077, 17
      %v2458 = vpop.permute.xlu0 %2457
      %2459 = vrot.lane.b32.xlu0 %v2064, 17
      %v2460 = vpop.permute.xlu0 %2459
      %2461 = vrot.lane.b32.xlu0 %v2066, 17
      %v2462 = vpop.permute.xlu0 %2461
      %2463 = vrot.lane.b32.xlu0 %v2078, 17
      %v2464 = vpop.permute.xlu0 %2463
      %2465 = vrot.lane.b32.xlu0 %v2068, 17
      %v2466 = vpop.permute.xlu0 %2465
      %2467 = vrot.lane.b32.xlu0 %v2070, 17
      %v2468 = vpop.permute.xlu0 %2467
      %2469 = vrot.lane.b32.xlu0 %v2079, 17
      %v2470 = vpop.permute.xlu0 %2469
      %2471 = vrot.lane.b32.xlu0 %v2072, 17
      %v2472 = vpop.permute.xlu0 %2471
      %2473 = vrot.lane.b32.xlu0 %v2074, 17
      %v2474 = vpop.permute.xlu0 %2473
      %2475 = vrot.lane.b32.xlu0 %v2080, 17
      %v2476 = vpop.permute.xlu0 %2475
      %2477 = vrot.lane.b32.xlu0 %v2076, 17
      %v2478 = vpop.permute.xlu0 %2477
      %2479 = vrot.lane.b32.xlu0 %v2094, 17
      %v2480 = vpop.permute.xlu0 %2479
      %2481 = vrot.lane.b32.xlu0 %v2118, 17
      %v2482 = vpop.permute.xlu0 %2481
      %2483 = vrot.lane.b32.xlu0 %v2119, 17
      %v2484 = vpop.permute.xlu0 %2483
      %2485 = vrot.lane.b32.xlu0 %v2100, 17
      %v2486 = vpop.permute.xlu0 %2485
      %2487 = vrot.lane.b32.xlu0 %v2120, 17
      %v2488 = vpop.permute.xlu0 %2487
      %2489 = vrot.lane.b32.xlu0 %v2121, 17
      %v2490 = vpop.permute.xlu0 %2489
      %2491 = vrot.lane.b32.xlu0 %v2106, 17
      %v2492 = vpop.permute.xlu0 %2491
      %2493 = vrot.lane.b32.xlu0 %v2122, 17
      %v2494 = vpop.permute.xlu0 %2493
      %2495 = vrot.lane.b32.xlu0 %v2123, 17
      %v2496 = vpop.permute.xlu0 %2495
      %2497 = vrot.lane.b32.xlu0 %v2112, 17
      %v2498 = vpop.permute.xlu0 %2497
      %2499 = vrot.lane.b32.xlu0 %v2124, 17
      %v2500 = vpop.permute.xlu0 %2499
      %2501 = vrot.lane.b32.xlu0 %v2125, 17
      %v2502 = vpop.permute.xlu0 %2501
      %2503 = vrot.lane.b32.xlu0 %v2139, 17
      %v2504 = vpop.permute.xlu0 %2503
      %2505 = vrot.lane.b32.xlu0 %v2163, 17
      %v2506 = vpop.permute.xlu0 %2505
      %2507 = vrot.lane.b32.xlu0 %v2164, 17
      %v2508 = vpop.permute.xlu0 %2507
      %2509 = vrot.lane.b32.xlu0 %v2145, 17
      %v2510 = vpop.permute.xlu0 %2509
      %2511 = vrot.lane.b32.xlu0 %v2165, 17
      %v2512 = vpop.permute.xlu0 %2511
      %2513 = vrot.lane.b32.xlu0 %v2166, 17
      %v2514 = vpop.permute.xlu0 %2513
      %2515 = vrot.lane.b32.xlu0 %v2151, 17
      %v2516 = vpop.permute.xlu0 %2515
      %2517 = vrot.lane.b32.xlu0 %v2167, 17
      %v2518 = vpop.permute.xlu0 %2517
      %2519 = vrot.lane.b32.xlu0 %v2168, 17
      %v2520 = vpop.permute.xlu0 %2519
      %2521 = vrot.lane.b32.xlu0 %v2157, 17
      %v2522 = vpop.permute.xlu0 %2521
      %2523 = vrot.lane.b32.xlu0 %v2169, 17
      %v2524 = vpop.permute.xlu0 %2523
      %2525 = vrot.lane.b32.xlu0 %v2170, 17
      %v2526 = vpop.permute.xlu0 %2525
      %2527 = vrot.lane.b32.xlu0 %v2184, 17
      %v2528 = vpop.permute.xlu0 %2527
      %2529 = vrot.lane.b32.xlu0 %v2208, 17
      %v2530 = vpop.permute.xlu0 %2529
      %2531 = vrot.lane.b32.xlu0 %v2209, 17
      %v2532 = vpop.permute.xlu0 %2531
      %2533 = vrot.lane.b32.xlu0 %v2190, 17
      %v2534 = vpop.permute.xlu0 %2533
      %2535 = vrot.lane.b32.xlu0 %v2210, 17
      %v2536 = vpop.permute.xlu0 %2535
      %2537 = vrot.lane.b32.xlu0 %v2211, 17
      %v2538 = vpop.permute.xlu0 %2537
      %2539 = vrot.lane.b32.xlu0 %v2196, 17
      %v2540 = vpop.permute.xlu0 %2539
      %2541 = vrot.lane.b32.xlu0 %v2212, 17
      %v2542 = vpop.permute.xlu0 %2541
      %2543 = vrot.lane.b32.xlu0 %v2213, 17
      %v2544 = vpop.permute.xlu0 %2543
      %2545 = vrot.lane.b32.xlu0 %v2202, 17
      %v2546 = vpop.permute.xlu0 %2545
      %2547 = vrot.lane.b32.xlu0 %v2214, 17
      %v2548 = vpop.permute.xlu0 %2547
      %2549 = vrot.lane.b32.xlu0 %v2215, 17
      %v2550 = vpop.permute.xlu0 %2549
      %2551 = vrot.lane.b32.xlu0 %v2229, 17
      %v2552 = vpop.permute.xlu0 %2551
      %2553 = vrot.lane.b32.xlu0 %v2253, 17
      %v2554 = vpop.permute.xlu0 %2553
      %2555 = vrot.lane.b32.xlu0 %v2254, 17
      %v2556 = vpop.permute.xlu0 %2555
      %2557 = vrot.lane.b32.xlu0 %v2235, 17
      %v2558 = vpop.permute.xlu0 %2557
      %2559 = vrot.lane.b32.xlu0 %v2255, 17
      %v2560 = vpop.permute.xlu0 %2559
      %2561 = vrot.lane.b32.xlu0 %v2256, 17
      %v2562 = vpop.permute.xlu0 %2561
      %2563 = vrot.lane.b32.xlu0 %v2241, 17
      %v2564 = vpop.permute.xlu0 %2563
      %2565 = vrot.lane.b32.xlu0 %v2257, 17
      %v2566 = vpop.permute.xlu0 %2565
      %2567 = vrot.lane.b32.xlu0 %v2258, 17
      %v2568 = vpop.permute.xlu0 %2567
      %2569 = vrot.lane.b32.xlu0 %v2247, 17
      %v2570 = vpop.permute.xlu0 %2569
      %2571 = vrot.lane.b32.xlu0 %v2259, 17
      %v2572 = vpop.permute.xlu0 %2571
      %2573 = vrot.lane.b32.xlu0 %v2260, 17
      %v2574 = vpop.permute.xlu0 %2573
      %v2575 = vsel %vm1903, %v2360, %v2362
      %v2576 = vsel %vm1903, %v2362, %v2364
      %v2577 = vsel %vm1903, %v2366, %v2368
      %v2578 = vsel %vm1903, %v2368, %v2370
      %v2579 = vsel %vm1903, %v2372, %v2374
      %v2580 = vsel %vm1903, %v2374, %v2376
      %v2581 = vsel %vm1903, %v2378, %v2380
      %v2582 = vsel %vm1903, %v2380, %v2382
      %v2583 = vsel %vm1903, %v2384, %v2386
      %v2584 = vsel %vm1903, %v2386, %v2388
      %v2585 = vsel %vm1903, %v2390, %v2392
      %v2586 = vsel %vm1903, %v2392, %v2394
      %v2587 = vsel %vm1903, %v2396, %v2398
      %v2588 = vsel %vm1903, %v2398, %v2400
      %v2589 = vsel %vm1903, %v2402, %v2404
      %v2590 = vsel %vm1903, %v2404, %v2406
      %v2591 = vsel %vm1903, %v2408, %v2410
      %v2592 = vsel %vm1903, %v2410, %v2412
      %v2593 = vsel %vm1903, %v2414, %v2416
      %v2594 = vsel %vm1903, %v2416, %v2418
      %v2595 = vsel %vm1903, %v2420, %v2422
      %v2596 = vsel %vm1903, %v2422, %v2424
      %v2597 = vsel %vm1903, %v2426, %v2428
      %v2598 = vsel %vm1903, %v2428, %v2430
      %v2599 = vsel %vm1903, %v2432, %v2434
      %v2600 = vsel %vm1903, %v2434, %v2436
      %v2601 = vsel %vm1903, %v2438, %v2440
      %v2602 = vsel %vm1903, %v2440, %v2442
      %v2603 = vsel %vm1903, %v2444, %v2446
      %v2604 = vsel %vm1903, %v2446, %v2448
      %v2605 = vsel %vm1903, %v2450, %v2452
      %v2606 = vsel %vm1903, %v2452, %v2454
      %v2607 = vsel %vm1903, %v2456, %v2458
      %v2608 = vsel %vm1903, %v2458, %v2460
      %v2609 = vsel %vm1903, %v2462, %v2464
      %v2610 = vsel %vm1903, %v2464, %v2466
      %v2611 = vsel %vm1903, %v2468, %v2470
      %v2612 = vsel %vm1903, %v2470, %v2472
      %v2613 = vsel %vm1903, %v2474, %v2476
      %v2614 = vsel %vm1903, %v2476, %v2478
      %v2615 = vsel %vm1903, %v2480, %v2482
      %v2616 = vsel %vm1903, %v2482, %v2484
      %v2617 = vsel %vm1903, %v2486, %v2488
      %v2618 = vsel %vm1903, %v2488, %v2490
      %v2619 = vsel %vm1903, %v2492, %v2494
      %v2620 = vsel %vm1903, %v2494, %v2496
      %v2621 = vsel %vm1903, %v2498, %v2500
      %v2622 = vsel %vm1903, %v2500, %v2502
      %v2623 = vsel %vm1903, %v2504, %v2506
      %v2624 = vsel %vm1903, %v2506, %v2508
      %v2625 = vsel %vm1903, %v2510, %v2512
      %v2626 = vsel %vm1903, %v2512, %v2514
      %v2627 = vsel %vm1903, %v2516, %v2518
      %v2628 = vsel %vm1903, %v2518, %v2520
      %v2629 = vsel %vm1903, %v2522, %v2524
      %v2630 = vsel %vm1903, %v2524, %v2526
      %v2631 = vsel %vm1903, %v2528, %v2530
      %v2632 = vsel %vm1903, %v2530, %v2532
      %v2633 = vsel %vm1903, %v2534, %v2536
      %v2634 = vsel %vm1903, %v2536, %v2538
      %v2635 = vsel %vm1903, %v2540, %v2542
      %v2636 = vsel %vm1903, %v2542, %v2544
      %v2637 = vsel %vm1903, %v2546, %v2548
      %v2638 = vsel %vm1903, %v2548, %v2550
      %v2639 = vsel %vm1903, %v2552, %v2554
      %v2640 = vsel %vm1903, %v2554, %v2556
      %v2641 = vsel %vm1903, %v2558, %v2560
      %v2642 = vsel %vm1903, %v2560, %v2562
      %v2643 = vsel %vm1903, %v2564, %v2566
      %v2644 = vsel %vm1903, %v2566, %v2568
      %v2645 = vsel %vm1903, %v2570, %v2572
      %v2646 = vsel %vm1903, %v2572, %v2574
      %v2720 = vsel %vm828, %v2333, 0
      %v2723 = vsel %vm828, %v2338, 0
      %2725 = vmatprep.subr.bf16.mxu0 %v2590
      %2726 = vmatpush1.bf16.msra.mxu0 %v2589
      %2727 = vmatprep.subr.bf16.mxu0 %v2588
      %2728 = vmatpush1.bf16.msra.mxu0 %v2587
      %2729 = vmatprep.subr.bf16.mxu0 %v2586
      %2730 = vmatpush1.bf16.msra.mxu0 %v2585
      %2731 = vmatprep.subr.bf16.mxu0 %v2584
      %2732 = vmatpush1.bf16.msra.mxu0 %v2583
      %2733 = vmatprep.subr.bf16.mxu0 %v2582
      %2734 = vmatpush1.bf16.msra.mxu0 %v2581
      %2735 = vmatprep.subr.bf16.mxu0 %v2580
      %2736 = vmatpush1.bf16.msra.mxu0 %v2579
      %2737 = vmatprep.subr.bf16.mxu0 %v2578
      %2738 = vmatpush1.bf16.msra.mxu0 %v2577
      %2739 = vmatprep.subr.bf16.mxu0 %v2576
      %2740 = vmatpush1.bf16.msra.mxu0 %v2575
      %2741 = vmatprep.subr.bf16.mxu0 %v2606
      %2742 = vmatpush2.bf16.msra.mxu0 %v2605
      %2743 = vmatprep.subr.bf16.mxu0 %v2604
      %2744 = vmatpush2.bf16.msra.mxu0 %v2603
      %2745 = vmatprep.subr.bf16.mxu0 %v2602
      %2746 = vmatpush2.bf16.msra.mxu0 %v2601
      %2747 = vmatprep.subr.bf16.mxu0 %v2600
      %2748 = vmatpush2.bf16.msra.mxu0 %v2599
      %2749 = vmatprep.subr.bf16.mxu0 %v2598
      %2750 = vmatpush2.bf16.msra.mxu0 %v2597
      %2751 = vmatprep.subr.bf16.mxu0 %v2596
      %2752 = vmatpush2.bf16.msra.mxu0 %v2595
      %2753 = vmatprep.subr.bf16.mxu0 %v2594
      %2754 = vmatpush2.bf16.msra.mxu0 %v2593
      %2755 = vmatprep.subr.bf16.mxu0 %v2592
      %2756 = vmatpush2.bf16.msra.mxu0 %v2591
      %2757 = vmatprep.mubr.bf16.mxu0 %v2330
      %2758 = vmatmul.mubr.bf16.gmra.mxu0 %v2329
      %v2759 = vpop.f32.mrf.mxu0
      %v2760 = vadd.f32 %v2280, %v2759
      %v2761 = vpop.f32.mrf.mxu0
      %v2762 = vadd.f32 %v2280, %v2761
      %v2763 = vpop.f32.mrf.mxu0
      %v2764 = vadd.f32 %v2285, %v2763
      %v2765 = vpop.f32.mrf.mxu0
      %v2766 = vadd.f32 %v2285, %v2765
      %2767 = vmatprep.mubr.bf16.mxu0 %v2335
      %2768 = vmatmul.mubr.bf16.gmra.mxu0 %v2334
      %v2769 = vpop.f32.mrf.mxu0
      %v2770 = vadd.f32 %v2290, %v2769
      %v2771 = vpop.f32.mrf.mxu0
      %v2772 = vadd.f32 %v2290, %v2771
      %v2773 = vpop.f32.mrf.mxu0
      %v2774 = vadd.f32 %v2295, %v2773
      %v2775 = vpop.f32.mrf.mxu0
      %v2776 = vadd.f32 %v2295, %v2775
      %2777 = vdwg.mxu0
      %2778 = vmatprep.subr.bf16.mxu0 %v2622
      %2779 = vmatpush1.bf16.msra.mxu0 %v2621
      %2780 = vmatprep.subr.bf16.mxu0 %v2620
      %2781 = vmatpush1.bf16.msra.mxu0 %v2619
      %2782 = vmatprep.subr.bf16.mxu0 %v2618
      %2783 = vmatpush1.bf16.msra.mxu0 %v2617
      %2784 = vmatprep.subr.bf16.mxu0 %v2616
      %2785 = vmatpush1.bf16.msra.mxu0 %v2615
      %2786 = vmatprep.subr.bf16.mxu0 %v2614
      %2787 = vmatpush1.bf16.msra.mxu0 %v2613
      %2788 = vmatprep.subr.bf16.mxu0 %v2612
      %2789 = vmatpush1.bf16.msra.mxu0 %v2611
      %2790 = vmatprep.subr.bf16.mxu0 %v2610
      %2791 = vmatpush1.bf16.msra.mxu0 %v2609
      %2792 = vmatprep.subr.bf16.mxu0 %v2608
      %2793 = vmatpush1.bf16.msra.mxu0 %v2607
      %2794 = vmatprep.subr.bf16.mxu0 %v2638
      %2795 = vmatpush2.bf16.msra.mxu0 %v2637
      %2796 = vmatprep.subr.bf16.mxu0 %v2636
      %2797 = vmatpush2.bf16.msra.mxu0 %v2635
      %2798 = vmatprep.subr.bf16.mxu0 %v2634
      %2799 = vmatpush2.bf16.msra.mxu0 %v2633
      %2800 = vmatprep.subr.bf16.mxu0 %v2632
      %2801 = vmatpush2.bf16.msra.mxu0 %v2631
      %2802 = vmatprep.subr.bf16.mxu0 %v2630
      %2803 = vmatpush2.bf16.msra.mxu0 %v2629
      %2804 = vmatprep.subr.bf16.mxu0 %v2628
      %2805 = vmatpush2.bf16.msra.mxu0 %v2627
      %2806 = vmatprep.subr.bf16.mxu0 %v2626
      %2807 = vmatpush2.bf16.msra.mxu0 %v2625
      %2808 = vmatprep.subr.bf16.mxu0 %v2624
      %2809 = vmatpush2.bf16.msra.mxu0 %v2623
      %2810 = vmatprep.mubr.bf16.mxu0 %v2332
      %2811 = vmatmul.mubr.bf16.gmra.mxu0 %v2331
      %v2812 = vpop.f32.mrf.mxu0
      %v2813 = vadd.f32 %v2760, %v2812
      %v2814 = vpop.f32.mrf.mxu0
      %v2815 = vadd.f32 %v2762, %v2814
      %v2816 = vpop.f32.mrf.mxu0
      %v2817 = vadd.f32 %v2764, %v2816
      %v2818 = vpop.f32.mrf.mxu0
      %v2819 = vadd.f32 %v2766, %v2818
      %2820 = vmatprep.mubr.bf16.mxu0 %v2337
      %2821 = vmatmul.mubr.bf16.gmra.mxu0 %v2336
      %v2822 = vpop.f32.mrf.mxu0
      %v2823 = vadd.f32 %v2770, %v2822
      %v2824 = vpop.f32.mrf.mxu0
      %v2825 = vadd.f32 %v2772, %v2824
      %v2826 = vpop.f32.mrf.mxu0
      %v2827 = vadd.f32 %v2774, %v2826
      %v2828 = vpop.f32.mrf.mxu0
      %v2829 = vadd.f32 %v2776, %v2828
      %2830 = vdwg.mxu0
      %2831 = vmatprep.subr.bf16.mxu0 0
      %2832 = vmatpush1.bf16.msra.mxu0 0
      %2833 = vmatprep.subr.bf16.mxu0 0
      %2834 = vmatpush1.bf16.msra.mxu0 0
      %2835 = vmatprep.subr.bf16.mxu0 0
      %2836 = vmatpush1.bf16.msra.mxu0 0
      %2837 = vmatprep.subr.bf16.mxu0 0
      %2838 = vmatpush1.bf16.msra.mxu0 0
      %2839 = vmatprep.subr.bf16.mxu0 %v2646
      %2840 = vmatpush1.bf16.msra.mxu0 %v2645
      %2841 = vmatprep.subr.bf16.mxu0 %v2644
      %2842 = vmatpush1.bf16.msra.mxu0 %v2643
      %2843 = vmatprep.subr.bf16.mxu0 %v2642
      %2844 = vmatpush1.bf16.msra.mxu0 %v2641
      %2845 = vmatprep.subr.bf16.mxu0 %v2640
      %2846 = vmatpush1.bf16.msra.mxu0 %v2639
      %2847 = vmatprep.subr.bf16.mxu0 0
      %2848 = vmatpush2.bf16.msra.mxu0 0
      %2849 = vmatprep.subr.bf16.mxu0 0
      %2850 = vmatpush2.bf16.msra.mxu0 0
      %2851 = vmatprep.subr.bf16.mxu0 0
      %2852 = vmatpush2.bf16.msra.mxu0 0
      %2853 = vmatprep.subr.bf16.mxu0 0
      %2854 = vmatpush2.bf16.msra.mxu0 0
      %2855 = vmatprep.subr.bf16.mxu0 0
      %2856 = vmatpush2.bf16.msra.mxu0 0
      %2857 = vmatprep.subr.bf16.mxu0 0
      %2858 = vmatpush2.bf16.msra.mxu0 0
      %2859 = vmatprep.subr.bf16.mxu0 0
      %2860 = vmatpush2.bf16.msra.mxu0 0
      %2861 = vmatprep.subr.bf16.mxu0 0
      %2862 = vmatpush2.bf16.msra.mxu0 0
      %2863 = vmatprep.mubr.bf16.mxu0 0
      %2864 = vmatmul.mubr.bf16.gmra.mxu0 %v2720
      %v2865 = vpop.f32.mrf.mxu0
      %v2866 = vadd.f32 %v2813, %v2865
      %v2867 = vpop.f32.mrf.mxu0
      %v2868 = vadd.f32 %v2815, %v2867
      %v2869 = vpop.f32.mrf.mxu0
      %v2870 = vadd.f32 %v2817, %v2869
      %v2871 = vpop.f32.mrf.mxu0
      %v2872 = vadd.f32 %v2819, %v2871
      %2873 = vmatprep.mubr.bf16.mxu0 0
      %2874 = vmatmul.mubr.bf16.gmra.mxu0 %v2723
      %v2875 = vpop.f32.mrf.mxu0
      %v2876 = vadd.f32 %v2823, %v2875
      %v2877 = vpop.f32.mrf.mxu0
      %v2878 = vadd.f32 %v2825, %v2877
      %v2879 = vpop.f32.mrf.mxu0
      %v2880 = vadd.f32 %v2827, %v2879
      %v2881 = vpop.f32.mrf.mxu0
      %v2882 = vadd.f32 %v2829, %v2881
      %2883 = vdwg.mxu0
      %v2884 = vld [vmem:[%s9] sm:$0xff]
      %v2885 = vld [vmem:[%s9 + $0x8] sm:$0xff]
      %v2886 = vld [vmem:[%s9 + $0x10] sm:$0xff]
      %v2887 = vld [vmem:[%s9 + $0x18] sm:$0xff]
      %v2888 = vld [vmem:[%s10] sm:$0xff]
      %v2889 = vld [vmem:[%s10 + $0x8] sm:$0xff]
      %v2890 = vld [vmem:[%s10 + $0x10] sm:$0xff]
      %v2891 = vld [vmem:[%s10 + $0x18] sm:$0xff]
      %v2892 = vadd.f32 %v2866, %v2868
      %2893 = vadd.xlane.f32.xlu0 %v2892
      %v2894 = vpop.xlane.xlu0 %2893
      %v2895 = vadd.f32 %v2870, %v2872
      %2896 = vadd.xlane.f32.xlu0 %v2895
      %v2897 = vpop.xlane.xlu0 %2896
      %v2898 = vadd.f32 %v2876, %v2878
      %2899 = vadd.xlane.f32.xlu0 %v2898
      %v2900 = vpop.xlane.xlu0 %2899
      %v2901 = vadd.f32 %v2880, %v2882
      %2902 = vadd.xlane.f32.xlu0 %v2901
      %v2903 = vpop.xlane.xlu0 %2902
      %v2904 = vmul.f32 %v2894, 0.00390625
      %v2905 = vmul.f32 %v2897, 0.00390625
      %v2906 = vmul.f32 %v2900, 0.00390625
      %v2907 = vmul.f32 %v2903, 0.00390625
      %v2908 = vsub.f32 %v2866, %v2904
      %v2909 = vsub.f32 %v2868, %v2904
      %v2910 = vsub.f32 %v2870, %v2905
      %v2911 = vsub.f32 %v2872, %v2905
      %v2912 = vsub.f32 %v2876, %v2906
      %v2913 = vsub.f32 %v2878, %v2906
      %v2914 = vsub.f32 %v2880, %v2907
      %v2915 = vsub.f32 %v2882, %v2907
      %v2916 = vmul.f32 %v2908, %v2908
      %v2917 = vmul.f32 %v2909, %v2909
      %v2918 = vmul.f32 %v2910, %v2910
      %v2919 = vmul.f32 %v2911, %v2911
      %v2920 = vmul.f32 %v2912, %v2912
      %v2921 = vmul.f32 %v2913, %v2913
      %v2922 = vmul.f32 %v2914, %v2914
      %v2923 = vmul.f32 %v2915, %v2915
      %v2924 = vadd.f32 %v2916, %v2917
      %2925 = vadd.xlane.f32.xlu0 %v2924
      %v2926 = vpop.xlane.xlu0 %2925
      %v2927 = vadd.f32 %v2918, %v2919
      %2928 = vadd.xlane.f32.xlu0 %v2927
      %v2929 = vpop.xlane.xlu0 %2928
      %v2930 = vadd.f32 %v2920, %v2921
      %2931 = vadd.xlane.f32.xlu0 %v2930
      %v2932 = vpop.xlane.xlu0 %2931
      %v2933 = vadd.f32 %v2922, %v2923
      %2934 = vadd.xlane.f32.xlu0 %v2933
      %v2935 = vpop.xlane.xlu0 %2934
      %v2936 = vmul.f32 %v2926, 0.00390625
      %v2937 = vmul.f32 %v2929, 0.00390625
      %v2938 = vmul.f32 %v2932, 0.00390625
      %v2939 = vmul.f32 %v2935, 0.00390625
      %v2940 = vadd.f32 %v2936, 1e-06
      %v2941 = vadd.f32 %v2937, 1e-06
      %v2942 = vadd.f32 %v2938, 1e-06
      %v2943 = vadd.f32 %v2939, 1e-06
      %v2944 = vrsqrt.pop %v2940
      %v2945 = vrsqrt.pop %v2941
      %v2946 = vrsqrt.pop %v2942
      %v2947 = vrsqrt.pop %v2943
      %v2948 = vmul.f32 %v2908, %v2944
      %v2949 = vmul.f32 %v2909, %v2944
      %v2950 = vmul.f32 %v2910, %v2945
      %v2951 = vmul.f32 %v2911, %v2945
      %v2952 = vmul.f32 %v2912, %v2946
      %v2953 = vmul.f32 %v2913, %v2946
      %v2954 = vmul.f32 %v2914, %v2947
      %v2955 = vmul.f32 %v2915, %v2947
      %2957 = vset.pattern.permute.xlu0 0
      %2958 = vperm.xlu0 %2957, %v2884
      %v2959 = vpop.permute.xlu0 %2958
      %2962 = vset.pattern.permute.xlu0 0
      %2963 = vperm.xlu0 %2962, %v2885
      %v2964 = vpop.permute.xlu0 %2963
      %2967 = vset.pattern.permute.xlu0 0
      %2968 = vperm.xlu0 %2967, %v2886
      %v2969 = vpop.permute.xlu0 %2968
      %2972 = vset.pattern.permute.xlu0 0
      %2973 = vperm.xlu0 %2972, %v2887
      %v2974 = vpop.permute.xlu0 %2973
      %v2976 = vmul.f32 %v2948, %v2959
      %v2977 = vmul.f32 %v2949, %v2959
      %v2978 = vmul.f32 %v2950, %v2964
      %v2979 = vmul.f32 %v2951, %v2964
      %v2980 = vmul.f32 %v2952, %v2969
      %v2981 = vmul.f32 %v2953, %v2969
      %v2982 = vmul.f32 %v2954, %v2974
      %v2983 = vmul.f32 %v2955, %v2974
      %2985 = vset.pattern.permute.xlu0 0
      %2986 = vperm.xlu0 %2985, %v2888
      %v2987 = vpop.permute.xlu0 %2986
      %2990 = vset.pattern.permute.xlu0 0
      %2991 = vperm.xlu0 %2990, %v2889
      %v2992 = vpop.permute.xlu0 %2991
      %2995 = vset.pattern.permute.xlu0 0
      %2996 = vperm.xlu0 %2995, %v2890
      %v2997 = vpop.permute.xlu0 %2996
      %3000 = vset.pattern.permute.xlu0 0
      %3001 = vperm.xlu0 %3000, %v2891
      %v3002 = vpop.permute.xlu0 %3001
      %v3004 = vadd.f32 %v2976, %v2987
      %v3005 = vadd.f32 %v2977, %v2987
      %v3006 = vadd.f32 %v2978, %v2992
      %v3007 = vadd.f32 %v2979, %v2992
      %v3008 = vadd.f32 %v2980, %v2997
      %v3009 = vadd.f32 %v2981, %v2997
      %v3010 = vadd.f32 %v2982, %v3002
      %v3011 = vadd.f32 %v2983, %v3002
      %v3012 = vxor.u32 %v3004, 2147483648
      %v3013 = vxor.u32 %v3005, 2147483648
      %v3014 = vxor.u32 %v3006, 2147483648
      %v3015 = vxor.u32 %v3007, 2147483648
      %v3016 = vxor.u32 %v3008, 2147483648
      %v3017 = vxor.u32 %v3009, 2147483648
      %v3018 = vxor.u32 %v3010, 2147483648
      %v3019 = vxor.u32 %v3011, 2147483648
      %v3020 = vmul.f32 %v3012, 1.442695
      %v3021 = vpow.pop %v3020
      %v3022 = vmul.f32 %v3013, 1.442695
      %v3023 = vpow.pop %v3022
      %v3024 = vmul.f32 %v3014, 1.442695
      %v3025 = vpow.pop %v3024
      %v3026 = vmul.f32 %v3015, 1.442695
      %v3027 = vpow.pop %v3026
      %v3028 = vmul.f32 %v3016, 1.442695
      %v3029 = vpow.pop %v3028
      %v3030 = vmul.f32 %v3017, 1.442695
      %v3031 = vpow.pop %v3030
      %v3032 = vmul.f32 %v3018, 1.442695
      %v3033 = vpow.pop %v3032
      %v3034 = vmul.f32 %v3019, 1.442695
      %v3035 = vpow.pop %v3034
      %v3036 = vadd.f32 %v3021, 1.0
      %v3037 = vadd.f32 %v3023, 1.0
      %v3038 = vadd.f32 %v3025, 1.0
      %v3039 = vadd.f32 %v3027, 1.0
      %v3040 = vadd.f32 %v3029, 1.0
      %v3041 = vadd.f32 %v3031, 1.0
      %v3042 = vadd.f32 %v3033, 1.0
      %v3043 = vadd.f32 %v3035, 1.0
      %v3044 = vrcp.pop %v3036
      %v3045 = vmul.f32 1.0, %v3044
      %v3046 = vrcp.pop %v3037
      %v3047 = vmul.f32 1.0, %v3046
      %v3048 = vrcp.pop %v3038
      %v3049 = vmul.f32 1.0, %v3048
      %v3050 = vrcp.pop %v3039
      %v3051 = vmul.f32 1.0, %v3050
      %v3052 = vrcp.pop %v3040
      %v3053 = vmul.f32 1.0, %v3052
      %v3054 = vrcp.pop %v3041
      %v3055 = vmul.f32 1.0, %v3054
      %v3056 = vrcp.pop %v3042
      %v3057 = vmul.f32 1.0, %v3056
      %v3058 = vrcp.pop %v3043
      %v3059 = vmul.f32 1.0, %v3058
      %v3060 = vmul.f32 %v3004, %v3045
      %v3061 = vmul.f32 %v3005, %v3047
      %v3062 = vmul.f32 %v3006, %v3049
      %v3063 = vmul.f32 %v3007, %v3051
      %v3064 = vmul.f32 %v3008, %v3053
      %v3065 = vmul.f32 %v3009, %v3055
      %v3066 = vmul.f32 %v3010, %v3057
      %v3067 = vmul.f32 %v3011, %v3059
      %v3068 = vpack.c.bf16 %v3062, %v3060
      %v3069 = vpack.c.bf16 %v3063, %v3061
      %v3070 = vpack.c.bf16 %v3066, %v3064
      %v3071 = vpack.c.bf16 %v3067, %v3065
      %v3072 = vmul.bf16 %v3069, %v1671
      %v3073 = vmul.bf16 %v3068, %v1675
      %v3074 = vmul.bf16 %v3069, %v1673
      %v3075 = vmul.bf16 %v3071, %v1671
      %v3076 = vmul.bf16 %v3070, %v1675
      %v3077 = vmul.bf16 %v3071, %v1673
      %v3078 = vmul.bf16 %v3069, %v1708
      %v3079 = vmul.bf16 %v3068, %v1712
      %v3080 = vmul.bf16 %v3069, %v1710
      %v3081 = vmul.bf16 %v3071, %v1708
      %v3082 = vmul.bf16 %v3070, %v1712
      %v3083 = vmul.bf16 %v3071, %v1710
      %v3084 = vmul.bf16 %v3069, %v1739
      %v3085 = vmul.bf16 %v3068, %v1743
      %v3086 = vmul.bf16 %v3069, %v1741
      %v3087 = vmul.bf16 %v3071, %v1739
      %v3088 = vmul.bf16 %v3070, %v1743
      %v3089 = vmul.bf16 %v3071, %v1741
      %v3090 = vmul.bf16 %v3069, %v1770
      %v3091 = vmul.bf16 %v3068, %v1774
      %v3092 = vmul.bf16 %v3069, %v1772
      %v3093 = vmul.bf16 %v3071, %v1770
      %v3094 = vmul.bf16 %v3070, %v1774
      %v3095 = vmul.bf16 %v3071, %v1772
      %v3096 = vmul.bf16 %v3068, %v1801
      %v3097 = vmul.bf16 %v3069, %v1805
      %v3098 = vmul.bf16 %v3068, %v1803
      %v3099 = vmul.bf16 %v3070, %v1801
      %v3100 = vmul.bf16 %v3071, %v1805
      %v3101 = vmul.bf16 %v3070, %v1803
      %v3102 = vmul.bf16 %v3068, %v1832
      %v3103 = vmul.bf16 %v3069, %v1836
      %v3104 = vmul.bf16 %v3068, %v1834
      %v3105 = vmul.bf16 %v3070, %v1832
      %v3106 = vmul.bf16 %v3071, %v1836
      %v3107 = vmul.bf16 %v3070, %v1834
      %v3108 = vmul.bf16 %v3068, %v1863
      %v3109 = vmul.bf16 %v3069, %v1867
      %v3110 = vmul.bf16 %v3068, %v1865
      %v3111 = vmul.bf16 %v3070, %v1863
      %v3112 = vmul.bf16 %v3071, %v1867
      %v3113 = vmul.bf16 %v3070, %v1865
      %v3114 = vmul.bf16 %v3068, %v1900
      %v3115 = vmul.bf16 %v3069, %v1904
      %v3116 = vmul.bf16 %v3068, %v1902
      %v3117 = vmul.bf16 %v3070, %v1900
      %v3118 = vmul.bf16 %v3071, %v1904
      %v3119 = vmul.bf16 %v3070, %v1902
      %3126 = vrot.lane.b32.xlu0 %v3078, 127
      %v3127 = vpop.permute.xlu0 %3126
      %3128 = vrot.lane.b32.xlu0 %v3079, 127
      %v3129 = vpop.permute.xlu0 %3128
      %3130 = vrot.lane.b32.xlu0 %v3080, 127
      %v3131 = vpop.permute.xlu0 %3130
      %3132 = vrot.lane.b32.xlu0 %v3081, 127
      %v3133 = vpop.permute.xlu0 %3132
      %3134 = vrot.lane.b32.xlu0 %v3082, 127
      %v3135 = vpop.permute.xlu0 %3134
      %3136 = vrot.lane.b32.xlu0 %v3083, 127
      %v3137 = vpop.permute.xlu0 %3136
      %v3138 = vsel %vm1773, %v3127, %v3129
      %v3139 = vsel %vm1773, %v3129, %v3131
      %v3140 = vsel %vm1773, %v3133, %v3135
      %v3141 = vsel %vm1773, %v3135, %v3137
      %3148 = vrot.lane.b32.xlu0 %v3084, 126
      %v3149 = vpop.permute.xlu0 %3148
      %3150 = vrot.lane.b32.xlu0 %v3085, 126
      %v3151 = vpop.permute.xlu0 %3150
      %3152 = vrot.lane.b32.xlu0 %v3086, 126
      %v3153 = vpop.permute.xlu0 %3152
      %3154 = vrot.lane.b32.xlu0 %v3087, 126
      %v3155 = vpop.permute.xlu0 %3154
      %3156 = vrot.lane.b32.xlu0 %v3088, 126
      %v3157 = vpop.permute.xlu0 %3156
      %3158 = vrot.lane.b32.xlu0 %v3089, 126
      %v3159 = vpop.permute.xlu0 %3158
      %v3160 = vsel %vm2000, %v3149, %v3151
      %v3161 = vsel %vm2000, %v3151, %v3153
      %v3162 = vsel %vm2000, %v3155, %v3157
      %v3163 = vsel %vm2000, %v3157, %v3159
      %3170 = vrot.lane.b32.xlu0 %v3090, 112
      %v3171 = vpop.permute.xlu0 %3170
      %3172 = vrot.lane.b32.xlu0 %v3091, 112
      %v3173 = vpop.permute.xlu0 %3172
      %3174 = vrot.lane.b32.xlu0 %v3092, 112
      %v3175 = vpop.permute.xlu0 %3174
      %3176 = vrot.lane.b32.xlu0 %v3093, 112
      %v3177 = vpop.permute.xlu0 %3176
      %3178 = vrot.lane.b32.xlu0 %v3094, 112
      %v3179 = vpop.permute.xlu0 %3178
      %3180 = vrot.lane.b32.xlu0 %v3095, 112
      %v3181 = vpop.permute.xlu0 %3180
      %v3182 = vsel %vm1711, %v3171, %v3173
      %v3183 = vsel %vm1711, %v3173, %v3175
      %v3184 = vsel %vm1711, %v3177, %v3179
      %v3185 = vsel %vm1711, %v3179, %v3181
      %3190 = vrot.lane.b32.xlu0 %v3068, 111
      %v3191 = vpop.permute.xlu0 %3190
      %3192 = vrot.lane.b32.xlu0 %v3069, 111
      %v3193 = vpop.permute.xlu0 %3192
      %3194 = vrot.lane.b32.xlu0 %v3070, 111
      %v3195 = vpop.permute.xlu0 %3194
      %3196 = vrot.lane.b32.xlu0 %v3071, 111
      %v3197 = vpop.permute.xlu0 %3196
      %v3198 = vsel %vm1674, %v3191, %v3193
      %v3199 = vsel %vm1674, %v3195, %v3197
      %3206 = vrot.lane.b32.xlu0 %v3096, 110
      %v3207 = vpop.permute.xlu0 %3206
      %3208 = vrot.lane.b32.xlu0 %v3097, 110
      %v3209 = vpop.permute.xlu0 %3208
      %3210 = vrot.lane.b32.xlu0 %v3098, 110
      %v3211 = vpop.permute.xlu0 %3210
      %3212 = vrot.lane.b32.xlu0 %v3099, 110
      %v3213 = vpop.permute.xlu0 %3212
      %3214 = vrot.lane.b32.xlu0 %v3100, 110
      %v3215 = vpop.permute.xlu0 %3214
      %3216 = vrot.lane.b32.xlu0 %v3101, 110
      %v3217 = vpop.permute.xlu0 %3216
      %v3218 = vsel %vm2117, %v3207, %v3209
      %v3219 = vsel %vm2117, %v3209, %v3211
      %v3220 = vsel %vm2117, %v3213, %v3215
      %v3221 = vsel %vm2117, %v3215, %v3217
      %3228 = vrot.lane.b32.xlu0 %v3102, 96
      %v3229 = vpop.permute.xlu0 %3228
      %3230 = vrot.lane.b32.xlu0 %v3103, 96
      %v3231 = vpop.permute.xlu0 %3230
      %3232 = vrot.lane.b32.xlu0 %v3104, 96
      %v3233 = vpop.permute.xlu0 %3232
      %3234 = vrot.lane.b32.xlu0 %v3105, 96
      %v3235 = vpop.permute.xlu0 %3234
      %3236 = vrot.lane.b32.xlu0 %v3106, 96
      %v3237 = vpop.permute.xlu0 %3236
      %3238 = vrot.lane.b32.xlu0 %v3107, 96
      %v3239 = vpop.permute.xlu0 %3238
      %v3240 = vsel %vm2162, %v3229, %v3231
      %v3241 = vsel %vm2162, %v3231, %v3233
      %v3242 = vsel %vm2162, %v3235, %v3237
      %v3243 = vsel %vm2162, %v3237, %v3239
      %3250 = vrot.lane.b32.xlu0 %v3108, 95
      %v3251 = vpop.permute.xlu0 %3250
      %3252 = vrot.lane.b32.xlu0 %v3109, 95
      %v3253 = vpop.permute.xlu0 %3252
      %3254 = vrot.lane.b32.xlu0 %v3110, 95
      %v3255 = vpop.permute.xlu0 %3254
      %3256 = vrot.lane.b32.xlu0 %v3111, 95
      %v3257 = vpop.permute.xlu0 %3256
      %3258 = vrot.lane.b32.xlu0 %v3112, 95
      %v3259 = vpop.permute.xlu0 %3258
      %3260 = vrot.lane.b32.xlu0 %v3113, 95
      %v3261 = vpop.permute.xlu0 %3260
      %v3262 = vsel %vm2207, %v3251, %v3253
      %v3263 = vsel %vm2207, %v3253, %v3255
      %v3264 = vsel %vm2207, %v3257, %v3259
      %v3265 = vsel %vm2207, %v3259, %v3261
      %3272 = vrot.lane.b32.xlu0 %v3114, 94
      %v3273 = vpop.permute.xlu0 %3272
      %3274 = vrot.lane.b32.xlu0 %v3115, 94
      %v3275 = vpop.permute.xlu0 %3274
      %3276 = vrot.lane.b32.xlu0 %v3116, 94
      %v3277 = vpop.permute.xlu0 %3276
      %3278 = vrot.lane.b32.xlu0 %v3117, 94
      %v3279 = vpop.permute.xlu0 %3278
      %3280 = vrot.lane.b32.xlu0 %v3118, 94
      %v3281 = vpop.permute.xlu0 %3280
      %3282 = vrot.lane.b32.xlu0 %v3119, 94
      %v3283 = vpop.permute.xlu0 %3282
      %v3284 = vsel %vm2252, %v3273, %v3275
      %v3285 = vsel %vm2252, %v3275, %v3277
      %v3286 = vsel %vm2252, %v3279, %v3281
      %v3287 = vsel %vm2252, %v3281, %v3283
      %v3288 = vld [vmem:[%s13] sm:$0xff]
      %v3289 = vld [vmem:[%s13 + $0x8] sm:$0xf]
      %v3290 = vld [vmem:[%s13 + $0xc] sm:$0xff]
      %v3291 = vld [vmem:[%s13 + $0x14] sm:$0xf]
      %v3292 = vld [vmem:[%s13 + $0x18] sm:$0xff]
      %v3293 = vld [vmem:[%s13 + $0x20] sm:$0xf]
      %v3294 = vld [vmem:[%s13 + $0x24] sm:$0xff]
      %v3295 = vld [vmem:[%s13 + $0x2c] sm:$0xf]
      %v3296 = vld [vmem:[%s14] sm:$0xff]
      %v3297 = vld [vmem:[%s14 + $0x8] sm:$0xff]
      %v3298 = vld [vmem:[%s14 + $0x10] sm:$0xff]
      %v3299 = vld [vmem:[%s14 + $0x18] sm:$0xff]
      %3301 = vset.pattern.permute.xlu0 0
      %3302 = vperm.xlu0 %3301, %v3296
      %v3303 = vpop.permute.xlu0 %3302
      %3306 = vset.pattern.permute.xlu0 0
      %3307 = vperm.xlu0 %3306, %v3297
      %v3308 = vpop.permute.xlu0 %3307
      %3311 = vset.pattern.permute.xlu0 0
      %3312 = vperm.xlu0 %3311, %v3298
      %v3313 = vpop.permute.xlu0 %3312
      %3316 = vset.pattern.permute.xlu0 0
      %3317 = vperm.xlu0 %3316, %v3299
      %v3318 = vpop.permute.xlu0 %3317
      %v3328 = vunpack.c.l.b16 %v3288
      %v3329 = vunpack.c.h.b16 %v3288
      %v3330 = vunpack.c.l.b16 %v3289
      %v3331 = vunpack.c.l.b16 %v3290
      %v3332 = vunpack.c.h.b16 %v3290
      %v3333 = vunpack.c.l.b16 %v3291
      %v3334 = vunpack.c.l.b16 %v3292
      %v3335 = vunpack.c.h.b16 %v3292
      %v3336 = vunpack.c.l.b16 %v3293
      %v3337 = vunpack.c.l.b16 %v3294
      %v3338 = vunpack.c.h.b16 %v3294
      %v3339 = vunpack.c.l.b16 %v3295
      %v3340 = vpack.c.b16 %v3331, %v3328
      %v3341 = vpack.c.b16 %v3332, %v3329
      %v3342 = vpack.c.b16 %v3333, %v3330
      %v3343 = vpack.c.b16 %v3337, %v3334
      %v3344 = vpack.c.b16 %v3338, %v3335
      %v3345 = vpack.c.b16 %v3339, %v3336
      %3356 = vrot.lane.b32.xlu0 %v3072, 17
      %v3357 = vpop.permute.xlu0 %3356
      %3358 = vrot.lane.b32.xlu0 %v3073, 17
      %v3359 = vpop.permute.xlu0 %3358
      %3360 = vrot.lane.b32.xlu0 %v3074, 17
      %v3361 = vpop.permute.xlu0 %3360
      %3362 = vrot.lane.b32.xlu0 %v3075, 17
      %v3363 = vpop.permute.xlu0 %3362
      %3364 = vrot.lane.b32.xlu0 %v3076, 17
      %v3365 = vpop.permute.xlu0 %3364
      %3366 = vrot.lane.b32.xlu0 %v3077, 17
      %v3367 = vpop.permute.xlu0 %3366
      %3368 = vrot.lane.b32.xlu0 %v3138, 17
      %v3369 = vpop.permute.xlu0 %3368
      %3370 = vrot.lane.b32.xlu0 %v3139, 17
      %v3371 = vpop.permute.xlu0 %3370
      %3372 = vrot.lane.b32.xlu0 %v3131, 17
      %v3373 = vpop.permute.xlu0 %3372
      %3374 = vrot.lane.b32.xlu0 %v3140, 17
      %v3375 = vpop.permute.xlu0 %3374
      %3376 = vrot.lane.b32.xlu0 %v3141, 17
      %v3377 = vpop.permute.xlu0 %3376
      %3378 = vrot.lane.b32.xlu0 %v3137, 17
      %v3379 = vpop.permute.xlu0 %3378
      %3380 = vrot.lane.b32.xlu0 %v3160, 17
      %v3381 = vpop.permute.xlu0 %3380
      %3382 = vrot.lane.b32.xlu0 %v3161, 17
      %v3383 = vpop.permute.xlu0 %3382
      %3384 = vrot.lane.b32.xlu0 %v3153, 17
      %v3385 = vpop.permute.xlu0 %3384
      %3386 = vrot.lane.b32.xlu0 %v3162, 17
      %v3387 = vpop.permute.xlu0 %3386
      %3388 = vrot.lane.b32.xlu0 %v3163, 17
      %v3389 = vpop.permute.xlu0 %3388
      %3390 = vrot.lane.b32.xlu0 %v3159, 17
      %v3391 = vpop.permute.xlu0 %3390
      %3392 = vrot.lane.b32.xlu0 %v3182, 17
      %v3393 = vpop.permute.xlu0 %3392
      %3394 = vrot.lane.b32.xlu0 %v3183, 17
      %v3395 = vpop.permute.xlu0 %3394
      %3396 = vrot.lane.b32.xlu0 %v3175, 17
      %v3397 = vpop.permute.xlu0 %3396
      %3398 = vrot.lane.b32.xlu0 %v3184, 17
      %v3399 = vpop.permute.xlu0 %3398
      %3400 = vrot.lane.b32.xlu0 %v3185, 17
      %v3401 = vpop.permute.xlu0 %3400
      %3402 = vrot.lane.b32.xlu0 %v3181, 17
      %v3403 = vpop.permute.xlu0 %3402
      %3404 = vrot.lane.b32.xlu0 %v3191, 17
      %v3405 = vpop.permute.xlu0 %3404
      %3406 = vrot.lane.b32.xlu0 %v3198, 17
      %v3407 = vpop.permute.xlu0 %3406
      %3408 = vrot.lane.b32.xlu0 %v3193, 17
      %v3409 = vpop.permute.xlu0 %3408
      %3410 = vrot.lane.b32.xlu0 %v3195, 17
      %v3411 = vpop.permute.xlu0 %3410
      %3412 = vrot.lane.b32.xlu0 %v3199, 17
      %v3413 = vpop.permute.xlu0 %3412
      %3414 = vrot.lane.b32.xlu0 %v3197, 17
      %v3415 = vpop.permute.xlu0 %3414
      %3416 = vrot.lane.b32.xlu0 %v3207, 17
      %v3417 = vpop.permute.xlu0 %3416
      %3418 = vrot.lane.b32.xlu0 %v3218, 17
      %v3419 = vpop.permute.xlu0 %3418
      %3420 = vrot.lane.b32.xlu0 %v3219, 17
      %v3421 = vpop.permute.xlu0 %3420
      %3422 = vrot.lane.b32.xlu0 %v3213, 17
      %v3423 = vpop.permute.xlu0 %3422
      %3424 = vrot.lane.b32.xlu0 %v3220, 17
      %v3425 = vpop.permute.xlu0 %3424
      %3426 = vrot.lane.b32.xlu0 %v3221, 17
      %v3427 = vpop.permute.xlu0 %3426
      %3428 = vrot.lane.b32.xlu0 %v3229, 17
      %v3429 = vpop.permute.xlu0 %3428
      %3430 = vrot.lane.b32.xlu0 %v3240, 17
      %v3431 = vpop.permute.xlu0 %3430
      %3432 = vrot.lane.b32.xlu0 %v3241, 17
      %v3433 = vpop.permute.xlu0 %3432
      %3434 = vrot.lane.b32.xlu0 %v3235, 17
      %v3435 = vpop.permute.xlu0 %3434
      %3436 = vrot.lane.b32.xlu0 %v3242, 17
      %v3437 = vpop.permute.xlu0 %3436
      %3438 = vrot.lane.b32.xlu0 %v3243, 17
      %v3439 = vpop.permute.xlu0 %3438
      %3440 = vrot.lane.b32.xlu0 %v3251, 17
      %v3441 = vpop.permute.xlu0 %3440
      %3442 = vrot.lane.b32.xlu0 %v3262, 17
      %v3443 = vpop.permute.xlu0 %3442
      %3444 = vrot.lane.b32.xlu0 %v3263, 17
      %v3445 = vpop.permute.xlu0 %3444
      %3446 = vrot.lane.b32.xlu0 %v3257, 17
      %v3447 = vpop.permute.xlu0 %3446
      %3448 = vrot.lane.b32.xlu0 %v3264, 17
      %v3449 = vpop.permute.xlu0 %3448
      %3450 = vrot.lane.b32.xlu0 %v3265, 17
      %v3451 = vpop.permute.xlu0 %3450
      %3452 = vrot.lane.b32.xlu0 %v3273, 17
      %v3453 = vpop.permute.xlu0 %3452
      %3454 = vrot.lane.b32.xlu0 %v3284, 17
      %v3455 = vpop.permute.xlu0 %3454
      %3456 = vrot.lane.b32.xlu0 %v3285, 17
      %v3457 = vpop.permute.xlu0 %3456
      %3458 = vrot.lane.b32.xlu0 %v3279, 17
      %v3459 = vpop.permute.xlu0 %3458
      %3460 = vrot.lane.b32.xlu0 %v3286, 17
      %v3461 = vpop.permute.xlu0 %3460
      %3462 = vrot.lane.b32.xlu0 %v3287, 17
      %v3463 = vpop.permute.xlu0 %3462
      %v3464 = vsel %vm1903, %v3357, %v3359
      %v3465 = vsel %vm1903, %v3359, %v3361
      %v3466 = vsel %vm1903, %v3363, %v3365
      %v3467 = vsel %vm1903, %v3365, %v3367
      %v3468 = vsel %vm1903, %v3369, %v3371
      %v3469 = vsel %vm1903, %v3371, %v3373
      %v3470 = vsel %vm1903, %v3375, %v3377
      %v3471 = vsel %vm1903, %v3377, %v3379
      %v3472 = vsel %vm1903, %v3381, %v3383
      %v3473 = vsel %vm1903, %v3383, %v3385
      %v3474 = vsel %vm1903, %v3387, %v3389
      %v3475 = vsel %vm1903, %v3389, %v3391
      %v3476 = vsel %vm1903, %v3393, %v3395
      %v3477 = vsel %vm1903, %v3395, %v3397
      %v3478 = vsel %vm1903, %v3399, %v3401
      %v3479 = vsel %vm1903, %v3401, %v3403
      %v3480 = vsel %vm1903, %v3405, %v3407
      %v3481 = vsel %vm1903, %v3407, %v3409
      %v3482 = vsel %vm1903, %v3411, %v3413
      %v3483 = vsel %vm1903, %v3413, %v3415
      %v3484 = vsel %vm1903, %v3417, %v3419
      %v3485 = vsel %vm1903, %v3419, %v3421
      %v3486 = vsel %vm1903, %v3423, %v3425
      %v3487 = vsel %vm1903, %v3425, %v3427
      %v3488 = vsel %vm1903, %v3429, %v3431
      %v3489 = vsel %vm1903, %v3431, %v3433
      %v3490 = vsel %vm1903, %v3435, %v3437
      %v3491 = vsel %vm1903, %v3437, %v3439
      %v3492 = vsel %vm1903, %v3441, %v3443
      %v3493 = vsel %vm1903, %v3443, %v3445
      %v3494 = vsel %vm1903, %v3447, %v3449
      %v3495 = vsel %vm1903, %v3449, %v3451
      %v3496 = vsel %vm1903, %v3453, %v3455
      %v3497 = vsel %vm1903, %v3455, %v3457
      %v3498 = vsel %vm1903, %v3459, %v3461
      %v3499 = vsel %vm1903, %v3461, %v3463
      %v3537 = vsel %vm938, %v3342, 0
      %v3540 = vsel %vm938, %v3345, 0
      %3542 = vmatprep.subr.bf16.mxu0 %v3479
      %3543 = vmatpush1.bf16.msra.mxu0 %v3478
      %3544 = vmatprep.subr.bf16.mxu0 %v3477
      %3545 = vmatpush1.bf16.msra.mxu0 %v3476
      %3546 = vmatprep.subr.bf16.mxu0 %v3475
      %3547 = vmatpush1.bf16.msra.mxu0 %v3474
      %3548 = vmatprep.subr.bf16.mxu0 %v3473
      %3549 = vmatpush1.bf16.msra.mxu0 %v3472
      %3550 = vmatprep.subr.bf16.mxu0 %v3471
      %3551 = vmatpush1.bf16.msra.mxu0 %v3470
      %3552 = vmatprep.subr.bf16.mxu0 %v3469
      %3553 = vmatpush1.bf16.msra.mxu0 %v3468
      %3554 = vmatprep.subr.bf16.mxu0 %v3467
      %3555 = vmatpush1.bf16.msra.mxu0 %v3466
      %3556 = vmatprep.subr.bf16.mxu0 %v3465
      %3557 = vmatpush1.bf16.msra.mxu0 %v3464
      %3558 = vmatprep.subr.bf16.mxu0 %v3495
      %3559 = vmatpush2.bf16.msra.mxu0 %v3494
      %3560 = vmatprep.subr.bf16.mxu0 %v3493
      %3561 = vmatpush2.bf16.msra.mxu0 %v3492
      %3562 = vmatprep.subr.bf16.mxu0 %v3491
      %3563 = vmatpush2.bf16.msra.mxu0 %v3490
      %3564 = vmatprep.subr.bf16.mxu0 %v3489
      %3565 = vmatpush2.bf16.msra.mxu0 %v3488
      %3566 = vmatprep.subr.bf16.mxu0 %v3487
      %3567 = vmatpush2.bf16.msra.mxu0 %v3486
      %3568 = vmatprep.subr.bf16.mxu0 %v3485
      %3569 = vmatpush2.bf16.msra.mxu0 %v3484
      %3570 = vmatprep.subr.bf16.mxu0 %v3483
      %3571 = vmatpush2.bf16.msra.mxu0 %v3482
      %3572 = vmatprep.subr.bf16.mxu0 %v3481
      %3573 = vmatpush2.bf16.msra.mxu0 %v3480
      %3574 = vmatprep.mubr.bf16.mxu0 %v3341
      %3575 = vmatmul.mubr.bf16.gmra.mxu0 %v3340
      %v3576 = vpop.f32.mrf.mxu0
      %v3577 = vadd.f32 %v3303, %v3576
      %v3578 = vpop.f32.mrf.mxu0
      %v3579 = vadd.f32 %v3303, %v3578
      %v3580 = vpop.f32.mrf.mxu0
      %v3581 = vadd.f32 %v3308, %v3580
      %v3582 = vpop.f32.mrf.mxu0
      %v3583 = vadd.f32 %v3308, %v3582
      %3584 = vmatprep.mubr.bf16.mxu0 %v3344
      %3585 = vmatmul.mubr.bf16.gmra.mxu0 %v3343
      %v3586 = vpop.f32.mrf.mxu0
      %v3587 = vadd.f32 %v3313, %v3586
      %v3588 = vpop.f32.mrf.mxu0
      %v3589 = vadd.f32 %v3313, %v3588
      %v3590 = vpop.f32.mrf.mxu0
      %v3591 = vadd.f32 %v3318, %v3590
      %v3592 = vpop.f32.mrf.mxu0
      %v3593 = vadd.f32 %v3318, %v3592
      %3594 = vdwg.mxu0
      %3595 = vmatprep.subr.bf16.mxu0 0
      %3596 = vmatpush1.bf16.msra.mxu0 0
      %3597 = vmatprep.subr.bf16.mxu0 0
      %3598 = vmatpush1.bf16.msra.mxu0 0
      %3599 = vmatprep.subr.bf16.mxu0 0
      %3600 = vmatpush1.bf16.msra.mxu0 0
      %3601 = vmatprep.subr.bf16.mxu0 0
      %3602 = vmatpush1.bf16.msra.mxu0 0
      %3603 = vmatprep.subr.bf16.mxu0 0
      %3604 = vmatpush1.bf16.msra.mxu0 0
      %3605 = vmatprep.subr.bf16.mxu0 0
      %3606 = vmatpush1.bf16.msra.mxu0 0
      %3607 = vmatprep.subr.bf16.mxu0 %v3499
      %3608 = vmatpush1.bf16.msra.mxu0 %v3498
      %3609 = vmatprep.subr.bf16.mxu0 %v3497
      %3610 = vmatpush1.bf16.msra.mxu0 %v3496
      %3611 = vmatprep.subr.bf16.mxu0 0
      %3612 = vmatpush2.bf16.msra.mxu0 0
      %3613 = vmatprep.subr.bf16.mxu0 0
      %3614 = vmatpush2.bf16.msra.mxu0 0
      %3615 = vmatprep.subr.bf16.mxu0 0
      %3616 = vmatpush2.bf16.msra.mxu0 0
      %3617 = vmatprep.subr.bf16.mxu0 0
      %3618 = vmatpush2.bf16.msra.mxu0 0
      %3619 = vmatprep.subr.bf16.mxu0 0
      %3620 = vmatpush2.bf16.msra.mxu0 0
      %3621 = vmatprep.subr.bf16.mxu0 0
      %3622 = vmatpush2.bf16.msra.mxu0 0
      %3623 = vmatprep.subr.bf16.mxu0 0
      %3624 = vmatpush2.bf16.msra.mxu0 0
      %3625 = vmatprep.subr.bf16.mxu0 0
      %3626 = vmatpush2.bf16.msra.mxu0 0
      %3627 = vmatprep.mubr.bf16.mxu0 0
      %3628 = vmatmul.mubr.bf16.gmra.mxu0 %v3537
      %v3629 = vpop.f32.mrf.mxu0
      %v3630 = vadd.f32 %v3577, %v3629
      %v3631 = vpop.f32.mrf.mxu0
      %v3632 = vadd.f32 %v3579, %v3631
      %v3633 = vpop.f32.mrf.mxu0
      %v3634 = vadd.f32 %v3581, %v3633
      %v3635 = vpop.f32.mrf.mxu0
      %v3636 = vadd.f32 %v3583, %v3635
      %3637 = vmatprep.mubr.bf16.mxu0 0
      %3638 = vmatmul.mubr.bf16.gmra.mxu0 %v3540
      %v3639 = vpop.f32.mrf.mxu0
      %v3640 = vadd.f32 %v3587, %v3639
      %v3641 = vpop.f32.mrf.mxu0
      %v3642 = vadd.f32 %v3589, %v3641
      %v3643 = vpop.f32.mrf.mxu0
      %v3644 = vadd.f32 %v3591, %v3643
      %v3645 = vpop.f32.mrf.mxu0
      %v3646 = vadd.f32 %v3593, %v3645
      %3647 = vdwg.mxu0
      %v3648 = vld [vmem:[%s15] sm:$0xf]
      %v3649 = vld [vmem:[%s15 + $0x4] sm:$0xf]
      %v3650 = vld [vmem:[%s15 + $0x8] sm:$0xf]
      %v3651 = vld [vmem:[%s15 + $0xc] sm:$0xf]
      %v3652 = vpack.c.bf16 %v770, %v768
      %v3653 = vpack.c.bf16 %v771, %v769
      %v3654 = vpack.c.bf16 %v774, %v772
      %v3655 = vpack.c.bf16 %v775, %v773
      %v3656 = vpack.c.bf16 %v778, %v776
      %v3657 = vpack.c.bf16 %v779, %v777
      %v3658 = vpack.c.bf16 %v782, %v780
      %v3659 = vpack.c.bf16 %v783, %v781
      %v3660 = vld [vmem:[%s16] sm:$0xff]
      %v3661 = vld [vmem:[%s16 + $0x8] sm:$0xff]
      %v3662 = vld [vmem:[%s16 + $0x10] sm:$0xff]
      %v3663 = vld [vmem:[%s16 + $0x18] sm:$0xff]
      %3665 = vset.pattern.permute.xlu0 0
      %3666 = vperm.xlu0 %3665, %v3660
      %v3667 = vpop.permute.xlu0 %3666
      %3670 = vset.pattern.permute.xlu0 0
      %3671 = vperm.xlu0 %3670, %v3661
      %v3672 = vpop.permute.xlu0 %3671
      %3675 = vset.pattern.permute.xlu0 0
      %3676 = vperm.xlu0 %3675, %v3662
      %v3677 = vpop.permute.xlu0 %3676
      %3680 = vset.pattern.permute.xlu0 0
      %3681 = vperm.xlu0 %3680, %v3663
      %v3682 = vpop.permute.xlu0 %3681
      %v3688 = vunpack.c.l.b16 %v3648
      %v3689 = vunpack.c.l.b16 %v3649
      %v3690 = vunpack.c.l.b16 %v3650
      %v3691 = vunpack.c.l.b16 %v3651
      %v3692 = vpack.c.b16 %v3689, %v3688
      %v3693 = vpack.c.b16 %v3691, %v3690
      %v3695 = vsel %vm828, %v3692, 0
      %v3698 = vsel %vm828, %v3693, 0
      %3700 = vmatprep.subr.bf16.mxu0 0
      %3701 = vmatpush1.bf16.msra.mxu0 0
      %3702 = vmatprep.subr.bf16.mxu0 0
      %3703 = vmatpush1.bf16.msra.mxu0 0
      %3704 = vmatprep.subr.bf16.mxu0 0
      %3705 = vmatpush1.bf16.msra.mxu0 0
      %3706 = vmatprep.subr.bf16.mxu0 0
      %3707 = vmatpush1.bf16.msra.mxu0 0
      %3708 = vmatprep.subr.bf16.mxu0 %v3659
      %3709 = vmatpush1.bf16.msra.mxu0 %v3658
      %3710 = vmatprep.subr.bf16.mxu0 %v3657
      %3711 = vmatpush1.bf16.msra.mxu0 %v3656
      %3712 = vmatprep.subr.bf16.mxu0 %v3655
      %3713 = vmatpush1.bf16.msra.mxu0 %v3654
      %3714 = vmatprep.subr.bf16.mxu0 %v3653
      %3715 = vmatpush1.bf16.msra.mxu0 %v3652
      %3716 = vmatprep.subr.bf16.mxu0 0
      %3717 = vmatpush2.bf16.msra.mxu0 0
      %3718 = vmatprep.subr.bf16.mxu0 0
      %3719 = vmatpush2.bf16.msra.mxu0 0
      %3720 = vmatprep.subr.bf16.mxu0 0
      %3721 = vmatpush2.bf16.msra.mxu0 0
      %3722 = vmatprep.subr.bf16.mxu0 0
      %3723 = vmatpush2.bf16.msra.mxu0 0
      %3724 = vmatprep.subr.bf16.mxu0 0
      %3725 = vmatpush2.bf16.msra.mxu0 0
      %3726 = vmatprep.subr.bf16.mxu0 0
      %3727 = vmatpush2.bf16.msra.mxu0 0
      %3728 = vmatprep.subr.bf16.mxu0 0
      %3729 = vmatpush2.bf16.msra.mxu0 0
      %3730 = vmatprep.subr.bf16.mxu0 0
      %3731 = vmatpush2.bf16.msra.mxu0 0
      %3732 = vmatprep.mubr.bf16.mxu0 0
      %3733 = vmatmul.mubr.bf16.gmra.mxu0 %v3695
      %v3734 = vpop.f32.mrf.mxu0
      %v3735 = vadd.f32 %v3667, %v3734
      %v3736 = vpop.f32.mrf.mxu0
      %v3737 = vadd.f32 %v3667, %v3736
      %v3738 = vpop.f32.mrf.mxu0
      %v3739 = vadd.f32 %v3672, %v3738
      %v3740 = vpop.f32.mrf.mxu0
      %v3741 = vadd.f32 %v3672, %v3740
      %3742 = vmatprep.mubr.bf16.mxu0 0
      %3743 = vmatmul.mubr.bf16.gmra.mxu0 %v3698
      %v3744 = vpop.f32.mrf.mxu0
      %v3745 = vadd.f32 %v3677, %v3744
      %v3746 = vpop.f32.mrf.mxu0
      %v3747 = vadd.f32 %v3677, %v3746
      %v3748 = vpop.f32.mrf.mxu0
      %v3749 = vadd.f32 %v3682, %v3748
      %v3750 = vpop.f32.mrf.mxu0
      %v3751 = vadd.f32 %v3682, %v3750
      %3752 = vdwg.mxu0
      %v3753 = vadd.f32 %v3630, %v3735
      %v3754 = vadd.f32 %v3632, %v3737
      %v3755 = vadd.f32 %v3634, %v3739
      %v3756 = vadd.f32 %v3636, %v3741
      %v3757 = vadd.f32 %v3640, %v3745
      %v3758 = vadd.f32 %v3642, %v3747
      %v3759 = vadd.f32 %v3644, %v3749
      %v3760 = vadd.f32 %v3646, %v3751
      %v3761 = vpack.c.bf16 %v3755, %v3753
      %v3762 = vpack.c.bf16 %v3756, %v3754
      %v3763 = vpack.c.bf16 %v3759, %v3757
      %v3764 = vpack.c.bf16 %v3760, %v3758
      %v3765 = vmul.bf16 %v3762, %v1671
      %v3766 = vmul.bf16 %v3761, %v1675
      %v3767 = vmul.bf16 %v3762, %v1673
      %v3768 = vmul.bf16 %v3764, %v1671
      %v3769 = vmul.bf16 %v3763, %v1675
      %v3770 = vmul.bf16 %v3764, %v1673
      %v3771 = vmul.bf16 %v3762, %v1708
      %v3772 = vmul.bf16 %v3761, %v1712
      %v3773 = vmul.bf16 %v3762, %v1710
      %v3774 = vmul.bf16 %v3764, %v1708
      %v3775 = vmul.bf16 %v3763, %v1712
      %v3776 = vmul.bf16 %v3764, %v1710
      %v3777 = vmul.bf16 %v3762, %v1739
      %v3778 = vmul.bf16 %v3761, %v1743
      %v3779 = vmul.bf16 %v3762, %v1741
      %v3780 = vmul.bf16 %v3764, %v1739
      %v3781 = vmul.bf16 %v3763, %v1743
      %v3782 = vmul.bf16 %v3764, %v1741
      %v3783 = vmul.bf16 %v3762, %v1770
      %v3784 = vmul.bf16 %v3761, %v1774
      %v3785 = vmul.bf16 %v3762, %v1772
      %v3786 = vmul.bf16 %v3764, %v1770
      %v3787 = vmul.bf16 %v3763, %v1774
      %v3788 = vmul.bf16 %v3764, %v1772
      %v3789 = vmul.bf16 %v3761, %v1801
      %v3790 = vmul.bf16 %v3762, %v1805
      %v3791 = vmul.bf16 %v3761, %v1803
      %v3792 = vmul.bf16 %v3763, %v1801
      %v3793 = vmul.bf16 %v3764, %v1805
      %v3794 = vmul.bf16 %v3763, %v1803
      %v3795 = vmul.bf16 %v3761, %v1832
      %v3796 = vmul.bf16 %v3762, %v1836
      %v3797 = vmul.bf16 %v3761, %v1834
      %v3798 = vmul.bf16 %v3763, %v1832
      %v3799 = vmul.bf16 %v3764, %v1836
      %v3800 = vmul.bf16 %v3763, %v1834
      %v3801 = vmul.bf16 %v3761, %v1863
      %v3802 = vmul.bf16 %v3762, %v1867
      %v3803 = vmul.bf16 %v3761, %v1865
      %v3804 = vmul.bf16 %v3763, %v1863
      %v3805 = vmul.bf16 %v3764, %v1867
      %v3806 = vmul.bf16 %v3763, %v1865
      %v3807 = vmul.bf16 %v3761, %v1900
      %v3808 = vmul.bf16 %v3762, %v1904
      %v3809 = vmul.bf16 %v3761, %v1902
      %v3810 = vmul.bf16 %v3763, %v1900
      %v3811 = vmul.bf16 %v3764, %v1904
      %v3812 = vmul.bf16 %v3763, %v1902
      %3819 = vrot.lane.b32.xlu0 %v3771, 127
      %v3820 = vpop.permute.xlu0 %3819
      %3821 = vrot.lane.b32.xlu0 %v3772, 127
      %v3822 = vpop.permute.xlu0 %3821
      %3823 = vrot.lane.b32.xlu0 %v3773, 127
      %v3824 = vpop.permute.xlu0 %3823
      %3825 = vrot.lane.b32.xlu0 %v3774, 127
      %v3826 = vpop.permute.xlu0 %3825
      %3827 = vrot.lane.b32.xlu0 %v3775, 127
      %v3828 = vpop.permute.xlu0 %3827
      %3829 = vrot.lane.b32.xlu0 %v3776, 127
      %v3830 = vpop.permute.xlu0 %3829
      %v3831 = vsel %vm1773, %v3820, %v3822
      %v3832 = vsel %vm1773, %v3822, %v3824
      %v3833 = vsel %vm1773, %v3826, %v3828
      %v3834 = vsel %vm1773, %v3828, %v3830
      %3841 = vrot.lane.b32.xlu0 %v3777, 126
      %v3842 = vpop.permute.xlu0 %3841
      %3843 = vrot.lane.b32.xlu0 %v3778, 126
      %v3844 = vpop.permute.xlu0 %3843
      %3845 = vrot.lane.b32.xlu0 %v3779, 126
      %v3846 = vpop.permute.xlu0 %3845
      %3847 = vrot.lane.b32.xlu0 %v3780, 126
      %v3848 = vpop.permute.xlu0 %3847
      %3849 = vrot.lane.b32.xlu0 %v3781, 126
      %v3850 = vpop.permute.xlu0 %3849
      %3851 = vrot.lane.b32.xlu0 %v3782, 126
      %v3852 = vpop.permute.xlu0 %3851
      %v3853 = vsel %vm2000, %v3842, %v3844
      %v3854 = vsel %vm2000, %v3844, %v3846
      %v3855 = vsel %vm2000, %v3848, %v3850
      %v3856 = vsel %vm2000, %v3850, %v3852
      %3863 = vrot.lane.b32.xlu0 %v3783, 112
      %v3864 = vpop.permute.xlu0 %3863
      %3865 = vrot.lane.b32.xlu0 %v3784, 112
      %v3866 = vpop.permute.xlu0 %3865
      %3867 = vrot.lane.b32.xlu0 %v3785, 112
      %v3868 = vpop.permute.xlu0 %3867
      %3869 = vrot.lane.b32.xlu0 %v3786, 112
      %v3870 = vpop.permute.xlu0 %3869
      %3871 = vrot.lane.b32.xlu0 %v3787, 112
      %v3872 = vpop.permute.xlu0 %3871
      %3873 = vrot.lane.b32.xlu0 %v3788, 112
      %v3874 = vpop.permute.xlu0 %3873
      %v3875 = vsel %vm1711, %v3864, %v3866
      %v3876 = vsel %vm1711, %v3866, %v3868
      %v3877 = vsel %vm1711, %v3870, %v3872
      %v3878 = vsel %vm1711, %v3872, %v3874
      %3883 = vrot.lane.b32.xlu0 %v3761, 111
      %v3884 = vpop.permute.xlu0 %3883
      %3885 = vrot.lane.b32.xlu0 %v3762, 111
      %v3886 = vpop.permute.xlu0 %3885
      %3887 = vrot.lane.b32.xlu0 %v3763, 111
      %v3888 = vpop.permute.xlu0 %3887
      %3889 = vrot.lane.b32.xlu0 %v3764, 111
      %v3890 = vpop.permute.xlu0 %3889
      %v3891 = vsel %vm1674, %v3884, %v3886
      %v3892 = vsel %vm1674, %v3888, %v3890
      %3899 = vrot.lane.b32.xlu0 %v3789, 110
      %v3900 = vpop.permute.xlu0 %3899
      %3901 = vrot.lane.b32.xlu0 %v3790, 110
      %v3902 = vpop.permute.xlu0 %3901
      %3903 = vrot.lane.b32.xlu0 %v3791, 110
      %v3904 = vpop.permute.xlu0 %3903
      %3905 = vrot.lane.b32.xlu0 %v3792, 110
      %v3906 = vpop.permute.xlu0 %3905
      %3907 = vrot.lane.b32.xlu0 %v3793, 110
      %v3908 = vpop.permute.xlu0 %3907
      %3909 = vrot.lane.b32.xlu0 %v3794, 110
      %v3910 = vpop.permute.xlu0 %3909
      %v3911 = vsel %vm2117, %v3900, %v3902
      %v3912 = vsel %vm2117, %v3902, %v3904
      %v3913 = vsel %vm2117, %v3906, %v3908
      %v3914 = vsel %vm2117, %v3908, %v3910
      %3921 = vrot.lane.b32.xlu0 %v3795, 96
      %v3922 = vpop.permute.xlu0 %3921
      %3923 = vrot.lane.b32.xlu0 %v3796, 96
      %v3924 = vpop.permute.xlu0 %3923
      %3925 = vrot.lane.b32.xlu0 %v3797, 96
      %v3926 = vpop.permute.xlu0 %3925
      %3927 = vrot.lane.b32.xlu0 %v3798, 96
      %v3928 = vpop.permute.xlu0 %3927
      %3929 = vrot.lane.b32.xlu0 %v3799, 96
      %v3930 = vpop.permute.xlu0 %3929
      %3931 = vrot.lane.b32.xlu0 %v3800, 96
      %v3932 = vpop.permute.xlu0 %3931
      %v3933 = vsel %vm2162, %v3922, %v3924
      %v3934 = vsel %vm2162, %v3924, %v3926
      %v3935 = vsel %vm2162, %v3928, %v3930
      %v3936 = vsel %vm2162, %v3930, %v3932
      %3943 = vrot.lane.b32.xlu0 %v3801, 95
      %v3944 = vpop.permute.xlu0 %3943
      %3945 = vrot.lane.b32.xlu0 %v3802, 95
      %v3946 = vpop.permute.xlu0 %3945
      %3947 = vrot.lane.b32.xlu0 %v3803, 95
      %v3948 = vpop.permute.xlu0 %3947
      %3949 = vrot.lane.b32.xlu0 %v3804, 95
      %v3950 = vpop.permute.xlu0 %3949
      %3951 = vrot.lane.b32.xlu0 %v3805, 95
      %v3952 = vpop.permute.xlu0 %3951
      %3953 = vrot.lane.b32.xlu0 %v3806, 95
      %v3954 = vpop.permute.xlu0 %3953
      %v3955 = vsel %vm2207, %v3944, %v3946
      %v3956 = vsel %vm2207, %v3946, %v3948
      %v3957 = vsel %vm2207, %v3950, %v3952
      %v3958 = vsel %vm2207, %v3952, %v3954
      %3965 = vrot.lane.b32.xlu0 %v3807, 94
      %v3966 = vpop.permute.xlu0 %3965
      %3967 = vrot.lane.b32.xlu0 %v3808, 94
      %v3968 = vpop.permute.xlu0 %3967
      %3969 = vrot.lane.b32.xlu0 %v3809, 94
      %v3970 = vpop.permute.xlu0 %3969
      %3971 = vrot.lane.b32.xlu0 %v3810, 94
      %v3972 = vpop.permute.xlu0 %3971
      %3973 = vrot.lane.b32.xlu0 %v3811, 94
      %v3974 = vpop.permute.xlu0 %3973
      %3975 = vrot.lane.b32.xlu0 %v3812, 94
      %v3976 = vpop.permute.xlu0 %3975
      %v3977 = vsel %vm2252, %v3966, %v3968
      %v3978 = vsel %vm2252, %v3968, %v3970
      %v3979 = vsel %vm2252, %v3972, %v3974
      %v3980 = vsel %vm2252, %v3974, %v3976
      %v3981 = vld [vmem:[%s17] sm:$0xff]
      %v3982 = vld [vmem:[%s17 + $0x8] sm:$0xf]
      %v3983 = vld [vmem:[%s17 + $0xc] sm:$0xff]
      %v3984 = vld [vmem:[%s17 + $0x14] sm:$0xf]
      %v3985 = vld [vmem:[%s17 + $0x18] sm:$0xff]
      %v3986 = vld [vmem:[%s17 + $0x20] sm:$0xf]
      %v3987 = vld [vmem:[%s17 + $0x24] sm:$0xff]
      %v3988 = vld [vmem:[%s17 + $0x2c] sm:$0xf]
      %v3989 = vld [vmem:[%s17 + $0x30] sm:$0xff]
      %v3990 = vld [vmem:[%s17 + $0x38] sm:$0xf]
      %v3991 = vld [vmem:[%s17 + $0x3c] sm:$0xff]
      %v3992 = vld [vmem:[%s17 + $0x44] sm:$0xf]
      %v3993 = vld [vmem:[%s17 + $0x48] sm:$0xff]
      %v3994 = vld [vmem:[%s17 + $0x50] sm:$0xf]
      %v3995 = vld [vmem:[%s17 + $0x54] sm:$0xff]
      %v3996 = vld [vmem:[%s17 + $0x5c] sm:$0xf]
      %v3997 = vld [vmem:[%s18] sm:$0xff]
      %v3998 = vld [vmem:[%s18 + $0x8] sm:$0xff]
      %v3999 = vld [vmem:[%s18 + $0x10] sm:$0xff]
      %v4000 = vld [vmem:[%s18 + $0x18] sm:$0xff]
      %v4001 = vld [vmem:[%s18 + $0x20] sm:$0xff]
      %v4002 = vld [vmem:[%s18 + $0x28] sm:$0xff]
      %v4003 = vld [vmem:[%s18 + $0x30] sm:$0xff]
      %v4004 = vld [vmem:[%s18 + $0x38] sm:$0xff]
      %4006 = vset.pattern.permute.xlu0 0
      %4007 = vperm.xlu0 %4006, %v3997
      %v4008 = vpop.permute.xlu0 %4007
      %4011 = vset.pattern.permute.xlu0 0
      %4012 = vperm.xlu0 %4011, %v3998
      %v4013 = vpop.permute.xlu0 %4012
      %4016 = vset.pattern.permute.xlu0 0
      %4017 = vperm.xlu0 %4016, %v3999
      %v4018 = vpop.permute.xlu0 %4017
      %4021 = vset.pattern.permute.xlu0 0
      %4022 = vperm.xlu0 %4021, %v4000
      %v4023 = vpop.permute.xlu0 %4022
      %4026 = vset.pattern.permute.xlu0 0
      %4027 = vperm.xlu0 %4026, %v4001
      %v4028 = vpop.permute.xlu0 %4027
      %4031 = vset.pattern.permute.xlu0 0
      %4032 = vperm.xlu0 %4031, %v4002
      %v4033 = vpop.permute.xlu0 %4032
      %4036 = vset.pattern.permute.xlu0 0
      %4037 = vperm.xlu0 %4036, %v4003
      %v4038 = vpop.permute.xlu0 %4037
      %4041 = vset.pattern.permute.xlu0 0
      %4042 = vperm.xlu0 %4041, %v4004
      %v4043 = vpop.permute.xlu0 %4042
      %v4061 = vunpack.c.l.b16 %v3981
      %v4062 = vunpack.c.h.b16 %v3981
      %v4063 = vunpack.c.l.b16 %v3982
      %v4064 = vunpack.c.l.b16 %v3983
      %v4065 = vunpack.c.h.b16 %v3983
      %v4066 = vunpack.c.l.b16 %v3984
      %v4067 = vunpack.c.l.b16 %v3985
      %v4068 = vunpack.c.h.b16 %v3985
      %v4069 = vunpack.c.l.b16 %v3986
      %v4070 = vunpack.c.l.b16 %v3987
      %v4071 = vunpack.c.h.b16 %v3987
      %v4072 = vunpack.c.l.b16 %v3988
      %v4073 = vunpack.c.l.b16 %v3989
      %v4074 = vunpack.c.h.b16 %v3989
      %v4075 = vunpack.c.l.b16 %v3990
      %v4076 = vunpack.c.l.b16 %v3991
      %v4077 = vunpack.c.h.b16 %v3991
      %v4078 = vunpack.c.l.b16 %v3992
      %v4079 = vunpack.c.l.b16 %v3993
      %v4080 = vunpack.c.h.b16 %v3993
      %v4081 = vunpack.c.l.b16 %v3994
      %v4082 = vunpack.c.l.b16 %v3995
      %v4083 = vunpack.c.h.b16 %v3995
      %v4084 = vunpack.c.l.b16 %v3996
      %v4085 = vpack.c.b16 %v4064, %v4061
      %v4086 = vpack.c.b16 %v4065, %v4062
      %v4087 = vpack.c.b16 %v4066, %v4063
      %v4088 = vpack.c.b16 %v4070, %v4067
      %v4089 = vpack.c.b16 %v4071, %v4068
      %v4090 = vpack.c.b16 %v4072, %v4069
      %v4091 = vpack.c.b16 %v4076, %v4073
      %v4092 = vpack.c.b16 %v4077, %v4074
      %v4093 = vpack.c.b16 %v4078, %v4075
      %v4094 = vpack.c.b16 %v4082, %v4079
      %v4095 = vpack.c.b16 %v4083, %v4080
      %v4096 = vpack.c.b16 %v4084, %v4081
      %4111 = vrot.lane.b32.xlu0 %v3765, 17
      %v4112 = vpop.permute.xlu0 %4111
      %4113 = vrot.lane.b32.xlu0 %v3766, 17
      %v4114 = vpop.permute.xlu0 %4113
      %4115 = vrot.lane.b32.xlu0 %v3767, 17
      %v4116 = vpop.permute.xlu0 %4115
      %4117 = vrot.lane.b32.xlu0 %v3768, 17
      %v4118 = vpop.permute.xlu0 %4117
      %4119 = vrot.lane.b32.xlu0 %v3769, 17
      %v4120 = vpop.permute.xlu0 %4119
      %4121 = vrot.lane.b32.xlu0 %v3770, 17
      %v4122 = vpop.permute.xlu0 %4121
      %4123 = vrot.lane.b32.xlu0 %v3831, 17
      %v4124 = vpop.permute.xlu0 %4123
      %4125 = vrot.lane.b32.xlu0 %v3832, 17
      %v4126 = vpop.permute.xlu0 %4125
      %4127 = vrot.lane.b32.xlu0 %v3824, 17
      %v4128 = vpop.permute.xlu0 %4127
      %4129 = vrot.lane.b32.xlu0 %v3833, 17
      %v4130 = vpop.permute.xlu0 %4129
      %4131 = vrot.lane.b32.xlu0 %v3834, 17
      %v4132 = vpop.permute.xlu0 %4131
      %4133 = vrot.lane.b32.xlu0 %v3830, 17
      %v4134 = vpop.permute.xlu0 %4133
      %4135 = vrot.lane.b32.xlu0 %v3853, 17
      %v4136 = vpop.permute.xlu0 %4135
      %4137 = vrot.lane.b32.xlu0 %v3854, 17
      %v4138 = vpop.permute.xlu0 %4137
      %4139 = vrot.lane.b32.xlu0 %v3846, 17
      %v4140 = vpop.permute.xlu0 %4139
      %4141 = vrot.lane.b32.xlu0 %v3855, 17
      %v4142 = vpop.permute.xlu0 %4141
      %4143 = vrot.lane.b32.xlu0 %v3856, 17
      %v4144 = vpop.permute.xlu0 %4143
      %4145 = vrot.lane.b32.xlu0 %v3852, 17
      %v4146 = vpop.permute.xlu0 %4145
      %4147 = vrot.lane.b32.xlu0 %v3875, 17
      %v4148 = vpop.permute.xlu0 %4147
      %4149 = vrot.lane.b32.xlu0 %v3876, 17
      %v4150 = vpop.permute.xlu0 %4149
      %4151 = vrot.lane.b32.xlu0 %v3868, 17
      %v4152 = vpop.permute.xlu0 %4151
      %4153 = vrot.lane.b32.xlu0 %v3877, 17
      %v4154 = vpop.permute.xlu0 %4153
      %4155 = vrot.lane.b32.xlu0 %v3878, 17
      %v4156 = vpop.permute.xlu0 %4155
      %4157 = vrot.lane.b32.xlu0 %v3874, 17
      %v4158 = vpop.permute.xlu0 %4157
      %4159 = vrot.lane.b32.xlu0 %v3884, 17
      %v4160 = vpop.permute.xlu0 %4159
      %4161 = vrot.lane.b32.xlu0 %v3891, 17
      %v4162 = vpop.permute.xlu0 %4161
      %4163 = vrot.lane.b32.xlu0 %v3886, 17
      %v4164 = vpop.permute.xlu0 %4163
      %4165 = vrot.lane.b32.xlu0 %v3888, 17
      %v4166 = vpop.permute.xlu0 %4165
      %4167 = vrot.lane.b32.xlu0 %v3892, 17
      %v4168 = vpop.permute.xlu0 %4167
      %4169 = vrot.lane.b32.xlu0 %v3890, 17
      %v4170 = vpop.permute.xlu0 %4169
      %4171 = vrot.lane.b32.xlu0 %v3900, 17
      %v4172 = vpop.permute.xlu0 %4171
      %4173 = vrot.lane.b32.xlu0 %v3911, 17
      %v4174 = vpop.permute.xlu0 %4173
      %4175 = vrot.lane.b32.xlu0 %v3912, 17
      %v4176 = vpop.permute.xlu0 %4175
      %4177 = vrot.lane.b32.xlu0 %v3906, 17
      %v4178 = vpop.permute.xlu0 %4177
      %4179 = vrot.lane.b32.xlu0 %v3913, 17
      %v4180 = vpop.permute.xlu0 %4179
      %4181 = vrot.lane.b32.xlu0 %v3914, 17
      %v4182 = vpop.permute.xlu0 %4181
      %4183 = vrot.lane.b32.xlu0 %v3922, 17
      %v4184 = vpop.permute.xlu0 %4183
      %4185 = vrot.lane.b32.xlu0 %v3933, 17
      %v4186 = vpop.permute.xlu0 %4185
      %4187 = vrot.lane.b32.xlu0 %v3934, 17
      %v4188 = vpop.permute.xlu0 %4187
      %4189 = vrot.lane.b32.xlu0 %v3928, 17
      %v4190 = vpop.permute.xlu0 %4189
      %4191 = vrot.lane.b32.xlu0 %v3935, 17
      %v4192 = vpop.permute.xlu0 %4191
      %4193 = vrot.lane.b32.xlu0 %v3936, 17
      %v4194 = vpop.permute.xlu0 %4193
      %4195 = vrot.lane.b32.xlu0 %v3944, 17
      %v4196 = vpop.permute.xlu0 %4195
      %4197 = vrot.lane.b32.xlu0 %v3955, 17
      %v4198 = vpop.permute.xlu0 %4197
      %4199 = vrot.lane.b32.xlu0 %v3956, 17
      %v4200 = vpop.permute.xlu0 %4199
      %4201 = vrot.lane.b32.xlu0 %v3950, 17
      %v4202 = vpop.permute.xlu0 %4201
      %4203 = vrot.lane.b32.xlu0 %v3957, 17
      %v4204 = vpop.permute.xlu0 %4203
      %4205 = vrot.lane.b32.xlu0 %v3958, 17
      %v4206 = vpop.permute.xlu0 %4205
      %4207 = vrot.lane.b32.xlu0 %v3966, 17
      %v4208 = vpop.permute.xlu0 %4207
      %4209 = vrot.lane.b32.xlu0 %v3977, 17
      %v4210 = vpop.permute.xlu0 %4209
      %4211 = vrot.lane.b32.xlu0 %v3978, 17
      %v4212 = vpop.permute.xlu0 %4211
      %4213 = vrot.lane.b32.xlu0 %v3972, 17
      %v4214 = vpop.permute.xlu0 %4213
      %4215 = vrot.lane.b32.xlu0 %v3979, 17
      %v4216 = vpop.permute.xlu0 %4215
      %4217 = vrot.lane.b32.xlu0 %v3980, 17
      %v4218 = vpop.permute.xlu0 %4217
      %v4219 = vsel %vm1903, %v4112, %v4114
      %v4220 = vsel %vm1903, %v4114, %v4116
      %v4221 = vsel %vm1903, %v4118, %v4120
      %v4222 = vsel %vm1903, %v4120, %v4122
      %v4223 = vsel %vm1903, %v4124, %v4126
      %v4224 = vsel %vm1903, %v4126, %v4128
      %v4225 = vsel %vm1903, %v4130, %v4132
      %v4226 = vsel %vm1903, %v4132, %v4134
      %v4227 = vsel %vm1903, %v4136, %v4138
      %v4228 = vsel %vm1903, %v4138, %v4140
      %v4229 = vsel %vm1903, %v4142, %v4144
      %v4230 = vsel %vm1903, %v4144, %v4146
      %v4231 = vsel %vm1903, %v4148, %v4150
      %v4232 = vsel %vm1903, %v4150, %v4152
      %v4233 = vsel %vm1903, %v4154, %v4156
      %v4234 = vsel %vm1903, %v4156, %v4158
      %v4235 = vsel %vm1903, %v4160, %v4162
      %v4236 = vsel %vm1903, %v4162, %v4164
      %v4237 = vsel %vm1903, %v4166, %v4168
      %v4238 = vsel %vm1903, %v4168, %v4170
      %v4239 = vsel %vm1903, %v4172, %v4174
      %v4240 = vsel %vm1903, %v4174, %v4176
      %v4241 = vsel %vm1903, %v4178, %v4180
      %v4242 = vsel %vm1903, %v4180, %v4182
      %v4243 = vsel %vm1903, %v4184, %v4186
      %v4244 = vsel %vm1903, %v4186, %v4188
      %v4245 = vsel %vm1903, %v4190, %v4192
      %v4246 = vsel %vm1903, %v4192, %v4194
      %v4247 = vsel %vm1903, %v4196, %v4198
      %v4248 = vsel %vm1903, %v4198, %v4200
      %v4249 = vsel %vm1903, %v4202, %v4204
      %v4250 = vsel %vm1903, %v4204, %v4206
      %v4251 = vsel %vm1903, %v4208, %v4210
      %v4252 = vsel %vm1903, %v4210, %v4212
      %v4253 = vsel %vm1903, %v4214, %v4216
      %v4254 = vsel %vm1903, %v4216, %v4218
      %v4292 = vsel %vm938, %v4087, 0
      %v4295 = vsel %vm938, %v4090, 0
      %v4298 = vsel %vm938, %v4093, 0
      %v4301 = vsel %vm938, %v4096, 0
      %4303 = vmatprep.subr.bf16.mxu0 %v4234
      %4304 = vmatpush1.bf16.msra.mxu0 %v4233
      %4305 = vmatprep.subr.bf16.mxu0 %v4232
      %4306 = vmatpush1.bf16.msra.mxu0 %v4231
      %4307 = vmatprep.subr.bf16.mxu0 %v4230
      %4308 = vmatpush1.bf16.msra.mxu0 %v4229
      %4309 = vmatprep.subr.bf16.mxu0 %v4228
      %4310 = vmatpush1.bf16.msra.mxu0 %v4227
      %4311 = vmatprep.subr.bf16.mxu0 %v4226
      %4312 = vmatpush1.bf16.msra.mxu0 %v4225
      %4313 = vmatprep.subr.bf16.mxu0 %v4224
      %4314 = vmatpush1.bf16.msra.mxu0 %v4223
      %4315 = vmatprep.subr.bf16.mxu0 %v4222
      %4316 = vmatpush1.bf16.msra.mxu0 %v4221
      %4317 = vmatprep.subr.bf16.mxu0 %v4220
      %4318 = vmatpush1.bf16.msra.mxu0 %v4219
      %4319 = vmatprep.subr.bf16.mxu0 %v4250
      %4320 = vmatpush2.bf16.msra.mxu0 %v4249
      %4321 = vmatprep.subr.bf16.mxu0 %v4248
      %4322 = vmatpush2.bf16.msra.mxu0 %v4247
      %4323 = vmatprep.subr.bf16.mxu0 %v4246
      %4324 = vmatpush2.bf16.msra.mxu0 %v4245
      %4325 = vmatprep.subr.bf16.mxu0 %v4244
      %4326 = vmatpush2.bf16.msra.mxu0 %v4243
      %4327 = vmatprep.subr.bf16.mxu0 %v4242
      %4328 = vmatpush2.bf16.msra.mxu0 %v4241
      %4329 = vmatprep.subr.bf16.mxu0 %v4240
      %4330 = vmatpush2.bf16.msra.mxu0 %v4239
      %4331 = vmatprep.subr.bf16.mxu0 %v4238
      %4332 = vmatpush2.bf16.msra.mxu0 %v4237
      %4333 = vmatprep.subr.bf16.mxu0 %v4236
      %4334 = vmatpush2.bf16.msra.mxu0 %v4235
      %4335 = vmatprep.mubr.bf16.mxu0 %v4086
      %4336 = vmatmul.mubr.bf16.gmra.mxu0 %v4085
      %v4337 = vpop.f32.mrf.mxu0
      %v4338 = vadd.f32 %v4008, %v4337
      %v4339 = vpop.f32.mrf.mxu0
      %v4340 = vadd.f32 %v4008, %v4339
      %v4341 = vpop.f32.mrf.mxu0
      %v4342 = vadd.f32 %v4013, %v4341
      %v4343 = vpop.f32.mrf.mxu0
      %v4344 = vadd.f32 %v4013, %v4343
      %4345 = vmatprep.mubr.bf16.mxu0 %v4089
      %4346 = vmatmul.mubr.bf16.gmra.mxu0 %v4088
      %v4347 = vpop.f32.mrf.mxu0
      %v4348 = vadd.f32 %v4018, %v4347
      %v4349 = vpop.f32.mrf.mxu0
      %v4350 = vadd.f32 %v4018, %v4349
      %v4351 = vpop.f32.mrf.mxu0
      %v4352 = vadd.f32 %v4023, %v4351
      %v4353 = vpop.f32.mrf.mxu0
      %v4354 = vadd.f32 %v4023, %v4353
      %4355 = vmatprep.mubr.bf16.mxu0 %v4092
      %4356 = vmatmul.mubr.bf16.gmra.mxu0 %v4091
      %v4357 = vpop.f32.mrf.mxu0
      %v4358 = vadd.f32 %v4028, %v4357
      %v4359 = vpop.f32.mrf.mxu0
      %v4360 = vadd.f32 %v4028, %v4359
      %v4361 = vpop.f32.mrf.mxu0
      %v4362 = vadd.f32 %v4033, %v4361
      %v4363 = vpop.f32.mrf.mxu0
      %v4364 = vadd.f32 %v4033, %v4363
      %4365 = vmatprep.mubr.bf16.mxu0 %v4095
      %4366 = vmatmul.mubr.bf16.gmra.mxu0 %v4094
      %v4367 = vpop.f32.mrf.mxu0
      %v4368 = vadd.f32 %v4038, %v4367
      %v4369 = vpop.f32.mrf.mxu0
      %v4370 = vadd.f32 %v4038, %v4369
      %v4371 = vpop.f32.mrf.mxu0
      %v4372 = vadd.f32 %v4043, %v4371
      %v4373 = vpop.f32.mrf.mxu0
      %v4374 = vadd.f32 %v4043, %v4373
      %4375 = vdwg.mxu0
      %4376 = vmatprep.subr.bf16.mxu0 0
      %4377 = vmatpush1.bf16.msra.mxu0 0
      %4378 = vmatprep.subr.bf16.mxu0 0
      %4379 = vmatpush1.bf16.msra.mxu0 0
      %4380 = vmatprep.subr.bf16.mxu0 0
      %4381 = vmatpush1.bf16.msra.mxu0 0
      %4382 = vmatprep.subr.bf16.mxu0 0
      %4383 = vmatpush1.bf16.msra.mxu0 0
      %4384 = vmatprep.subr.bf16.mxu0 0
      %4385 = vmatpush1.bf16.msra.mxu0 0
      %4386 = vmatprep.subr.bf16.mxu0 0
      %4387 = vmatpush1.bf16.msra.mxu0 0
      %4388 = vmatprep.subr.bf16.mxu0 %v4254
      %4389 = vmatpush1.bf16.msra.mxu0 %v4253
      %4390 = vmatprep.subr.bf16.mxu0 %v4252
      %4391 = vmatpush1.bf16.msra.mxu0 %v4251
      %4392 = vmatprep.subr.bf16.mxu0 0
      %4393 = vmatpush2.bf16.msra.mxu0 0
      %4394 = vmatprep.subr.bf16.mxu0 0
      %4395 = vmatpush2.bf16.msra.mxu0 0
      %4396 = vmatprep.subr.bf16.mxu0 0
      %4397 = vmatpush2.bf16.msra.mxu0 0
      %4398 = vmatprep.subr.bf16.mxu0 0
      %4399 = vmatpush2.bf16.msra.mxu0 0
      %4400 = vmatprep.subr.bf16.mxu0 0
      %4401 = vmatpush2.bf16.msra.mxu0 0
      %4402 = vmatprep.subr.bf16.mxu0 0
      %4403 = vmatpush2.bf16.msra.mxu0 0
      %4404 = vmatprep.subr.bf16.mxu0 0
      %4405 = vmatpush2.bf16.msra.mxu0 0
      %4406 = vmatprep.subr.bf16.mxu0 0
      %4407 = vmatpush2.bf16.msra.mxu0 0
      %4408 = vmatprep.mubr.bf16.mxu0 0
      %4409 = vmatmul.mubr.bf16.gmra.mxu0 %v4292
      %v4410 = vpop.f32.mrf.mxu0
      %v4411 = vadd.f32 %v4338, %v4410
      %v4412 = vpop.f32.mrf.mxu0
      %v4413 = vadd.f32 %v4340, %v4412
      %v4414 = vpop.f32.mrf.mxu0
      %v4415 = vadd.f32 %v4342, %v4414
      %v4416 = vpop.f32.mrf.mxu0
      %v4417 = vadd.f32 %v4344, %v4416
      %4418 = vmatprep.mubr.bf16.mxu0 0
      %4419 = vmatmul.mubr.bf16.gmra.mxu0 %v4295
      %v4420 = vpop.f32.mrf.mxu0
      %v4421 = vadd.f32 %v4348, %v4420
      %v4422 = vpop.f32.mrf.mxu0
      %v4423 = vadd.f32 %v4350, %v4422
      %v4424 = vpop.f32.mrf.mxu0
      %v4425 = vadd.f32 %v4352, %v4424
      %v4426 = vpop.f32.mrf.mxu0
      %v4427 = vadd.f32 %v4354, %v4426
      %4428 = vmatprep.mubr.bf16.mxu0 0
      %4429 = vmatmul.mubr.bf16.gmra.mxu0 %v4298
      %v4430 = vpop.f32.mrf.mxu0
      %v4431 = vadd.f32 %v4358, %v4430
      %v4432 = vpop.f32.mrf.mxu0
      %v4433 = vadd.f32 %v4360, %v4432
      %v4434 = vpop.f32.mrf.mxu0
      %v4435 = vadd.f32 %v4362, %v4434
      %v4436 = vpop.f32.mrf.mxu0
      %v4437 = vadd.f32 %v4364, %v4436
      %4438 = vmatprep.mubr.bf16.mxu0 0
      %4439 = vmatmul.mubr.bf16.gmra.mxu0 %v4301
      %v4440 = vpop.f32.mrf.mxu0
      %v4441 = vadd.f32 %v4368, %v4440
      %v4442 = vpop.f32.mrf.mxu0
      %v4443 = vadd.f32 %v4370, %v4442
      %v4444 = vpop.f32.mrf.mxu0
      %v4445 = vadd.f32 %v4372, %v4444
      %v4446 = vpop.f32.mrf.mxu0
      %v4447 = vadd.f32 %v4374, %v4446
      %4448 = vdwg.mxu0
      %vm4449 = vcmp.ge.f32.partialorder %v4411, 0.0
      %vm4450 = vcmp.ge.f32.partialorder %v4413, 0.0
      %vm4451 = vcmp.ge.f32.partialorder %v4415, 0.0
      %vm4452 = vcmp.ge.f32.partialorder %v4417, 0.0
      %vm4453 = vcmp.ge.f32.partialorder %v4421, 0.0
      %vm4454 = vcmp.ge.f32.partialorder %v4423, 0.0
      %vm4455 = vcmp.ge.f32.partialorder %v4425, 0.0
      %vm4456 = vcmp.ge.f32.partialorder %v4427, 0.0
      %vm4457 = vcmp.ge.f32.partialorder %v4431, 0.0
      %vm4458 = vcmp.ge.f32.partialorder %v4433, 0.0
      %vm4459 = vcmp.ge.f32.partialorder %v4435, 0.0
      %vm4460 = vcmp.ge.f32.partialorder %v4437, 0.0
      %vm4461 = vcmp.ge.f32.partialorder %v4441, 0.0
      %vm4462 = vcmp.ge.f32.partialorder %v4443, 0.0
      %vm4463 = vcmp.ge.f32.partialorder %v4445, 0.0
      %vm4464 = vcmp.ge.f32.partialorder %v4447, 0.0
      %v4465 = vmul.f32 %v4411, 0.2
      %v4466 = vmul.f32 %v4413, 0.2
      %v4467 = vmul.f32 %v4415, 0.2
      %v4468 = vmul.f32 %v4417, 0.2
      %v4469 = vmul.f32 %v4421, 0.2
      %v4470 = vmul.f32 %v4423, 0.2
      %v4471 = vmul.f32 %v4425, 0.2
      %v4472 = vmul.f32 %v4427, 0.2
      %v4473 = vmul.f32 %v4431, 0.2
      %v4474 = vmul.f32 %v4433, 0.2
      %v4475 = vmul.f32 %v4435, 0.2
      %v4476 = vmul.f32 %v4437, 0.2
      %v4477 = vmul.f32 %v4441, 0.2
      %v4478 = vmul.f32 %v4443, 0.2
      %v4479 = vmul.f32 %v4445, 0.2
      %v4480 = vmul.f32 %v4447, 0.2
      %v4481 = vsel %vm4449, %v4411, %v4465
      %v4482 = vsel %vm4450, %v4413, %v4466
      %v4483 = vsel %vm4451, %v4415, %v4467
      %v4484 = vsel %vm4452, %v4417, %v4468
      %v4485 = vsel %vm4453, %v4421, %v4469
      %v4486 = vsel %vm4454, %v4423, %v4470
      %v4487 = vsel %vm4455, %v4425, %v4471
      %v4488 = vsel %vm4456, %v4427, %v4472
      %v4489 = vsel %vm4457, %v4431, %v4473
      %v4490 = vsel %vm4458, %v4433, %v4474
      %v4491 = vsel %vm4459, %v4435, %v4475
      %v4492 = vsel %vm4460, %v4437, %v4476
      %v4493 = vsel %vm4461, %v4441, %v4477
      %v4494 = vsel %vm4462, %v4443, %v4478
      %v4495 = vsel %vm4463, %v4445, %v4479
      %v4496 = vsel %vm4464, %v4447, %v4480
      %v4497 = vpack.c.bf16 %v4483, %v4481
      %v4498 = vpack.c.bf16 %v4484, %v4482
      %v4499 = vpack.c.bf16 %v4487, %v4485
      %v4500 = vpack.c.bf16 %v4488, %v4486
      %v4501 = vmul.bf16 %v4498, %v1671
      %v4502 = vmul.bf16 %v4497, %v1675
      %v4503 = vmul.bf16 %v4498, %v1673
      %v4504 = vmul.bf16 %v4500, %v1671
      %v4505 = vmul.bf16 %v4499, %v1675
      %v4506 = vmul.bf16 %v4500, %v1673
      %v4507 = vmul.bf16 %v4498, %v1708
      %v4508 = vmul.bf16 %v4497, %v1712
      %v4509 = vmul.bf16 %v4498, %v1710
      %v4510 = vmul.bf16 %v4500, %v1708
      %v4511 = vmul.bf16 %v4499, %v1712
      %v4512 = vmul.bf16 %v4500, %v1710
      %v4513 = vmul.bf16 %v4498, %v1739
      %v4514 = vmul.bf16 %v4497, %v1743
      %v4515 = vmul.bf16 %v4498, %v1741
      %v4516 = vmul.bf16 %v4500, %v1739
      %v4517 = vmul.bf16 %v4499, %v1743
      %v4518 = vmul.bf16 %v4500, %v1741
      %v4519 = vmul.bf16 %v4498, %v1770
      %v4520 = vmul.bf16 %v4497, %v1774
      %v4521 = vmul.bf16 %v4498, %v1772
      %v4522 = vmul.bf16 %v4500, %v1770
      %v4523 = vmul.bf16 %v4499, %v1774
      %v4524 = vmul.bf16 %v4500, %v1772
      %v4525 = vmul.bf16 %v4497, %v1801
      %v4526 = vmul.bf16 %v4498, %v1805
      %v4527 = vmul.bf16 %v4497, %v1803
      %v4528 = vmul.bf16 %v4499, %v1801
      %v4529 = vmul.bf16 %v4500, %v1805
      %v4530 = vmul.bf16 %v4499, %v1803
      %v4531 = vmul.bf16 %v4497, %v1832
      %v4532 = vmul.bf16 %v4498, %v1836
      %v4533 = vmul.bf16 %v4497, %v1834
      %v4534 = vmul.bf16 %v4499, %v1832
      %v4535 = vmul.bf16 %v4500, %v1836
      %v4536 = vmul.bf16 %v4499, %v1834
      %v4537 = vmul.bf16 %v4497, %v1863
      %v4538 = vmul.bf16 %v4498, %v1867
      %v4539 = vmul.bf16 %v4497, %v1865
      %v4540 = vmul.bf16 %v4499, %v1863
      %v4541 = vmul.bf16 %v4500, %v1867
      %v4542 = vmul.bf16 %v4499, %v1865
      %v4543 = vmul.bf16 %v4497, %v1900
      %v4544 = vmul.bf16 %v4498, %v1904
      %v4545 = vmul.bf16 %v4497, %v1902
      %v4546 = vmul.bf16 %v4499, %v1900
      %v4547 = vmul.bf16 %v4500, %v1904
      %v4548 = vmul.bf16 %v4499, %v1902
      %4555 = vrot.lane.b32.xlu0 %v4507, 127
      %v4556 = vpop.permute.xlu0 %4555
      %4557 = vrot.lane.b32.xlu0 %v4508, 127
      %v4558 = vpop.permute.xlu0 %4557
      %4559 = vrot.lane.b32.xlu0 %v4509, 127
      %v4560 = vpop.permute.xlu0 %4559
      %4561 = vrot.lane.b32.xlu0 %v4510, 127
      %v4562 = vpop.permute.xlu0 %4561
      %4563 = vrot.lane.b32.xlu0 %v4511, 127
      %v4564 = vpop.permute.xlu0 %4563
      %4565 = vrot.lane.b32.xlu0 %v4512, 127
      %v4566 = vpop.permute.xlu0 %4565
      %v4567 = vsel %vm1773, %v4556, %v4558
      %v4568 = vsel %vm1773, %v4558, %v4560
      %v4569 = vsel %vm1773, %v4562, %v4564
      %v4570 = vsel %vm1773, %v4564, %v4566
      %4577 = vrot.lane.b32.xlu0 %v4513, 126
      %v4578 = vpop.permute.xlu0 %4577
      %4579 = vrot.lane.b32.xlu0 %v4514, 126
      %v4580 = vpop.permute.xlu0 %4579
      %4581 = vrot.lane.b32.xlu0 %v4515, 126
      %v4582 = vpop.permute.xlu0 %4581
      %4583 = vrot.lane.b32.xlu0 %v4516, 126
      %v4584 = vpop.permute.xlu0 %4583
      %4585 = vrot.lane.b32.xlu0 %v4517, 126
      %v4586 = vpop.permute.xlu0 %4585
      %4587 = vrot.lane.b32.xlu0 %v4518, 126
      %v4588 = vpop.permute.xlu0 %4587
      %v4589 = vsel %vm2000, %v4578, %v4580
      %v4590 = vsel %vm2000, %v4580, %v4582
      %v4591 = vsel %vm2000, %v4584, %v4586
      %v4592 = vsel %vm2000, %v4586, %v4588
      %4599 = vrot.lane.b32.xlu0 %v4519, 112
      %v4600 = vpop.permute.xlu0 %4599
      %4601 = vrot.lane.b32.xlu0 %v4520, 112
      %v4602 = vpop.permute.xlu0 %4601
      %4603 = vrot.lane.b32.xlu0 %v4521, 112
      %v4604 = vpop.permute.xlu0 %4603
      %4605 = vrot.lane.b32.xlu0 %v4522, 112
      %v4606 = vpop.permute.xlu0 %4605
      %4607 = vrot.lane.b32.xlu0 %v4523, 112
      %v4608 = vpop.permute.xlu0 %4607
      %4609 = vrot.lane.b32.xlu0 %v4524, 112
      %v4610 = vpop.permute.xlu0 %4609
      %v4611 = vsel %vm1711, %v4600, %v4602
      %v4612 = vsel %vm1711, %v4602, %v4604
      %v4613 = vsel %vm1711, %v4606, %v4608
      %v4614 = vsel %vm1711, %v4608, %v4610
      %4619 = vrot.lane.b32.xlu0 %v4497, 111
      %v4620 = vpop.permute.xlu0 %4619
      %4621 = vrot.lane.b32.xlu0 %v4498, 111
      %v4622 = vpop.permute.xlu0 %4621
      %4623 = vrot.lane.b32.xlu0 %v4499, 111
      %v4624 = vpop.permute.xlu0 %4623
      %4625 = vrot.lane.b32.xlu0 %v4500, 111
      %v4626 = vpop.permute.xlu0 %4625
      %v4627 = vsel %vm1674, %v4620, %v4622
      %v4628 = vsel %vm1674, %v4624, %v4626
      %4635 = vrot.lane.b32.xlu0 %v4525, 110
      %v4636 = vpop.permute.xlu0 %4635
      %4637 = vrot.lane.b32.xlu0 %v4526, 110
      %v4638 = vpop.permute.xlu0 %4637
      %4639 = vrot.lane.b32.xlu0 %v4527, 110
      %v4640 = vpop.permute.xlu0 %4639
      %4641 = vrot.lane.b32.xlu0 %v4528, 110
      %v4642 = vpop.permute.xlu0 %4641
      %4643 = vrot.lane.b32.xlu0 %v4529, 110
      %v4644 = vpop.permute.xlu0 %4643
      %4645 = vrot.lane.b32.xlu0 %v4530, 110
      %v4646 = vpop.permute.xlu0 %4645
      %v4647 = vsel %vm2117, %v4636, %v4638
      %v4648 = vsel %vm2117, %v4638, %v4640
      %v4649 = vsel %vm2117, %v4642, %v4644
      %v4650 = vsel %vm2117, %v4644, %v4646
      %4657 = vrot.lane.b32.xlu0 %v4531, 96
      %v4658 = vpop.permute.xlu0 %4657
      %4659 = vrot.lane.b32.xlu0 %v4532, 96
      %v4660 = vpop.permute.xlu0 %4659
      %4661 = vrot.lane.b32.xlu0 %v4533, 96
      %v4662 = vpop.permute.xlu0 %4661
      %4663 = vrot.lane.b32.xlu0 %v4534, 96
      %v4664 = vpop.permute.xlu0 %4663
      %4665 = vrot.lane.b32.xlu0 %v4535, 96
      %v4666 = vpop.permute.xlu0 %4665
      %4667 = vrot.lane.b32.xlu0 %v4536, 96
      %v4668 = vpop.permute.xlu0 %4667
      %v4669 = vsel %vm2162, %v4658, %v4660
      %v4670 = vsel %vm2162, %v4660, %v4662
      %v4671 = vsel %vm2162, %v4664, %v4666
      %v4672 = vsel %vm2162, %v4666, %v4668
      %4679 = vrot.lane.b32.xlu0 %v4537, 95
      %v4680 = vpop.permute.xlu0 %4679
      %4681 = vrot.lane.b32.xlu0 %v4538, 95
      %v4682 = vpop.permute.xlu0 %4681
      %4683 = vrot.lane.b32.xlu0 %v4539, 95
      %v4684 = vpop.permute.xlu0 %4683
      %4685 = vrot.lane.b32.xlu0 %v4540, 95
      %v4686 = vpop.permute.xlu0 %4685
      %4687 = vrot.lane.b32.xlu0 %v4541, 95
      %v4688 = vpop.permute.xlu0 %4687
      %4689 = vrot.lane.b32.xlu0 %v4542, 95
      %v4690 = vpop.permute.xlu0 %4689
      %v4691 = vsel %vm2207, %v4680, %v4682
      %v4692 = vsel %vm2207, %v4682, %v4684
      %v4693 = vsel %vm2207, %v4686, %v4688
      %v4694 = vsel %vm2207, %v4688, %v4690
      %4701 = vrot.lane.b32.xlu0 %v4543, 94
      %v4702 = vpop.permute.xlu0 %4701
      %4703 = vrot.lane.b32.xlu0 %v4544, 94
      %v4704 = vpop.permute.xlu0 %4703
      %4705 = vrot.lane.b32.xlu0 %v4545, 94
      %v4706 = vpop.permute.xlu0 %4705
      %4707 = vrot.lane.b32.xlu0 %v4546, 94
      %v4708 = vpop.permute.xlu0 %4707
      %4709 = vrot.lane.b32.xlu0 %v4547, 94
      %v4710 = vpop.permute.xlu0 %4709
      %4711 = vrot.lane.b32.xlu0 %v4548, 94
      %v4712 = vpop.permute.xlu0 %4711
      %v4713 = vsel %vm2252, %v4702, %v4704
      %v4714 = vsel %vm2252, %v4704, %v4706
      %v4715 = vsel %vm2252, %v4708, %v4710
      %v4716 = vsel %vm2252, %v4710, %v4712
      %v4717 = vld [vmem:[%s19] sm:$0xff]
      %v4718 = vld [vmem:[%s19 + $0x8] sm:$0xf]
      %v4719 = vld [vmem:[%s19 + $0xc] sm:$0xff]
      %v4720 = vld [vmem:[%s19 + $0x14] sm:$0xf]
      %v4721 = vld [vmem:[%s19 + $0x18] sm:$0xff]
      %v4722 = vld [vmem:[%s19 + $0x20] sm:$0xf]
      %v4723 = vld [vmem:[%s19 + $0x24] sm:$0xff]
      %v4724 = vld [vmem:[%s19 + $0x2c] sm:$0xf]
      %v4725 = vld [vmem:[%s20] sm:$0xff]
      %v4726 = vld [vmem:[%s20 + $0x8] sm:$0xff]
      %v4727 = vld [vmem:[%s20 + $0x10] sm:$0xff]
      %v4728 = vld [vmem:[%s20 + $0x18] sm:$0xff]
      %4730 = vset.pattern.permute.xlu0 0
      %4731 = vperm.xlu0 %4730, %v4725
      %v4732 = vpop.permute.xlu0 %4731
      %4735 = vset.pattern.permute.xlu0 0
      %4736 = vperm.xlu0 %4735, %v4726
      %v4737 = vpop.permute.xlu0 %4736
      %4740 = vset.pattern.permute.xlu0 0
      %4741 = vperm.xlu0 %4740, %v4727
      %v4742 = vpop.permute.xlu0 %4741
      %4745 = vset.pattern.permute.xlu0 0
      %4746 = vperm.xlu0 %4745, %v4728
      %v4747 = vpop.permute.xlu0 %4746
      %v4757 = vunpack.c.l.b16 %v4717
      %v4758 = vunpack.c.h.b16 %v4717
      %v4759 = vunpack.c.l.b16 %v4718
      %v4760 = vunpack.c.l.b16 %v4719
      %v4761 = vunpack.c.h.b16 %v4719
      %v4762 = vunpack.c.l.b16 %v4720
      %v4763 = vunpack.c.l.b16 %v4721
      %v4764 = vunpack.c.h.b16 %v4721
      %v4765 = vunpack.c.l.b16 %v4722
      %v4766 = vunpack.c.l.b16 %v4723
      %v4767 = vunpack.c.h.b16 %v4723
      %v4768 = vunpack.c.l.b16 %v4724
      %v4769 = vpack.c.b16 %v4760, %v4757
      %v4770 = vpack.c.b16 %v4761, %v4758
      %v4771 = vpack.c.b16 %v4762, %v4759
      %v4772 = vpack.c.b16 %v4766, %v4763
      %v4773 = vpack.c.b16 %v4767, %v4764
      %v4774 = vpack.c.b16 %v4768, %v4765
      %4785 = vrot.lane.b32.xlu0 %v4501, 17
      %v4786 = vpop.permute.xlu0 %4785
      %4787 = vrot.lane.b32.xlu0 %v4502, 17
      %v4788 = vpop.permute.xlu0 %4787
      %4789 = vrot.lane.b32.xlu0 %v4503, 17
      %v4790 = vpop.permute.xlu0 %4789
      %4791 = vrot.lane.b32.xlu0 %v4504, 17
      %v4792 = vpop.permute.xlu0 %4791
      %4793 = vrot.lane.b32.xlu0 %v4505, 17
      %v4794 = vpop.permute.xlu0 %4793
      %4795 = vrot.lane.b32.xlu0 %v4506, 17
      %v4796 = vpop.permute.xlu0 %4795
      %4797 = vrot.lane.b32.xlu0 %v4567, 17
      %v4798 = vpop.permute.xlu0 %4797
      %4799 = vrot.lane.b32.xlu0 %v4568, 17
      %v4800 = vpop.permute.xlu0 %4799
      %4801 = vrot.lane.b32.xlu0 %v4560, 17
      %v4802 = vpop.permute.xlu0 %4801
      %4803 = vrot.lane.b32.xlu0 %v4569, 17
      %v4804 = vpop.permute.xlu0 %4803
      %4805 = vrot.lane.b32.xlu0 %v4570, 17
      %v4806 = vpop.permute.xlu0 %4805
      %4807 = vrot.lane.b32.xlu0 %v4566, 17
      %v4808 = vpop.permute.xlu0 %4807
      %4809 = vrot.lane.b32.xlu0 %v4589, 17
      %v4810 = vpop.permute.xlu0 %4809
      %4811 = vrot.lane.b32.xlu0 %v4590, 17
      %v4812 = vpop.permute.xlu0 %4811
      %4813 = vrot.lane.b32.xlu0 %v4582, 17
      %v4814 = vpop.permute.xlu0 %4813
      %4815 = vrot.lane.b32.xlu0 %v4591, 17
      %v4816 = vpop.permute.xlu0 %4815
      %4817 = vrot.lane.b32.xlu0 %v4592, 17
      %v4818 = vpop.permute.xlu0 %4817
      %4819 = vrot.lane.b32.xlu0 %v4588, 17
      %v4820 = vpop.permute.xlu0 %4819
      %4821 = vrot.lane.b32.xlu0 %v4611, 17
      %v4822 = vpop.permute.xlu0 %4821
      %4823 = vrot.lane.b32.xlu0 %v4612, 17
      %v4824 = vpop.permute.xlu0 %4823
      %4825 = vrot.lane.b32.xlu0 %v4604, 17
      %v4826 = vpop.permute.xlu0 %4825
      %4827 = vrot.lane.b32.xlu0 %v4613, 17
      %v4828 = vpop.permute.xlu0 %4827
      %4829 = vrot.lane.b32.xlu0 %v4614, 17
      %v4830 = vpop.permute.xlu0 %4829
      %4831 = vrot.lane.b32.xlu0 %v4610, 17
      %v4832 = vpop.permute.xlu0 %4831
      %4833 = vrot.lane.b32.xlu0 %v4620, 17
      %v4834 = vpop.permute.xlu0 %4833
      %4835 = vrot.lane.b32.xlu0 %v4627, 17
      %v4836 = vpop.permute.xlu0 %4835
      %4837 = vrot.lane.b32.xlu0 %v4622, 17
      %v4838 = vpop.permute.xlu0 %4837
      %4839 = vrot.lane.b32.xlu0 %v4624, 17
      %v4840 = vpop.permute.xlu0 %4839
      %4841 = vrot.lane.b32.xlu0 %v4628, 17
      %v4842 = vpop.permute.xlu0 %4841
      %4843 = vrot.lane.b32.xlu0 %v4626, 17
      %v4844 = vpop.permute.xlu0 %4843
      %4845 = vrot.lane.b32.xlu0 %v4636, 17
      %v4846 = vpop.permute.xlu0 %4845
      %4847 = vrot.lane.b32.xlu0 %v4647, 17
      %v4848 = vpop.permute.xlu0 %4847
      %4849 = vrot.lane.b32.xlu0 %v4648, 17
      %v4850 = vpop.permute.xlu0 %4849
      %4851 = vrot.lane.b32.xlu0 %v4642, 17
      %v4852 = vpop.permute.xlu0 %4851
      %4853 = vrot.lane.b32.xlu0 %v4649, 17
      %v4854 = vpop.permute.xlu0 %4853
      %4855 = vrot.lane.b32.xlu0 %v4650, 17
      %v4856 = vpop.permute.xlu0 %4855
      %4857 = vrot.lane.b32.xlu0 %v4658, 17
      %v4858 = vpop.permute.xlu0 %4857
      %4859 = vrot.lane.b32.xlu0 %v4669, 17
      %v4860 = vpop.permute.xlu0 %4859
      %4861 = vrot.lane.b32.xlu0 %v4670, 17
      %v4862 = vpop.permute.xlu0 %4861
      %4863 = vrot.lane.b32.xlu0 %v4664, 17
      %v4864 = vpop.permute.xlu0 %4863
      %4865 = vrot.lane.b32.xlu0 %v4671, 17
      %v4866 = vpop.permute.xlu0 %4865
      %4867 = vrot.lane.b32.xlu0 %v4672, 17
      %v4868 = vpop.permute.xlu0 %4867
      %4869 = vrot.lane.b32.xlu0 %v4680, 17
      %v4870 = vpop.permute.xlu0 %4869
      %4871 = vrot.lane.b32.xlu0 %v4691, 17
      %v4872 = vpop.permute.xlu0 %4871
      %4873 = vrot.lane.b32.xlu0 %v4692, 17
      %v4874 = vpop.permute.xlu0 %4873
      %4875 = vrot.lane.b32.xlu0 %v4686, 17
      %v4876 = vpop.permute.xlu0 %4875
      %4877 = vrot.lane.b32.xlu0 %v4693, 17
      %v4878 = vpop.permute.xlu0 %4877
      %4879 = vrot.lane.b32.xlu0 %v4694, 17
      %v4880 = vpop.permute.xlu0 %4879
      %4881 = vrot.lane.b32.xlu0 %v4702, 17
      %v4882 = vpop.permute.xlu0 %4881
      %4883 = vrot.lane.b32.xlu0 %v4713, 17
      %v4884 = vpop.permute.xlu0 %4883
      %4885 = vrot.lane.b32.xlu0 %v4714, 17
      %v4886 = vpop.permute.xlu0 %4885
      %4887 = vrot.lane.b32.xlu0 %v4708, 17
      %v4888 = vpop.permute.xlu0 %4887
      %4889 = vrot.lane.b32.xlu0 %v4715, 17
      %v4890 = vpop.permute.xlu0 %4889
      %4891 = vrot.lane.b32.xlu0 %v4716, 17
      %v4892 = vpop.permute.xlu0 %4891
      %v4893 = vsel %vm1903, %v4786, %v4788
      %v4894 = vsel %vm1903, %v4788, %v4790
      %v4895 = vsel %vm1903, %v4792, %v4794
      %v4896 = vsel %vm1903, %v4794, %v4796
      %v4897 = vsel %vm1903, %v4798, %v4800
      %v4898 = vsel %vm1903, %v4800, %v4802
      %v4899 = vsel %vm1903, %v4804, %v4806
      %v4900 = vsel %vm1903, %v4806, %v4808
      %v4901 = vsel %vm1903, %v4810, %v4812
      %v4902 = vsel %vm1903, %v4812, %v4814
      %v4903 = vsel %vm1903, %v4816, %v4818
      %v4904 = vsel %vm1903, %v4818, %v4820
      %v4905 = vsel %vm1903, %v4822, %v4824
      %v4906 = vsel %vm1903, %v4824, %v4826
      %v4907 = vsel %vm1903, %v4828, %v4830
      %v4908 = vsel %vm1903, %v4830, %v4832
      %v4909 = vsel %vm1903, %v4834, %v4836
      %v4910 = vsel %vm1903, %v4836, %v4838
      %v4911 = vsel %vm1903, %v4840, %v4842
      %v4912 = vsel %vm1903, %v4842, %v4844
      %v4913 = vsel %vm1903, %v4846, %v4848
      %v4914 = vsel %vm1903, %v4848, %v4850
      %v4915 = vsel %vm1903, %v4852, %v4854
      %v4916 = vsel %vm1903, %v4854, %v4856
      %v4917 = vsel %vm1903, %v4858, %v4860
      %v4918 = vsel %vm1903, %v4860, %v4862
      %v4919 = vsel %vm1903, %v4864, %v4866
      %v4920 = vsel %vm1903, %v4866, %v4868
      %v4921 = vsel %vm1903, %v4870, %v4872
      %v4922 = vsel %vm1903, %v4872, %v4874
      %v4923 = vsel %vm1903, %v4876, %v4878
      %v4924 = vsel %vm1903, %v4878, %v4880
      %v4925 = vsel %vm1903, %v4882, %v4884
      %v4926 = vsel %vm1903, %v4884, %v4886
      %v4927 = vsel %vm1903, %v4888, %v4890
      %v4928 = vsel %vm1903, %v4890, %v4892
      %v4966 = vsel %vm938, %v4771, 0
      %v4969 = vsel %vm938, %v4774, 0
      %4971 = vmatprep.subr.bf16.mxu0 %v4908
      %4972 = vmatpush1.bf16.msra.mxu0 %v4907
      %4973 = vmatprep.subr.bf16.mxu0 %v4906
      %4974 = vmatpush1.bf16.msra.mxu0 %v4905
      %4975 = vmatprep.subr.bf16.mxu0 %v4904
      %4976 = vmatpush1.bf16.msra.mxu0 %v4903
      %4977 = vmatprep.subr.bf16.mxu0 %v4902
      %4978 = vmatpush1.bf16.msra.mxu0 %v4901
      %4979 = vmatprep.subr.bf16.mxu0 %v4900
      %4980 = vmatpush1.bf16.msra.mxu0 %v4899
      %4981 = vmatprep.subr.bf16.mxu0 %v4898
      %4982 = vmatpush1.bf16.msra.mxu0 %v4897
      %4983 = vmatprep.subr.bf16.mxu0 %v4896
      %4984 = vmatpush1.bf16.msra.mxu0 %v4895
      %4985 = vmatprep.subr.bf16.mxu0 %v4894
      %4986 = vmatpush1.bf16.msra.mxu0 %v4893
      %4987 = vmatprep.subr.bf16.mxu0 %v4924
      %4988 = vmatpush2.bf16.msra.mxu0 %v4923
      %4989 = vmatprep.subr.bf16.mxu0 %v4922
      %4990 = vmatpush2.bf16.msra.mxu0 %v4921
      %4991 = vmatprep.subr.bf16.mxu0 %v4920
      %4992 = vmatpush2.bf16.msra.mxu0 %v4919
      %4993 = vmatprep.subr.bf16.mxu0 %v4918
      %4994 = vmatpush2.bf16.msra.mxu0 %v4917
      %4995 = vmatprep.subr.bf16.mxu0 %v4916
      %4996 = vmatpush2.bf16.msra.mxu0 %v4915
      %4997 = vmatprep.subr.bf16.mxu0 %v4914
      %4998 = vmatpush2.bf16.msra.mxu0 %v4913
      %4999 = vmatprep.subr.bf16.mxu0 %v4912
      %5000 = vmatpush2.bf16.msra.mxu0 %v4911
      %5001 = vmatprep.subr.bf16.mxu0 %v4910
      %5002 = vmatpush2.bf16.msra.mxu0 %v4909
      %5003 = vmatprep.mubr.bf16.mxu0 %v4770
      %5004 = vmatmul.mubr.bf16.gmra.mxu0 %v4769
      %v5005 = vpop.f32.mrf.mxu0
      %v5006 = vadd.f32 %v4732, %v5005
      %v5007 = vpop.f32.mrf.mxu0
      %v5008 = vadd.f32 %v4732, %v5007
      %v5009 = vpop.f32.mrf.mxu0
      %v5010 = vadd.f32 %v4737, %v5009
      %v5011 = vpop.f32.mrf.mxu0
      %v5012 = vadd.f32 %v4737, %v5011
      %5013 = vmatprep.mubr.bf16.mxu0 %v4773
      %5014 = vmatmul.mubr.bf16.gmra.mxu0 %v4772
      %v5015 = vpop.f32.mrf.mxu0
      %v5016 = vadd.f32 %v4742, %v5015
      %v5017 = vpop.f32.mrf.mxu0
      %v5018 = vadd.f32 %v4742, %v5017
      %v5019 = vpop.f32.mrf.mxu0
      %v5020 = vadd.f32 %v4747, %v5019
      %v5021 = vpop.f32.mrf.mxu0
      %v5022 = vadd.f32 %v4747, %v5021
      %5023 = vdwg.mxu0
      %5024 = vmatprep.subr.bf16.mxu0 0
      %5025 = vmatpush1.bf16.msra.mxu0 0
      %5026 = vmatprep.subr.bf16.mxu0 0
      %5027 = vmatpush1.bf16.msra.mxu0 0
      %5028 = vmatprep.subr.bf16.mxu0 0
      %5029 = vmatpush1.bf16.msra.mxu0 0
      %5030 = vmatprep.subr.bf16.mxu0 0
      %5031 = vmatpush1.bf16.msra.mxu0 0
      %5032 = vmatprep.subr.bf16.mxu0 0
      %5033 = vmatpush1.bf16.msra.mxu0 0
      %5034 = vmatprep.subr.bf16.mxu0 0
      %5035 = vmatpush1.bf16.msra.mxu0 0
      %5036 = vmatprep.subr.bf16.mxu0 %v4928
      %5037 = vmatpush1.bf16.msra.mxu0 %v4927
      %5038 = vmatprep.subr.bf16.mxu0 %v4926
      %5039 = vmatpush1.bf16.msra.mxu0 %v4925
      %5040 = vmatprep.subr.bf16.mxu0 0
      %5041 = vmatpush2.bf16.msra.mxu0 0
      %5042 = vmatprep.subr.bf16.mxu0 0
      %5043 = vmatpush2.bf16.msra.mxu0 0
      %5044 = vmatprep.subr.bf16.mxu0 0
      %5045 = vmatpush2.bf16.msra.mxu0 0
      %5046 = vmatprep.subr.bf16.mxu0 0
      %5047 = vmatpush2.bf16.msra.mxu0 0
      %5048 = vmatprep.subr.bf16.mxu0 0
      %5049 = vmatpush2.bf16.msra.mxu0 0
      %5050 = vmatprep.subr.bf16.mxu0 0
      %5051 = vmatpush2.bf16.msra.mxu0 0
      %5052 = vmatprep.subr.bf16.mxu0 0
      %5053 = vmatpush2.bf16.msra.mxu0 0
      %5054 = vmatprep.subr.bf16.mxu0 0
      %5055 = vmatpush2.bf16.msra.mxu0 0
      %5056 = vmatprep.mubr.bf16.mxu0 0
      %5057 = vmatmul.mubr.bf16.gmra.mxu0 %v4966
      %v5058 = vpop.f32.mrf.mxu0
      %v5059 = vadd.f32 %v5006, %v5058
      %v5060 = vpop.f32.mrf.mxu0
      %v5061 = vadd.f32 %v5008, %v5060
      %v5062 = vpop.f32.mrf.mxu0
      %v5063 = vadd.f32 %v5010, %v5062
      %v5064 = vpop.f32.mrf.mxu0
      %v5065 = vadd.f32 %v5012, %v5064
      %5066 = vmatprep.mubr.bf16.mxu0 0
      %5067 = vmatmul.mubr.bf16.gmra.mxu0 %v4969
      %v5068 = vpop.f32.mrf.mxu0
      %v5069 = vadd.f32 %v5016, %v5068
      %v5070 = vpop.f32.mrf.mxu0
      %v5071 = vadd.f32 %v5018, %v5070
      %v5072 = vpop.f32.mrf.mxu0
      %v5073 = vadd.f32 %v5020, %v5072
      %v5074 = vpop.f32.mrf.mxu0
      %v5075 = vadd.f32 %v5022, %v5074
      %5076 = vdwg.mxu0
      %v5077 = vpack.c.bf16 %v4491, %v4489
      %v5078 = vpack.c.bf16 %v4492, %v4490
      %v5079 = vpack.c.bf16 %v4495, %v4493
      %v5080 = vpack.c.bf16 %v4496, %v4494
      %v5081 = vmul.bf16 %v5078, %v1671
      %v5082 = vmul.bf16 %v5077, %v1675
      %v5083 = vmul.bf16 %v5078, %v1673
      %v5084 = vmul.bf16 %v5080, %v1671
      %v5085 = vmul.bf16 %v5079, %v1675
      %v5086 = vmul.bf16 %v5080, %v1673
      %v5087 = vmul.bf16 %v5078, %v1708
      %v5088 = vmul.bf16 %v5077, %v1712
      %v5089 = vmul.bf16 %v5078, %v1710
      %v5090 = vmul.bf16 %v5080, %v1708
      %v5091 = vmul.bf16 %v5079, %v1712
      %v5092 = vmul.bf16 %v5080, %v1710
      %v5093 = vmul.bf16 %v5078, %v1739
      %v5094 = vmul.bf16 %v5077, %v1743
      %v5095 = vmul.bf16 %v5078, %v1741
      %v5096 = vmul.bf16 %v5080, %v1739
      %v5097 = vmul.bf16 %v5079, %v1743
      %v5098 = vmul.bf16 %v5080, %v1741
      %v5099 = vmul.bf16 %v5078, %v1770
      %v5100 = vmul.bf16 %v5077, %v1774
      %v5101 = vmul.bf16 %v5078, %v1772
      %v5102 = vmul.bf16 %v5080, %v1770
      %v5103 = vmul.bf16 %v5079, %v1774
      %v5104 = vmul.bf16 %v5080, %v1772
      %v5105 = vmul.bf16 %v5077, %v1801
      %v5106 = vmul.bf16 %v5078, %v1805
      %v5107 = vmul.bf16 %v5077, %v1803
      %v5108 = vmul.bf16 %v5079, %v1801
      %v5109 = vmul.bf16 %v5080, %v1805
      %v5110 = vmul.bf16 %v5079, %v1803
      %v5111 = vmul.bf16 %v5077, %v1832
      %v5112 = vmul.bf16 %v5078, %v1836
      %v5113 = vmul.bf16 %v5077, %v1834
      %v5114 = vmul.bf16 %v5079, %v1832
      %v5115 = vmul.bf16 %v5080, %v1836
      %v5116 = vmul.bf16 %v5079, %v1834
      %v5117 = vmul.bf16 %v5077, %v1863
      %v5118 = vmul.bf16 %v5078, %v1867
      %v5119 = vmul.bf16 %v5077, %v1865
      %v5120 = vmul.bf16 %v5079, %v1863
      %v5121 = vmul.bf16 %v5080, %v1867
      %v5122 = vmul.bf16 %v5079, %v1865
      %v5123 = vmul.bf16 %v5077, %v1900
      %v5124 = vmul.bf16 %v5078, %v1904
      %v5125 = vmul.bf16 %v5077, %v1902
      %v5126 = vmul.bf16 %v5079, %v1900
      %v5127 = vmul.bf16 %v5080, %v1904
      %v5128 = vmul.bf16 %v5079, %v1902
      %5135 = vrot.lane.b32.xlu0 %v5087, 127
      %v5136 = vpop.permute.xlu0 %5135
      %5137 = vrot.lane.b32.xlu0 %v5088, 127
      %v5138 = vpop.permute.xlu0 %5137
      %5139 = vrot.lane.b32.xlu0 %v5089, 127
      %v5140 = vpop.permute.xlu0 %5139
      %5141 = vrot.lane.b32.xlu0 %v5090, 127
      %v5142 = vpop.permute.xlu0 %5141
      %5143 = vrot.lane.b32.xlu0 %v5091, 127
      %v5144 = vpop.permute.xlu0 %5143
      %5145 = vrot.lane.b32.xlu0 %v5092, 127
      %v5146 = vpop.permute.xlu0 %5145
      %v5147 = vsel %vm1773, %v5136, %v5138
      %v5148 = vsel %vm1773, %v5138, %v5140
      %v5149 = vsel %vm1773, %v5142, %v5144
      %v5150 = vsel %vm1773, %v5144, %v5146
      %5157 = vrot.lane.b32.xlu0 %v5093, 126
      %v5158 = vpop.permute.xlu0 %5157
      %5159 = vrot.lane.b32.xlu0 %v5094, 126
      %v5160 = vpop.permute.xlu0 %5159
      %5161 = vrot.lane.b32.xlu0 %v5095, 126
      %v5162 = vpop.permute.xlu0 %5161
      %5163 = vrot.lane.b32.xlu0 %v5096, 126
      %v5164 = vpop.permute.xlu0 %5163
      %5165 = vrot.lane.b32.xlu0 %v5097, 126
      %v5166 = vpop.permute.xlu0 %5165
      %5167 = vrot.lane.b32.xlu0 %v5098, 126
      %v5168 = vpop.permute.xlu0 %5167
      %v5169 = vsel %vm2000, %v5158, %v5160
      %v5170 = vsel %vm2000, %v5160, %v5162
      %v5171 = vsel %vm2000, %v5164, %v5166
      %v5172 = vsel %vm2000, %v5166, %v5168
      %5179 = vrot.lane.b32.xlu0 %v5099, 112
      %v5180 = vpop.permute.xlu0 %5179
      %5181 = vrot.lane.b32.xlu0 %v5100, 112
      %v5182 = vpop.permute.xlu0 %5181
      %5183 = vrot.lane.b32.xlu0 %v5101, 112
      %v5184 = vpop.permute.xlu0 %5183
      %5185 = vrot.lane.b32.xlu0 %v5102, 112
      %v5186 = vpop.permute.xlu0 %5185
      %5187 = vrot.lane.b32.xlu0 %v5103, 112
      %v5188 = vpop.permute.xlu0 %5187
      %5189 = vrot.lane.b32.xlu0 %v5104, 112
      %v5190 = vpop.permute.xlu0 %5189
      %v5191 = vsel %vm1711, %v5180, %v5182
      %v5192 = vsel %vm1711, %v5182, %v5184
      %v5193 = vsel %vm1711, %v5186, %v5188
      %v5194 = vsel %vm1711, %v5188, %v5190
      %5199 = vrot.lane.b32.xlu0 %v5077, 111
      %v5200 = vpop.permute.xlu0 %5199
      %5201 = vrot.lane.b32.xlu0 %v5078, 111
      %v5202 = vpop.permute.xlu0 %5201
      %5203 = vrot.lane.b32.xlu0 %v5079, 111
      %v5204 = vpop.permute.xlu0 %5203
      %5205 = vrot.lane.b32.xlu0 %v5080, 111
      %v5206 = vpop.permute.xlu0 %5205
      %v5207 = vsel %vm1674, %v5200, %v5202
      %v5208 = vsel %vm1674, %v5204, %v5206
      %5215 = vrot.lane.b32.xlu0 %v5105, 110
      %v5216 = vpop.permute.xlu0 %5215
      %5217 = vrot.lane.b32.xlu0 %v5106, 110
      %v5218 = vpop.permute.xlu0 %5217
      %5219 = vrot.lane.b32.xlu0 %v5107, 110
      %v5220 = vpop.permute.xlu0 %5219
      %5221 = vrot.lane.b32.xlu0 %v5108, 110
      %v5222 = vpop.permute.xlu0 %5221
      %5223 = vrot.lane.b32.xlu0 %v5109, 110
      %v5224 = vpop.permute.xlu0 %5223
      %5225 = vrot.lane.b32.xlu0 %v5110, 110
      %v5226 = vpop.permute.xlu0 %5225
      %v5227 = vsel %vm2117, %v5216, %v5218
      %v5228 = vsel %vm2117, %v5218, %v5220
      %v5229 = vsel %vm2117, %v5222, %v5224
      %v5230 = vsel %vm2117, %v5224, %v5226
      %5237 = vrot.lane.b32.xlu0 %v5111, 96
      %v5238 = vpop.permute.xlu0 %5237
      %5239 = vrot.lane.b32.xlu0 %v5112, 96
      %v5240 = vpop.permute.xlu0 %5239
      %5241 = vrot.lane.b32.xlu0 %v5113, 96
      %v5242 = vpop.permute.xlu0 %5241
      %5243 = vrot.lane.b32.xlu0 %v5114, 96
      %v5244 = vpop.permute.xlu0 %5243
      %5245 = vrot.lane.b32.xlu0 %v5115, 96
      %v5246 = vpop.permute.xlu0 %5245
      %5247 = vrot.lane.b32.xlu0 %v5116, 96
      %v5248 = vpop.permute.xlu0 %5247
      %v5249 = vsel %vm2162, %v5238, %v5240
      %v5250 = vsel %vm2162, %v5240, %v5242
      %v5251 = vsel %vm2162, %v5244, %v5246
      %v5252 = vsel %vm2162, %v5246, %v5248
      %5259 = vrot.lane.b32.xlu0 %v5117, 95
      %v5260 = vpop.permute.xlu0 %5259
      %5261 = vrot.lane.b32.xlu0 %v5118, 95
      %v5262 = vpop.permute.xlu0 %5261
      %5263 = vrot.lane.b32.xlu0 %v5119, 95
      %v5264 = vpop.permute.xlu0 %5263
      %5265 = vrot.lane.b32.xlu0 %v5120, 95
      %v5266 = vpop.permute.xlu0 %5265
      %5267 = vrot.lane.b32.xlu0 %v5121, 95
      %v5268 = vpop.permute.xlu0 %5267
      %5269 = vrot.lane.b32.xlu0 %v5122, 95
      %v5270 = vpop.permute.xlu0 %5269
      %v5271 = vsel %vm2207, %v5260, %v5262
      %v5272 = vsel %vm2207, %v5262, %v5264
      %v5273 = vsel %vm2207, %v5266, %v5268
      %v5274 = vsel %vm2207, %v5268, %v5270
      %5281 = vrot.lane.b32.xlu0 %v5123, 94
      %v5282 = vpop.permute.xlu0 %5281
      %5283 = vrot.lane.b32.xlu0 %v5124, 94
      %v5284 = vpop.permute.xlu0 %5283
      %5285 = vrot.lane.b32.xlu0 %v5125, 94
      %v5286 = vpop.permute.xlu0 %5285
      %5287 = vrot.lane.b32.xlu0 %v5126, 94
      %v5288 = vpop.permute.xlu0 %5287
      %5289 = vrot.lane.b32.xlu0 %v5127, 94
      %v5290 = vpop.permute.xlu0 %5289
      %5291 = vrot.lane.b32.xlu0 %v5128, 94
      %v5292 = vpop.permute.xlu0 %5291
      %v5293 = vsel %vm2252, %v5282, %v5284
      %v5294 = vsel %vm2252, %v5284, %v5286
      %v5295 = vsel %vm2252, %v5288, %v5290
      %v5296 = vsel %vm2252, %v5290, %v5292
      %v5297 = vld [vmem:[%s21] sm:$0xff]
      %v5298 = vld [vmem:[%s21 + $0x8] sm:$0xf]
      %v5299 = vld [vmem:[%s21 + $0xc] sm:$0xff]
      %v5300 = vld [vmem:[%s21 + $0x14] sm:$0xf]
      %v5301 = vld [vmem:[%s21 + $0x18] sm:$0xff]
      %v5302 = vld [vmem:[%s21 + $0x20] sm:$0xf]
      %v5303 = vld [vmem:[%s21 + $0x24] sm:$0xff]
      %v5304 = vld [vmem:[%s21 + $0x2c] sm:$0xf]
      %v5305 = vld [vmem:[%s22] sm:$0xff]
      %v5306 = vld [vmem:[%s22 + $0x8] sm:$0xff]
      %v5307 = vld [vmem:[%s22 + $0x10] sm:$0xff]
      %v5308 = vld [vmem:[%s22 + $0x18] sm:$0xff]
      %5310 = vset.pattern.permute.xlu0 0
      %5311 = vperm.xlu0 %5310, %v5305
      %v5312 = vpop.permute.xlu0 %5311
      %5315 = vset.pattern.permute.xlu0 0
      %5316 = vperm.xlu0 %5315, %v5306
      %v5317 = vpop.permute.xlu0 %5316
      %5320 = vset.pattern.permute.xlu0 0
      %5321 = vperm.xlu0 %5320, %v5307
      %v5322 = vpop.permute.xlu0 %5321
      %5325 = vset.pattern.permute.xlu0 0
      %5326 = vperm.xlu0 %5325, %v5308
      %v5327 = vpop.permute.xlu0 %5326
      %v5337 = vunpack.c.l.b16 %v5297
      %v5338 = vunpack.c.h.b16 %v5297
      %v5339 = vunpack.c.l.b16 %v5298
      %v5340 = vunpack.c.l.b16 %v5299
      %v5341 = vunpack.c.h.b16 %v5299
      %v5342 = vunpack.c.l.b16 %v5300
      %v5343 = vunpack.c.l.b16 %v5301
      %v5344 = vunpack.c.h.b16 %v5301
      %v5345 = vunpack.c.l.b16 %v5302
      %v5346 = vunpack.c.l.b16 %v5303
      %v5347 = vunpack.c.h.b16 %v5303
      %v5348 = vunpack.c.l.b16 %v5304
      %v5349 = vpack.c.b16 %v5340, %v5337
      %v5350 = vpack.c.b16 %v5341, %v5338
      %v5351 = vpack.c.b16 %v5342, %v5339
      %v5352 = vpack.c.b16 %v5346, %v5343
      %v5353 = vpack.c.b16 %v5347, %v5344
      %v5354 = vpack.c.b16 %v5348, %v5345
      %5365 = vrot.lane.b32.xlu0 %v5081, 17
      %v5366 = vpop.permute.xlu0 %5365
      %5367 = vrot.lane.b32.xlu0 %v5082, 17
      %v5368 = vpop.permute.xlu0 %5367
      %5369 = vrot.lane.b32.xlu0 %v5083, 17
      %v5370 = vpop.permute.xlu0 %5369
      %5371 = vrot.lane.b32.xlu0 %v5084, 17
      %v5372 = vpop.permute.xlu0 %5371
      %5373 = vrot.lane.b32.xlu0 %v5085, 17
      %v5374 = vpop.permute.xlu0 %5373
      %5375 = vrot.lane.b32.xlu0 %v5086, 17
      %v5376 = vpop.permute.xlu0 %5375
      %5377 = vrot.lane.b32.xlu0 %v5147, 17
      %v5378 = vpop.permute.xlu0 %5377
      %5379 = vrot.lane.b32.xlu0 %v5148, 17
      %v5380 = vpop.permute.xlu0 %5379
      %5381 = vrot.lane.b32.xlu0 %v5140, 17
      %v5382 = vpop.permute.xlu0 %5381
      %5383 = vrot.lane.b32.xlu0 %v5149, 17
      %v5384 = vpop.permute.xlu0 %5383
      %5385 = vrot.lane.b32.xlu0 %v5150, 17
      %v5386 = vpop.permute.xlu0 %5385
      %5387 = vrot.lane.b32.xlu0 %v5146, 17
      %v5388 = vpop.permute.xlu0 %5387
      %5389 = vrot.lane.b32.xlu0 %v5169, 17
      %v5390 = vpop.permute.xlu0 %5389
      %5391 = vrot.lane.b32.xlu0 %v5170, 17
      %v5392 = vpop.permute.xlu0 %5391
      %5393 = vrot.lane.b32.xlu0 %v5162, 17
      %v5394 = vpop.permute.xlu0 %5393
      %5395 = vrot.lane.b32.xlu0 %v5171, 17
      %v5396 = vpop.permute.xlu0 %5395
      %5397 = vrot.lane.b32.xlu0 %v5172, 17
      %v5398 = vpop.permute.xlu0 %5397
      %5399 = vrot.lane.b32.xlu0 %v5168, 17
      %v5400 = vpop.permute.xlu0 %5399
      %5401 = vrot.lane.b32.xlu0 %v5191, 17
      %v5402 = vpop.permute.xlu0 %5401
      %5403 = vrot.lane.b32.xlu0 %v5192, 17
      %v5404 = vpop.permute.xlu0 %5403
      %5405 = vrot.lane.b32.xlu0 %v5184, 17
      %v5406 = vpop.permute.xlu0 %5405
      %5407 = vrot.lane.b32.xlu0 %v5193, 17
      %v5408 = vpop.permute.xlu0 %5407
      %5409 = vrot.lane.b32.xlu0 %v5194, 17
      %v5410 = vpop.permute.xlu0 %5409
      %5411 = vrot.lane.b32.xlu0 %v5190, 17
      %v5412 = vpop.permute.xlu0 %5411
      %5413 = vrot.lane.b32.xlu0 %v5200, 17
      %v5414 = vpop.permute.xlu0 %5413
      %5415 = vrot.lane.b32.xlu0 %v5207, 17
      %v5416 = vpop.permute.xlu0 %5415
      %5417 = vrot.lane.b32.xlu0 %v5202, 17
      %v5418 = vpop.permute.xlu0 %5417
      %5419 = vrot.lane.b32.xlu0 %v5204, 17
      %v5420 = vpop.permute.xlu0 %5419
      %5421 = vrot.lane.b32.xlu0 %v5208, 17
      %v5422 = vpop.permute.xlu0 %5421
      %5423 = vrot.lane.b32.xlu0 %v5206, 17
      %v5424 = vpop.permute.xlu0 %5423
      %5425 = vrot.lane.b32.xlu0 %v5216, 17
      %v5426 = vpop.permute.xlu0 %5425
      %5427 = vrot.lane.b32.xlu0 %v5227, 17
      %v5428 = vpop.permute.xlu0 %5427
      %5429 = vrot.lane.b32.xlu0 %v5228, 17
      %v5430 = vpop.permute.xlu0 %5429
      %5431 = vrot.lane.b32.xlu0 %v5222, 17
      %v5432 = vpop.permute.xlu0 %5431
      %5433 = vrot.lane.b32.xlu0 %v5229, 17
      %v5434 = vpop.permute.xlu0 %5433
      %5435 = vrot.lane.b32.xlu0 %v5230, 17
      %v5436 = vpop.permute.xlu0 %5435
      %5437 = vrot.lane.b32.xlu0 %v5238, 17
      %v5438 = vpop.permute.xlu0 %5437
      %5439 = vrot.lane.b32.xlu0 %v5249, 17
      %v5440 = vpop.permute.xlu0 %5439
      %5441 = vrot.lane.b32.xlu0 %v5250, 17
      %v5442 = vpop.permute.xlu0 %5441
      %5443 = vrot.lane.b32.xlu0 %v5244, 17
      %v5444 = vpop.permute.xlu0 %5443
      %5445 = vrot.lane.b32.xlu0 %v5251, 17
      %v5446 = vpop.permute.xlu0 %5445
      %5447 = vrot.lane.b32.xlu0 %v5252, 17
      %v5448 = vpop.permute.xlu0 %5447
      %5449 = vrot.lane.b32.xlu0 %v5260, 17
      %v5450 = vpop.permute.xlu0 %5449
      %5451 = vrot.lane.b32.xlu0 %v5271, 17
      %v5452 = vpop.permute.xlu0 %5451
      %5453 = vrot.lane.b32.xlu0 %v5272, 17
      %v5454 = vpop.permute.xlu0 %5453
      %5455 = vrot.lane.b32.xlu0 %v5266, 17
      %v5456 = vpop.permute.xlu0 %5455
      %5457 = vrot.lane.b32.xlu0 %v5273, 17
      %v5458 = vpop.permute.xlu0 %5457
      %5459 = vrot.lane.b32.xlu0 %v5274, 17
      %v5460 = vpop.permute.xlu0 %5459
      %5461 = vrot.lane.b32.xlu0 %v5282, 17
      %v5462 = vpop.permute.xlu0 %5461
      %5463 = vrot.lane.b32.xlu0 %v5293, 17
      %v5464 = vpop.permute.xlu0 %5463
      %5465 = vrot.lane.b32.xlu0 %v5294, 17
      %v5466 = vpop.permute.xlu0 %5465
      %5467 = vrot.lane.b32.xlu0 %v5288, 17
      %v5468 = vpop.permute.xlu0 %5467
      %5469 = vrot.lane.b32.xlu0 %v5295, 17
      %v5470 = vpop.permute.xlu0 %5469
      %5471 = vrot.lane.b32.xlu0 %v5296, 17
      %v5472 = vpop.permute.xlu0 %5471
      %v5473 = vsel %vm1903, %v5366, %v5368
      %v5474 = vsel %vm1903, %v5368, %v5370
      %v5475 = vsel %vm1903, %v5372, %v5374
      %v5476 = vsel %vm1903, %v5374, %v5376
      %v5477 = vsel %vm1903, %v5378, %v5380
      %v5478 = vsel %vm1903, %v5380, %v5382
      %v5479 = vsel %vm1903, %v5384, %v5386
      %v5480 = vsel %vm1903, %v5386, %v5388
      %v5481 = vsel %vm1903, %v5390, %v5392
      %v5482 = vsel %vm1903, %v5392, %v5394
      %v5483 = vsel %vm1903, %v5396, %v5398
      %v5484 = vsel %vm1903, %v5398, %v5400
      %v5485 = vsel %vm1903, %v5402, %v5404
      %v5486 = vsel %vm1903, %v5404, %v5406
      %v5487 = vsel %vm1903, %v5408, %v5410
      %v5488 = vsel %vm1903, %v5410, %v5412
      %v5489 = vsel %vm1903, %v5414, %v5416
      %v5490 = vsel %vm1903, %v5416, %v5418
      %v5491 = vsel %vm1903, %v5420, %v5422
      %v5492 = vsel %vm1903, %v5422, %v5424
      %v5493 = vsel %vm1903, %v5426, %v5428
      %v5494 = vsel %vm1903, %v5428, %v5430
      %v5495 = vsel %vm1903, %v5432, %v5434
      %v5496 = vsel %vm1903, %v5434, %v5436
      %v5497 = vsel %vm1903, %v5438, %v5440
      %v5498 = vsel %vm1903, %v5440, %v5442
      %v5499 = vsel %vm1903, %v5444, %v5446
      %v5500 = vsel %vm1903, %v5446, %v5448
      %v5501 = vsel %vm1903, %v5450, %v5452
      %v5502 = vsel %vm1903, %v5452, %v5454
      %v5503 = vsel %vm1903, %v5456, %v5458
      %v5504 = vsel %vm1903, %v5458, %v5460
      %v5505 = vsel %vm1903, %v5462, %v5464
      %v5506 = vsel %vm1903, %v5464, %v5466
      %v5507 = vsel %vm1903, %v5468, %v5470
      %v5508 = vsel %vm1903, %v5470, %v5472
      %v5546 = vsel %vm938, %v5351, 0
      %v5549 = vsel %vm938, %v5354, 0
      %5551 = vmatprep.subr.bf16.mxu0 %v5488
      %5552 = vmatpush1.bf16.msra.mxu0 %v5487
      %5553 = vmatprep.subr.bf16.mxu0 %v5486
      %5554 = vmatpush1.bf16.msra.mxu0 %v5485
      %5555 = vmatprep.subr.bf16.mxu0 %v5484
      %5556 = vmatpush1.bf16.msra.mxu0 %v5483
      %5557 = vmatprep.subr.bf16.mxu0 %v5482
      %5558 = vmatpush1.bf16.msra.mxu0 %v5481
      %5559 = vmatprep.subr.bf16.mxu0 %v5480
      %5560 = vmatpush1.bf16.msra.mxu0 %v5479
      %5561 = vmatprep.subr.bf16.mxu0 %v5478
      %5562 = vmatpush1.bf16.msra.mxu0 %v5477
      %5563 = vmatprep.subr.bf16.mxu0 %v5476
      %5564 = vmatpush1.bf16.msra.mxu0 %v5475
      %5565 = vmatprep.subr.bf16.mxu0 %v5474
      %5566 = vmatpush1.bf16.msra.mxu0 %v5473
      %5567 = vmatprep.subr.bf16.mxu0 %v5504
      %5568 = vmatpush2.bf16.msra.mxu0 %v5503
      %5569 = vmatprep.subr.bf16.mxu0 %v5502
      %5570 = vmatpush2.bf16.msra.mxu0 %v5501
      %5571 = vmatprep.subr.bf16.mxu0 %v5500
      %5572 = vmatpush2.bf16.msra.mxu0 %v5499
      %5573 = vmatprep.subr.bf16.mxu0 %v5498
      %5574 = vmatpush2.bf16.msra.mxu0 %v5497
      %5575 = vmatprep.subr.bf16.mxu0 %v5496
      %5576 = vmatpush2.bf16.msra.mxu0 %v5495
      %5577 = vmatprep.subr.bf16.mxu0 %v5494
      %5578 = vmatpush2.bf16.msra.mxu0 %v5493
      %5579 = vmatprep.subr.bf16.mxu0 %v5492
      %5580 = vmatpush2.bf16.msra.mxu0 %v5491
      %5581 = vmatprep.subr.bf16.mxu0 %v5490
      %5582 = vmatpush2.bf16.msra.mxu0 %v5489
      %5583 = vmatprep.mubr.bf16.mxu0 %v5350
      %5584 = vmatmul.mubr.bf16.gmra.mxu0 %v5349
      %v5585 = vpop.f32.mrf.mxu0
      %v5586 = vadd.f32 %v5312, %v5585
      %v5587 = vpop.f32.mrf.mxu0
      %v5588 = vadd.f32 %v5312, %v5587
      %v5589 = vpop.f32.mrf.mxu0
      %v5590 = vadd.f32 %v5317, %v5589
      %v5591 = vpop.f32.mrf.mxu0
      %v5592 = vadd.f32 %v5317, %v5591
      %5593 = vmatprep.mubr.bf16.mxu0 %v5353
      %5594 = vmatmul.mubr.bf16.gmra.mxu0 %v5352
      %v5595 = vpop.f32.mrf.mxu0
      %v5596 = vadd.f32 %v5322, %v5595
      %v5597 = vpop.f32.mrf.mxu0
      %v5598 = vadd.f32 %v5322, %v5597
      %v5599 = vpop.f32.mrf.mxu0
      %v5600 = vadd.f32 %v5327, %v5599
      %v5601 = vpop.f32.mrf.mxu0
      %v5602 = vadd.f32 %v5327, %v5601
      %5603 = vdwg.mxu0
      %5604 = vmatprep.subr.bf16.mxu0 0
      %5605 = vmatpush1.bf16.msra.mxu0 0
      %5606 = vmatprep.subr.bf16.mxu0 0
      %5607 = vmatpush1.bf16.msra.mxu0 0
      %5608 = vmatprep.subr.bf16.mxu0 0
      %5609 = vmatpush1.bf16.msra.mxu0 0
      %5610 = vmatprep.subr.bf16.mxu0 0
      %5611 = vmatpush1.bf16.msra.mxu0 0
      %5612 = vmatprep.subr.bf16.mxu0 0
      %5613 = vmatpush1.bf16.msra.mxu0 0
      %5614 = vmatprep.subr.bf16.mxu0 0
      %5615 = vmatpush1.bf16.msra.mxu0 0
      %5616 = vmatprep.subr.bf16.mxu0 %v5508
      %5617 = vmatpush1.bf16.msra.mxu0 %v5507
      %5618 = vmatprep.subr.bf16.mxu0 %v5506
      %5619 = vmatpush1.bf16.msra.mxu0 %v5505
      %5620 = vmatprep.subr.bf16.mxu0 0
      %5621 = vmatpush2.bf16.msra.mxu0 0
      %5622 = vmatprep.subr.bf16.mxu0 0
      %5623 = vmatpush2.bf16.msra.mxu0 0
      %5624 = vmatprep.subr.bf16.mxu0 0
      %5625 = vmatpush2.bf16.msra.mxu0 0
      %5626 = vmatprep.subr.bf16.mxu0 0
      %5627 = vmatpush2.bf16.msra.mxu0 0
      %5628 = vmatprep.subr.bf16.mxu0 0
      %5629 = vmatpush2.bf16.msra.mxu0 0
      %5630 = vmatprep.subr.bf16.mxu0 0
      %5631 = vmatpush2.bf16.msra.mxu0 0
      %5632 = vmatprep.subr.bf16.mxu0 0
      %5633 = vmatpush2.bf16.msra.mxu0 0
      %5634 = vmatprep.subr.bf16.mxu0 0
      %5635 = vmatpush2.bf16.msra.mxu0 0
      %5636 = vmatprep.mubr.bf16.mxu0 0
      %5637 = vmatmul.mubr.bf16.gmra.mxu0 %v5546
      %v5638 = vpop.f32.mrf.mxu0
      %v5639 = vadd.f32 %v5586, %v5638
      %v5640 = vpop.f32.mrf.mxu0
      %v5641 = vadd.f32 %v5588, %v5640
      %v5642 = vpop.f32.mrf.mxu0
      %v5643 = vadd.f32 %v5590, %v5642
      %v5644 = vpop.f32.mrf.mxu0
      %v5645 = vadd.f32 %v5592, %v5644
      %5646 = vmatprep.mubr.bf16.mxu0 0
      %5647 = vmatmul.mubr.bf16.gmra.mxu0 %v5549
      %v5648 = vpop.f32.mrf.mxu0
      %v5649 = vadd.f32 %v5596, %v5648
      %v5650 = vpop.f32.mrf.mxu0
      %v5651 = vadd.f32 %v5598, %v5650
      %v5652 = vpop.f32.mrf.mxu0
      %v5653 = vadd.f32 %v5600, %v5652
      %v5654 = vpop.f32.mrf.mxu0
      %v5655 = vadd.f32 %v5602, %v5654
      %5656 = vdwg.mxu0
      %s5657 = sld [smem:[#allocation2]]
      %v5658 = vmul.f32 %v776, %v5059
      %v5659 = vmul.f32 %v777, %v5061
      %v5660 = vmul.f32 %v778, %v5063
      %v5661 = vmul.f32 %v779, %v5065
      %v5662 = vmul.f32 %v780, %v5069
      %v5663 = vmul.f32 %v781, %v5071
      %v5664 = vmul.f32 %v782, %v5073
      %v5665 = vmul.f32 %v783, %v5075
      %v5666 = vadd.f32 %v5658, %v5639
      %v5667 = vadd.f32 %v5659, %v5641
      %v5668 = vadd.f32 %v5660, %v5643
      %v5669 = vadd.f32 %v5661, %v5645
      %v5670 = vadd.f32 %v5662, %v5649
      %v5671 = vadd.f32 %v5663, %v5651
      %v5672 = vadd.f32 %v5664, %v5653
      %v5673 = vadd.f32 %v5665, %v5655
      %v5674 = vstv %s5657
      %v5675 = vmul.f32 %v5674, %v5666
      %v5676 = vmul.f32 %v5674, %v5667
      %v5677 = vmul.f32 %v5674, %v5668
      %v5678 = vmul.f32 %v5674, %v5669
      %v5679 = vmul.f32 %v5674, %v5670
      %v5680 = vmul.f32 %v5674, %v5671
      %v5681 = vmul.f32 %v5674, %v5672
      %v5682 = vmul.f32 %v5674, %v5673
      %v5683 = vadd.f32 %v776, %v5675
      %v5684 = vadd.f32 %v777, %v5676
      %v5685 = vadd.f32 %v778, %v5677
      %v5686 = vadd.f32 %v779, %v5678
      %v5687 = vadd.f32 %v780, %v5679
      %v5688 = vadd.f32 %v781, %v5680
      %v5689 = vadd.f32 %v782, %v5681
      %v5690 = vadd.f32 %v783, %v5682
      %5691 = vst [vmem:[%s758] sm:$0xff] %v5683
      %5692 = vst [vmem:[%s758 + $0x8] sm:$0xff] %v5684
      %5693 = vst [vmem:[%s758 + $0x10] sm:$0xff] %v5685
      %5694 = vst [vmem:[%s758 + $0x18] sm:$0xff] %v5686
      %5695 = vst [vmem:[%s758 + $0x20] sm:$0xff] %v5687
      %5696 = vst [vmem:[%s758 + $0x28] sm:$0xff] %v5688
      %5697 = vst [vmem:[%s758 + $0x30] sm:$0xff] %v5689
      %5698 = vst [vmem:[%s758 + $0x38] sm:$0xff] %v5690
      %p5699 = scmp.lt.s32.totalorder %s36, 1
      %s5700 = scalar_select %p5699, %s36, 1
      %s5701 = smul.addr %s5700, 8
      %s5702 = smul.addr %s5701, 8
      %s5703 = scalar_lea.vmem %s24, %s5702
      // Predicated region
      $region117: #{_lambda_.1} parent=115 // pred_check
        %p5704 = pneg %p568
      $region118: #{_lambda_.1} parent=115 // pred_check_branch
        %5706 = sbr.rel (%p5704) target = $region120
      $region119: #{_lambda_.1} parent=115 // pred_region
        _
      $region120: #{_lambda_.1} parent=115 // pred_fallthru
        _
    $region116: #{_lambda_.1} parent=5 // pred_fallthru
      _
    %p5707 = scmp.le.s32.totalorder 2, %s31
    // Predicated region
    $region121: #{_lambda_.1} parent=5 // pred_check
      %p5708 = pneg %p5707
    $region122: #{_lambda_.1} parent=5 // pred_check_branch
      %5710 = sbr.rel (%p5708) target = $region124
    $region123: #{_lambda_.1} parent=5 // pred_region
      %s5711 = ssub.s32 %s31, 2
      // Predicated region
      $region125: #{_lambda_.1} parent=123 // pred_check
        %p5712 = pneg %p574
      $region126: #{_lambda_.1} parent=123 // pred_check_branch
        %5714 = sbr.rel (%p5712) target = $region128
      $region127: #{_lambda_.1} parent=123 // pred_region
        %p5715 = scmp.lt.s32.totalorder %s37, 1
        %s5716 = scalar_select %p5715, %s37, 1
        %s5717 = smul.addr %s5716, 8
        %s5718 = smul.addr %s5717, 8
        %s5719 = scalar_lea.vmem %s24, %s5718
      $region128: #{_lambda_.1} parent=123 // pred_fallthru
        _
    $region124: #{_lambda_.1} parent=5 // pred_fallthru
      _
  $region6: #{_lambda_.1} parent=0 // loop_footer
    %s35 = sadd.s32 1, %s31
  $region7: #{_lambda_.1} parent=0 // loop_footer_branch
    %30 = sbr.rel target = $region3
  $region8: #{_lambda_.1} parent=0 // loop_exit
    _

</llo_original>
